<compile_context>
chip_gen: v6e
topology: v6e:2x2x1
jax: 0.10.0
libtpu: 0.0.40
codegen_flags: <defaults>
</compile_context>

<pallas_src>
import functools

import jax
import jax.numpy as jnp
import numpy as np
from jax.experimental import pallas as pl
from jax.experimental.pallas import tpu as pltpu

_EPS = 1e-5  # BatchNorm2d default


def _round_up(x, m):
    return ((x + m - 1) // m) * m


# ----------------------------------------------------------------------------
# Fused kernel: ConvT->BN->ReLU x3, ConvT->Tanh, all activations in VMEM.
# cfg per layer: (k, rows_in, rows_out, wout, cout, pad_out, tap0, bn_idx)
# ----------------------------------------------------------------------------
def _generator_kernel(noise_ref, mcat1_ref, m2_hbm, m3_hbm, m4_hbm,
                      g_ref, f_ref, e_ref, vec_ref, out_ref,
                      m2_v, m3_v, m4_v, sem, *, cfgs):
    f32, bf16 = jnp.float32, jnp.bfloat16

    # Kick off the later-layer weight DMAs immediately; each is waited on right
    # before its layer, overlapping HBM transfer with earlier-layer compute.
    copies = []
    for i, (hbm, vmem) in enumerate(((m2_hbm, m2_v), (m3_hbm, m3_v),
                                     (m4_hbm, m4_v))):
        cp = pltpu.make_async_copy(hbm, vmem, sem.at[i])
        cp.start()
        copies.append(cp)
    mrefs = (mcat1_ref, m2_v, m3_v, m4_v)

    n_bn = len(cfgs) - 1
    bias_row = 2 * n_bn

    def convt(x, mref, cfg):
        k, rows_in, rows_out, _, _, pad_out, tap0, _ = cfg
        # One wide bf16 GEMM folds the W taps, the W stride and channel mixing.
        p = jnp.dot(x.astype(bf16), mref[...], preferred_element_type=f32)
        acc = None
        for kh in range(k):                                   # static unroll
            g = g_ref[tap0 + kh, :rows_out, :rows_in]         # 0/1 H-scatter, f32
            t = jnp.dot(g, p[:, kh * pad_out:(kh + 1) * pad_out],
                        preferred_element_type=f32)
            acc = t if acc is None else acc + t
        return acc                                            # (rows_out, pad) f32

    def bn_relu(acc, cfg):
        _, _, rows_out, wout, cout, pad_out, _, bn = cfg
        inv_cnt = 1.0 / float(rows_out * wout)
        fold = f_ref[bn, :pad_out, :cout].astype(f32)         # (pad, C)
        expand = e_ref[bn, :cout, :pad_out].astype(f32)       # (C, pad)
        gamma = vec_ref[2 * bn:2 * bn + 1, :cout]
        beta = vec_ref[2 * bn + 1:2 * bn + 2, :cout]
        colsum = jnp.sum(acc, axis=0, keepdims=True)
        sqsum = jnp.sum(acc * acc, axis=0, keepdims=True)
        # Per-channel sums of x and x^2 in one MXU fold GEMM.
        stats = jnp.dot(jnp.concatenate([colsum, sqsum], axis=0), fold,
                        preferred_element_type=f32) * inv_cnt  # (2, C)
        mean_v = stats[0:1]
        var_v = stats[1:2] - mean_v * mean_v
        s_v = gamma * jax.lax.rsqrt(var_v + _EPS)
        t_v = beta - mean_v * s_v
        # Broadcast per-channel scale/shift to lane width with one GEMM.
        st = jnp.dot(jnp.concatenate([s_v, t_v], axis=0), expand,
                     preferred_element_type=f32)               # (2, pad)
        return jnp.maximum(acc * st[0:1] + st[1:2], 0.0)

    x = noise_ref[...]                                         # (N, z)
    for li, cfg in enumerate(cfgs):
        if li > 0:
            copies[li - 1].wait()
        acc = convt(x, mrefs[li], cfg)
        if cfg[7] >= 0:
            x = bn_relu(acc, cfg)
        else:  # final layer: bias + tanh (bias of BN layers is dropped: cancelled)
            x = jnp.tanh(acc + vec_ref[bias_row:bias_row + 1, :cfg[5]])
    out_ref[...] = x.astype(out_ref.dtype)


# ----------------------------------------------------------------------------
# One-time host-side weight restructuring (call again only when params change).
# ----------------------------------------------------------------------------
def prepare_generator(params, batch):
    n = int(batch)
    strides = (2, 1, 2, 2)
    w_names = ("w1", "w2", "w3", "w4")
    gamma_names = ("g1", "g2", "g3")
    beta_names = ("be1", "be2", "be3")

    layers = []
    hin = win = 1
    in_cols = int(np.asarray(params["w1"]).shape[0])           # z_dim
    for name, s in zip(w_names, strides):
        w = np.asarray(params[name], np.float32)               # (Cin, Cout, k, k)
        cin, cout, k, _ = w.shape
        hout = (hin - 1) * s + k
        wout = (win - 1) * s + k
        pad_out = _round_up(wout * cout, 128)
        # Mcat[(iw*Cin+ci), kh*pad + ow*Cout + co] = w[ci, co, kh, ow - iw*s]
        mcat = np.zeros((in_cols, k * pad_out), np.float32)
        for kh in range(k):
            for kw in range(k):
                for iw in range(win):
                    ow = iw * s + kw
                    r0, c0 = iw * cin, kh * pad_out + ow * cout
                    mcat[r0:r0 + cin, c0:c0 + cout] = w[:, :, kh, kw]
        # G[kh][(nb, ih*s + kh), (nb, ih)] = 1   (H-stride row scatter)
        g = np.zeros((k, n * hout, n * hin), np.float32)
        for kh in range(k):
            for nb in range(n):
                for ih in range(hin):
                    g[kh, nb * hout + ih * s + kh, nb * hin + ih] = 1.0
        layers.append(dict(k=k, cout=cout, hout=hout, wout=wout, pad_out=pad_out,
                           rows_in=n * hin, rows_out=n * hout, mcat=mcat, g=g))
        hin, win, in_cols = hout, wout, pad_out

    # Pack all G taps into one array.
    total_taps = sum(L["k"] for L in layers)
    g_all = np.zeros((total_taps,
                      max(L["rows_out"] for L in layers),
                      max(L["rows_in"] for L in layers)), np.float32)
    tap = 0
    for L in layers:
        L["tap0"] = tap
        g_all[tap:tap + L["k"], :L["rows_out"], :L["rows_in"]] = L["g"]
        tap += L["k"]

    # BatchNorm fold/expand matrices and the gamma/beta/final-bias vector pack.
    bn_layers = layers[:-1]
    n_bn = len(bn_layers)
    max_pad = max(L["pad_out"] for L in bn_layers)
    max_c = max(L["cout"] for L in bn_layers)
    f_all = np.zeros((n_bn, max_pad, max_c), np.float32)
    e_all = np.zeros((n_bn, max_c, max_pad), np.float32)
    vec_cols = max(max_c, layers[-1]["pad_out"])
    vecs = np.zeros((_round_up(2 * n_bn + 1, 8), vec_cols), np.float32)
    for i, (L, gn, bnm) in enumerate(zip(bn_layers, gamma_names, beta_names)):
        cout, wout = L["cout"], L["wout"]
        for ow in range(wout):
            f_all[i, ow * cout:(ow + 1) * cout, :cout] = np.eye(cout,
                                                                dtype=np.float32)
        e_all[i, :cout, :L["pad_out"]] = f_all[i, :L["pad_out"], :cout].T
        vecs[2 * i, :cout] = np.asarray(params[gn], np.float32)
        vecs[2 * i + 1, :cout] = np.asarray(params[bnm], np.float32)
    lf = layers[-1]
    bias4 = np.asarray(params["b4"], np.float32)
    for ow in range(lf["wout"]):
        vecs[2 * n_bn, ow * lf["cout"]:(ow + 1) * lf["cout"]] = bias4

    cfgs = tuple(
        (int(L["k"]), int(L["rows_in"]), int(L["rows_out"]), int(L["wout"]),
         int(L["cout"]), int(L["pad_out"]), int(L["tap0"]),
         int(i) if i < n_bn else -1)
        for i, L in enumerate(layers))

    arrays = (jnp.asarray(layers[0]["mcat"], jnp.bfloat16),
              jnp.asarray(layers[1]["mcat"], jnp.bfloat16),
              jnp.asarray(layers[2]["mcat"], jnp.bfloat16),
              jnp.asarray(layers[3]["mcat"], jnp.bfloat16),
              jnp.asarray(g_all),                      # exact 0/1, tiny -> f32
              jnp.asarray(f_all, jnp.bfloat16),
              jnp.asarray(e_all, jnp.bfloat16),
              jnp.asarray(vecs))
    return arrays, cfgs


# ----------------------------------------------------------------------------
# Generator forward (matches torch Generator.forward with batch-stat BN)
# ----------------------------------------------------------------------------
@functools.partial(jax.jit, static_argnames=("cfgs",))
def generator_forward(noise, arrays, cfgs):
    mcat1, m2, m3, m4, g_all, f_all, e_all, vecs = arrays
    n = noise.shape[0]
    _, _, rows_out, wout, cout, pad_out, _, _ = cfgs[-1]
    vmem = pltpu.MemorySpace.VMEM
    out2d = pl.pallas_call(
        functools.partial(_generator_kernel, cfgs=cfgs),
        out_shape=jax.ShapeDtypeStruct((rows_out, pad_out), jnp.float32),
        in_specs=[pl.BlockSpec(memory_space=vmem),      # noise
                  pl.BlockSpec(memory_space=vmem),      # layer-1 Mcat (tiny)
                  pl.BlockSpec(memory_space=pl.ANY),    # layer-2 Mcat (HBM)
                  pl.BlockSpec(memory_space=pl.ANY),    # layer-3 Mcat (HBM)
                  pl.BlockSpec(memory_space=pl.ANY),    # layer-4 Mcat (HBM)
                  pl.BlockSpec(memory_space=vmem),      # G taps
                  pl.BlockSpec(memory_space=vmem),      # BN fold mats
                  pl.BlockSpec(memory_space=vmem),      # BN expand mats
                  pl.BlockSpec(memory_space=vmem)],     # gamma/beta/bias pack
        out_specs=pl.BlockSpec(memory_space=vmem),
        scratch_shapes=[pltpu.VMEM(m2.shape, m2.dtype),
                        pltpu.VMEM(m3.shape, m3.dtype),
                        pltpu.VMEM(m4.shape, m4.dtype),
                        pltpu.SemaphoreType.DMA((3,))],
    )(noise.astype(jnp.float32), mcat1, m2, m3, m4, g_all, f_all, e_all, vecs)
    hout = rows_out // n
    img = out2d[:, :wout * cout].reshape(n, hout, wout, cout)
    return jnp.transpose(img, (0, 3, 1, 2))                  # NCHW


# ----------------------------------------------------------------------------
# Deterministic parameter init (synthetic; same shapes as nn.Module.__init__)
# ----------------------------------------------------------------------------
def init_params(key, z_dim=8, hidden=16, image_channels=1):
    ks = jax.random.split(key, 12)
    f32 = jnp.float32

    def conv_w(k, cin, cout, ksz):
        return jax.random.normal(k, (cin, cout, ksz, ksz), f32) * 0.05

    h = hidden
    return {
        "w1": conv_w(ks[0], z_dim, 4 * h, 3),
        "b1": jax.random.normal(ks[1], (4 * h,), f32) * 0.01,
        "g1": 1.0 + 0.1 * jax.random.normal(ks[2], (4 * h,), f32),
        "be1": 0.1 * jax.random.normal(ks[3], (4 * h,), f32),
        "w2": conv_w(ks[4], 4 * h, 2 * h, 4),
        "b2": jax.random.normal(ks[5], (2 * h,), f32) * 0.01,
        "g2": 1.0 + 0.1 * jax.random.normal(ks[6], (2 * h,), f32),
        "be2": 0.1 * jax.random.normal(ks[7], (2 * h,), f32),
        "w3": conv_w(ks[8], 2 * h, h, 3),
        "b3": jax.random.normal(ks[9], (h,), f32) * 0.01,
        "g3": 1.0 + 0.1 * jax.random.normal(ks[10], (h,), f32),
        "be3": 0.1 * jax.random.normal(ks[11], (h,), f32),
        "w4": conv_w(jax.random.fold_in(key, 99), h, image_channels, 4),
        "b4": jax.random.normal(jax.random.fold_in(key, 100),
                                (image_channels,), f32) * 0.01,
    }


# ----------------------------------------------------------------------------
# Pure-JAX reference (independent formulation, for numerical validation only)
# ----------------------------------------------------------------------------
def _ref_convt_nhwc(x, w, stride):
    k = w.shape[2]
    rhs = jnp.transpose(jnp.flip(w, (2, 3)), (2, 3, 0, 1))  # HWIO
    return jax.lax.conv_general_dilated(
        x, rhs, window_strides=(1, 1),
        padding=[(k - 1, k - 1), (k - 1, k - 1)],
        lhs_dilation=(stride, stride),
        dimension_numbers=("NHWC", "HWIO", "NHWC"),
        precision=jax.lax.Precision.HIGHEST)


def _ref_forward(noise, params):
    x = noise.reshape(noise.shape[0], 1, 1, -1)

    def block(x, w, b, g, be, s):
        y = _ref_convt_nhwc(x, w, s) + b
        mean = jnp.mean(y, axis=(0, 1, 2), keepdims=True)
        var = jnp.mean((y - mean) ** 2, axis=(0, 1, 2), keepdims=True)
        y = (y - mean) * jax.lax.rsqrt(var + _EPS) * g + be
        return jnp.maximum(y, 0.0)

    x = block(x, params["w1"], params["b1"], params["g1"], params["be1"], 2)
    x = block(x, params["w2"], params["b2"], params["g2"], params["be2"], 1)
    x = block(x, params["w3"], params["b3"], params["g3"], params["be3"], 2)
    y = jnp.tanh(_ref_convt_nhwc(x, params["w4"], 2) + params["b4"])
    return jnp.transpose(y, (0, 3, 1, 2))


if __name__ == "__main__":
    z_dim, hidden, image_channels, batch = 8, 16, 1, 2
    key = jax.random.PRNGKey(0)
    kp, kn = jax.random.split(key)
    params = init_params(kp, z_dim=z_dim, hidden=hidden,
                         image_channels=image_channels)
    noise = jax.random.normal(kn, (batch, z_dim), jnp.float32)

    # One-time restructuring (re-run only when params change).
    arrays, cfgs = prepare_generator(params, batch)

    out = jax.block_until_ready(generator_forward(noise, arrays, cfgs=cfgs))
    assert out.shape == (batch, image_channels, 28, 28), out.shape

    ref = jax.block_until_ready(_ref_forward(noise, params))
    # Tolerance covers bf16-operand MXU precision of the main GEMMs inside the
    # kernel vs. the HIGHEST-precision XLA reference.
    np.testing.assert_allclose(np.asarray(out), np.asarray(ref),
                               rtol=2e-2, atol=2e-2)
    print("KERNEL_OK")
</pallas_src>

<mosaic_0001>
module attributes {stable_mosaic.version = 11 : i64} {
  func.func @_generator_kernel(%arg0: memref<2x8xf32, #tpu.memory_space<vmem>>, %arg1: memref<8x768xbf16, #tpu.memory_space<vmem>>, %arg2: memref<256x1024xbf16, #tpu.memory_space<any>>, %arg3: memref<256x768xbf16, #tpu.memory_space<any>>, %arg4: memref<256x512xbf16, #tpu.memory_space<any>>, %arg5: memref<14x56x26xf32, #tpu.memory_space<vmem>>, %arg6: memref<3x256x64xbf16, #tpu.memory_space<vmem>>, %arg7: memref<3x64x256xbf16, #tpu.memory_space<vmem>>, %arg8: memref<8x128xf32, #tpu.memory_space<vmem>>, %arg9: memref<56x128xf32, #tpu.memory_space<vmem>>, %arg10: memref<256x1024xbf16, #tpu.memory_space<vmem>>, %arg11: memref<256x768xbf16, #tpu.memory_space<vmem>>, %arg12: memref<256x512xbf16, #tpu.memory_space<vmem>>, %arg13: memref<3x!tpu.dma_semaphore, #tpu.memory_space<semaphore_mem>>) attributes {dimension_semantics = [], scalar_prefetch = 0 : i64, scratch_operands = 4 : i64, tpu.core_type = #tpu.core_type<tc>} {
    %c0_i32 = arith.constant 0 : i32
    %0 = tpu.memref_slice %arg13[%c0_i32] : memref<3x!tpu.dma_semaphore, #tpu.memory_space<semaphore_mem>> -> memref<1x!tpu.dma_semaphore, #tpu.memory_space<semaphore_mem>>
    %1 = tpu.memref_squeeze %0 : memref<1x!tpu.dma_semaphore, #tpu.memory_space<semaphore_mem>> -> memref<!tpu.dma_semaphore, #tpu.memory_space<semaphore_mem>>
    tpu.enqueue_dma source(%arg2 : memref<256x1024xbf16, #tpu.memory_space<any>>) target(%arg10 : memref<256x1024xbf16, #tpu.memory_space<vmem>>) target_semaphore(%1 : memref<!tpu.dma_semaphore, #tpu.memory_space<semaphore_mem>>)
    %c1_i32 = arith.constant 1 : i32
    %2 = tpu.memref_slice %arg13[%c1_i32] : memref<3x!tpu.dma_semaphore, #tpu.memory_space<semaphore_mem>> -> memref<1x!tpu.dma_semaphore, #tpu.memory_space<semaphore_mem>>
    %3 = tpu.memref_squeeze %2 : memref<1x!tpu.dma_semaphore, #tpu.memory_space<semaphore_mem>> -> memref<!tpu.dma_semaphore, #tpu.memory_space<semaphore_mem>>
    tpu.enqueue_dma source(%arg3 : memref<256x768xbf16, #tpu.memory_space<any>>) target(%arg11 : memref<256x768xbf16, #tpu.memory_space<vmem>>) target_semaphore(%3 : memref<!tpu.dma_semaphore, #tpu.memory_space<semaphore_mem>>)
    %c2_i32 = arith.constant 2 : i32
    %4 = tpu.memref_slice %arg13[%c2_i32] : memref<3x!tpu.dma_semaphore, #tpu.memory_space<semaphore_mem>> -> memref<1x!tpu.dma_semaphore, #tpu.memory_space<semaphore_mem>>
    %5 = tpu.memref_squeeze %4 : memref<1x!tpu.dma_semaphore, #tpu.memory_space<semaphore_mem>> -> memref<!tpu.dma_semaphore, #tpu.memory_space<semaphore_mem>>
    tpu.enqueue_dma source(%arg4 : memref<256x512xbf16, #tpu.memory_space<any>>) target(%arg12 : memref<256x512xbf16, #tpu.memory_space<vmem>>) target_semaphore(%5 : memref<!tpu.dma_semaphore, #tpu.memory_space<semaphore_mem>>)
    %c0 = arith.constant 0 : index
    %c0_0 = arith.constant 0 : index
    %6 = vector.load %arg0[%c0, %c0_0] : memref<2x8xf32, #tpu.memory_space<vmem>>, vector<2x8xf32>
    %7 = arith.truncf %6 : vector<2x8xf32> to vector<2x8xbf16>
    %c0_1 = arith.constant 0 : index
    %c0_2 = arith.constant 0 : index
    %8 = vector.load %arg1[%c0_1, %c0_2] : memref<8x768xbf16, #tpu.memory_space<vmem>>, vector<8x768xbf16>
    %cst = arith.constant dense<0.000000e+00> : vector<2x768xf32>
    %9 = tpu.matmul %7, %8, %cst {dimension_numbers = #tpu.dot_dimension_numbers<[1], [0], [0], [1], [0, 0, 1, 1], [], []>} : vector<2x8xbf16>, vector<8x768xbf16>, vector<2x768xf32> -> vector<2x768xf32>
    %c0_3 = arith.constant 0 : index
    %c0_4 = arith.constant 0 : index
    %c0_5 = arith.constant 0 : index
    %10 = vector.load %arg5[%c0_3, %c0_4, %c0_5] : memref<14x56x26xf32, #tpu.memory_space<vmem>>, vector<1x6x2xf32>
    %11 = vector.shape_cast %10 : vector<1x6x2xf32> to vector<6x2xf32>
    %12 = vector.extract_strided_slice %9 {offsets = [0, 0], sizes = [2, 256], strides = [1, 1]} : vector<2x768xf32> to vector<2x256xf32>
    %cst_6 = arith.constant dense<0.000000e+00> : vector<6x256xf32>
    %13 = tpu.matmul %11, %12, %cst_6 {dimension_numbers = #tpu.dot_dimension_numbers<[1], [0], [0], [1], [0, 0, 1, 1], [], []>} : vector<6x2xf32>, vector<2x256xf32>, vector<6x256xf32> -> vector<6x256xf32>
    %c1 = arith.constant 1 : index
    %c0_7 = arith.constant 0 : index
    %c0_8 = arith.constant 0 : index
    %14 = vector.load %arg5[%c1, %c0_7, %c0_8] : memref<14x56x26xf32, #tpu.memory_space<vmem>>, vector<1x6x2xf32>
    %15 = vector.shape_cast %14 : vector<1x6x2xf32> to vector<6x2xf32>
    %16 = vector.extract_strided_slice %9 {offsets = [0, 256], sizes = [2, 256], strides = [1, 1]} : vector<2x768xf32> to vector<2x256xf32>
    %cst_9 = arith.constant dense<0.000000e+00> : vector<6x256xf32>
    %17 = tpu.matmul %15, %16, %cst_9 {dimension_numbers = #tpu.dot_dimension_numbers<[1], [0], [0], [1], [0, 0, 1, 1], [], []>} : vector<6x2xf32>, vector<2x256xf32>, vector<6x256xf32> -> vector<6x256xf32>
    %18 = arith.addf %13, %17 : vector<6x256xf32>
    %c2 = arith.constant 2 : index
    %c0_10 = arith.constant 0 : index
    %c0_11 = arith.constant 0 : index
    %19 = vector.load %arg5[%c2, %c0_10, %c0_11] : memref<14x56x26xf32, #tpu.memory_space<vmem>>, vector<1x6x2xf32>
    %20 = vector.shape_cast %19 : vector<1x6x2xf32> to vector<6x2xf32>
    %21 = vector.extract_strided_slice %9 {offsets = [0, 512], sizes = [2, 256], strides = [1, 1]} : vector<2x768xf32> to vector<2x256xf32>
    %cst_12 = arith.constant dense<0.000000e+00> : vector<6x256xf32>
    %22 = tpu.matmul %20, %21, %cst_12 {dimension_numbers = #tpu.dot_dimension_numbers<[1], [0], [0], [1], [0, 0, 1, 1], [], []>} : vector<6x2xf32>, vector<2x256xf32>, vector<6x256xf32> -> vector<6x256xf32>
    %23 = arith.addf %18, %22 : vector<6x256xf32>
    %c0_13 = arith.constant 0 : index
    %c0_14 = arith.constant 0 : index
    %c0_15 = arith.constant 0 : index
    %24 = vector.load %arg6[%c0_13, %c0_14, %c0_15] : memref<3x256x64xbf16, #tpu.memory_space<vmem>>, vector<1x256x64xbf16>
    %25 = vector.shape_cast %24 : vector<1x256x64xbf16> to vector<256x64xbf16>
    %26 = arith.extf %25 : vector<256x64xbf16> to vector<256x64xf32>
    %c0_16 = arith.constant 0 : index
    %c0_17 = arith.constant 0 : index
    %c0_18 = arith.constant 0 : index
    %27 = vector.load %arg7[%c0_16, %c0_17, %c0_18] : memref<3x64x256xbf16, #tpu.memory_space<vmem>>, vector<1x64x256xbf16>
    %28 = vector.shape_cast %27 : vector<1x64x256xbf16> to vector<64x256xbf16>
    %29 = arith.extf %28 : vector<64x256xbf16> to vector<64x256xf32>
    %c0_19 = arith.constant 0 : index
    %c0_20 = arith.constant 0 : index
    %30 = vector.load %arg8[%c0_19, %c0_20] : memref<8x128xf32, #tpu.memory_space<vmem>>, vector<1x64xf32>
    %c1_21 = arith.constant 1 : index
    %c0_22 = arith.constant 0 : index
    %31 = vector.load %arg8[%c1_21, %c0_22] : memref<8x128xf32, #tpu.memory_space<vmem>>, vector<1x64xf32>
    %cst_23 = arith.constant dense<0.000000e+00> : vector<256xf32>
    %32 = vector.multi_reduction <add>, %23, %cst_23 [0] : vector<6x256xf32> to vector<256xf32>
    %33 = vector.shape_cast %32 : vector<256xf32> to vector<1x256xf32>
    %34 = arith.mulf %23, %23 : vector<6x256xf32>
    %cst_24 = arith.constant dense<0.000000e+00> : vector<256xf32>
    %35 = vector.multi_reduction <add>, %34, %cst_24 [0] : vector<6x256xf32> to vector<256xf32>
    %36 = vector.shape_cast %35 : vector<256xf32> to vector<1x256xf32>
    %37 = tpu.concatenate %33, %36 in 0 : vector<1x256xf32>, vector<1x256xf32> -> vector<2x256xf32>
    %cst_25 = arith.constant dense<0.000000e+00> : vector<2x64xf32>
    %38 = tpu.matmul %37, %26, %cst_25 {dimension_numbers = #tpu.dot_dimension_numbers<[1], [0], [0], [1], [0, 0, 1, 1], [], []>} : vector<2x256xf32>, vector<256x64xf32>, vector<2x64xf32> -> vector<2x64xf32>
    %cst_26 = arith.constant 0.055555556 : f32
    %39 = vector.broadcast %cst_26 : f32 to vector<2x64xf32>
    %40 = arith.mulf %38, %39 : vector<2x64xf32>
    %41 = vector.extract_strided_slice %40 {offsets = [0, 0], sizes = [1, 64], strides = [1, 1]} : vector<2x64xf32> to vector<1x64xf32>
    %42 = vector.extract_strided_slice %40 {offsets = [1, 0], sizes = [1, 64], strides = [1, 1]} : vector<2x64xf32> to vector<1x64xf32>
    %43 = arith.mulf %41, %41 : vector<1x64xf32>
    %44 = arith.subf %42, %43 : vector<1x64xf32>
    %cst_27 = arith.constant 9.99999974E-6 : f32
    %45 = vector.broadcast %cst_27 : f32 to vector<1x64xf32>
    %46 = arith.addf %44, %45 : vector<1x64xf32>
    %47 = math.rsqrt %46 : vector<1x64xf32>
    %48 = arith.mulf %30, %47 : vector<1x64xf32>
    %49 = arith.mulf %41, %48 : vector<1x64xf32>
    %50 = arith.subf %31, %49 : vector<1x64xf32>
    %51 = tpu.concatenate %48, %50 in 0 : vector<1x64xf32>, vector<1x64xf32> -> vector<2x64xf32>
    %cst_28 = arith.constant dense<0.000000e+00> : vector<2x256xf32>
    %52 = tpu.matmul %51, %29, %cst_28 {dimension_numbers = #tpu.dot_dimension_numbers<[1], [0], [0], [1], [0, 0, 1, 1], [], []>} : vector<2x64xf32>, vector<64x256xf32>, vector<2x256xf32> -> vector<2x256xf32>
    %53 = vector.extract_strided_slice %52 {offsets = [0, 0], sizes = [1, 256], strides = [1, 1]} : vector<2x256xf32> to vector<1x256xf32>
    %54 = vector.broadcast %53 : vector<1x256xf32> to vector<6x256xf32>
    %55 = arith.mulf %23, %54 : vector<6x256xf32>
    %56 = vector.extract_strided_slice %52 {offsets = [1, 0], sizes = [1, 256], strides = [1, 1]} : vector<2x256xf32> to vector<1x256xf32>
    %57 = vector.broadcast %56 : vector<1x256xf32> to vector<6x256xf32>
    %58 = arith.addf %55, %57 : vector<6x256xf32>
    %cst_29 = arith.constant 0.000000e+00 : f32
    %59 = vector.broadcast %cst_29 : f32 to vector<6x256xf32>
    %60 = arith.maximumf %58, %59 : vector<6x256xf32>
    %c0_i32_30 = arith.constant 0 : i32
    %61 = tpu.memref_slice %arg13[%c0_i32_30] : memref<3x!tpu.dma_semaphore, #tpu.memory_space<semaphore_mem>> -> memref<1x!tpu.dma_semaphore, #tpu.memory_space<semaphore_mem>>
    %62 = tpu.memref_squeeze %61 : memref<1x!tpu.dma_semaphore, #tpu.memory_space<semaphore_mem>> -> memref<!tpu.dma_semaphore, #tpu.memory_space<semaphore_mem>>
    tpu.wait_dma2 semaphore(%62 : memref<!tpu.dma_semaphore, #tpu.memory_space<semaphore_mem>>) src(%arg2 : memref<256x1024xbf16, #tpu.memory_space<any>>) dst(%arg10 : memref<256x1024xbf16, #tpu.memory_space<vmem>>)
    %63 = arith.truncf %60 : vector<6x256xf32> to vector<6x256xbf16>
    %c0_31 = arith.constant 0 : index
    %c0_32 = arith.constant 0 : index
    %64 = vector.load %arg10[%c0_31, %c0_32] : memref<256x1024xbf16, #tpu.memory_space<vmem>>, vector<256x1024xbf16>
    %cst_33 = arith.constant dense<0.000000e+00> : vector<6x1024xf32>
    %65 = tpu.matmul %63, %64, %cst_33 {dimension_numbers = #tpu.dot_dimension_numbers<[1], [0], [0], [1], [0, 0, 1, 1], [], []>} : vector<6x256xbf16>, vector<256x1024xbf16>, vector<6x1024xf32> -> vector<6x1024xf32>
    %c3 = arith.constant 3 : index
    %c0_34 = arith.constant 0 : index
    %c0_35 = arith.constant 0 : index
    %66 = vector.load %arg5[%c3, %c0_34, %c0_35] : memref<14x56x26xf32, #tpu.memory_space<vmem>>, vector<1x12x6xf32>
    %67 = vector.shape_cast %66 : vector<1x12x6xf32> to vector<12x6xf32>
    %68 = vector.extract_strided_slice %65 {offsets = [0, 0], sizes = [6, 256], strides = [1, 1]} : vector<6x1024xf32> to vector<6x256xf32>
    %cst_36 = arith.constant dense<0.000000e+00> : vector<12x256xf32>
    %69 = tpu.matmul %67, %68, %cst_36 {dimension_numbers = #tpu.dot_dimension_numbers<[1], [0], [0], [1], [0, 0, 1, 1], [], []>} : vector<12x6xf32>, vector<6x256xf32>, vector<12x256xf32> -> vector<12x256xf32>
    %c4 = arith.constant 4 : index
    %c0_37 = arith.constant 0 : index
    %c0_38 = arith.constant 0 : index
    %70 = vector.load %arg5[%c4, %c0_37, %c0_38] : memref<14x56x26xf32, #tpu.memory_space<vmem>>, vector<1x12x6xf32>
    %71 = vector.shape_cast %70 : vector<1x12x6xf32> to vector<12x6xf32>
    %72 = vector.extract_strided_slice %65 {offsets = [0, 256], sizes = [6, 256], strides = [1, 1]} : vector<6x1024xf32> to vector<6x256xf32>
    %cst_39 = arith.constant dense<0.000000e+00> : vector<12x256xf32>
    %73 = tpu.matmul %71, %72, %cst_39 {dimension_numbers = #tpu.dot_dimension_numbers<[1], [0], [0], [1], [0, 0, 1, 1], [], []>} : vector<12x6xf32>, vector<6x256xf32>, vector<12x256xf32> -> vector<12x256xf32>
    %74 = arith.addf %69, %73 : vector<12x256xf32>
    %c5 = arith.constant 5 : index
    %c0_40 = arith.constant 0 : index
    %c0_41 = arith.constant 0 : index
    %75 = vector.load %arg5[%c5, %c0_40, %c0_41] : memref<14x56x26xf32, #tpu.memory_space<vmem>>, vector<1x12x6xf32>
    %76 = vector.shape_cast %75 : vector<1x12x6xf32> to vector<12x6xf32>
    %77 = vector.extract_strided_slice %65 {offsets = [0, 512], sizes = [6, 256], strides = [1, 1]} : vector<6x1024xf32> to vector<6x256xf32>
    %cst_42 = arith.constant dense<0.000000e+00> : vector<12x256xf32>
    %78 = tpu.matmul %76, %77, %cst_42 {dimension_numbers = #tpu.dot_dimension_numbers<[1], [0], [0], [1], [0, 0, 1, 1], [], []>} : vector<12x6xf32>, vector<6x256xf32>, vector<12x256xf32> -> vector<12x256xf32>
    %79 = arith.addf %74, %78 : vector<12x256xf32>
    %c6 = arith.constant 6 : index
    %c0_43 = arith.constant 0 : index
    %c0_44 = arith.constant 0 : index
    %80 = vector.load %arg5[%c6, %c0_43, %c0_44] : memref<14x56x26xf32, #tpu.memory_space<vmem>>, vector<1x12x6xf32>
    %81 = vector.shape_cast %80 : vector<1x12x6xf32> to vector<12x6xf32>
    %82 = vector.extract_strided_slice %65 {offsets = [0, 768], sizes = [6, 256], strides = [1, 1]} : vector<6x1024xf32> to vector<6x256xf32>
    %cst_45 = arith.constant dense<0.000000e+00> : vector<12x256xf32>
    %83 = tpu.matmul %81, %82, %cst_45 {dimension_numbers = #tpu.dot_dimension_numbers<[1], [0], [0], [1], [0, 0, 1, 1], [], []>} : vector<12x6xf32>, vector<6x256xf32>, vector<12x256xf32> -> vector<12x256xf32>
    %84 = arith.addf %79, %83 : vector<12x256xf32>
    %c1_46 = arith.constant 1 : index
    %c0_47 = arith.constant 0 : index
    %c0_48 = arith.constant 0 : index
    %85 = vector.load %arg6[%c1_46, %c0_47, %c0_48] : memref<3x256x64xbf16, #tpu.memory_space<vmem>>, vector<1x256x32xbf16>
    %86 = vector.shape_cast %85 : vector<1x256x32xbf16> to vector<256x32xbf16>
    %87 = arith.extf %86 : vector<256x32xbf16> to vector<256x32xf32>
    %c1_49 = arith.constant 1 : index
    %c0_50 = arith.constant 0 : index
    %c0_51 = arith.constant 0 : index
    %88 = vector.load %arg7[%c1_49, %c0_50, %c0_51] : memref<3x64x256xbf16, #tpu.memory_space<vmem>>, vector<1x32x256xbf16>
    %89 = vector.shape_cast %88 : vector<1x32x256xbf16> to vector<32x256xbf16>
    %90 = arith.extf %89 : vector<32x256xbf16> to vector<32x256xf32>
    %c2_52 = arith.constant 2 : index
    %c0_53 = arith.constant 0 : index
    %91 = vector.load %arg8[%c2_52, %c0_53] : memref<8x128xf32, #tpu.memory_space<vmem>>, vector<1x32xf32>
    %c3_54 = arith.constant 3 : index
    %c0_55 = arith.constant 0 : index
    %92 = vector.load %arg8[%c3_54, %c0_55] : memref<8x128xf32, #tpu.memory_space<vmem>>, vector<1x32xf32>
    %cst_56 = arith.constant dense<0.000000e+00> : vector<256xf32>
    %93 = vector.multi_reduction <add>, %84, %cst_56 [0] : vector<12x256xf32> to vector<256xf32>
    %94 = vector.shape_cast %93 : vector<256xf32> to vector<1x256xf32>
    %95 = arith.mulf %84, %84 : vector<12x256xf32>
    %cst_57 = arith.constant dense<0.000000e+00> : vector<256xf32>
    %96 = vector.multi_reduction <add>, %95, %cst_57 [0] : vector<12x256xf32> to vector<256xf32>
    %97 = vector.shape_cast %96 : vector<256xf32> to vector<1x256xf32>
    %98 = tpu.concatenate %94, %97 in 0 : vector<1x256xf32>, vector<1x256xf32> -> vector<2x256xf32>
    %cst_58 = arith.constant dense<0.000000e+00> : vector<2x32xf32>
    %99 = tpu.matmul %98, %87, %cst_58 {dimension_numbers = #tpu.dot_dimension_numbers<[1], [0], [0], [1], [0, 0, 1, 1], [], []>} : vector<2x256xf32>, vector<256x32xf32>, vector<2x32xf32> -> vector<2x32xf32>
    %cst_59 = arith.constant 0.013888889 : f32
    %100 = vector.broadcast %cst_59 : f32 to vector<2x32xf32>
    %101 = arith.mulf %99, %100 : vector<2x32xf32>
    %102 = vector.extract_strided_slice %101 {offsets = [0, 0], sizes = [1, 32], strides = [1, 1]} : vector<2x32xf32> to vector<1x32xf32>
    %103 = vector.extract_strided_slice %101 {offsets = [1, 0], sizes = [1, 32], strides = [1, 1]} : vector<2x32xf32> to vector<1x32xf32>
    %104 = arith.mulf %102, %102 : vector<1x32xf32>
    %105 = arith.subf %103, %104 : vector<1x32xf32>
    %cst_60 = arith.constant 9.99999974E-6 : f32
    %106 = vector.broadcast %cst_60 : f32 to vector<1x32xf32>
    %107 = arith.addf %105, %106 : vector<1x32xf32>
    %108 = math.rsqrt %107 : vector<1x32xf32>
    %109 = arith.mulf %91, %108 : vector<1x32xf32>
    %110 = arith.mulf %102, %109 : vector<1x32xf32>
    %111 = arith.subf %92, %110 : vector<1x32xf32>
    %112 = tpu.concatenate %109, %111 in 0 : vector<1x32xf32>, vector<1x32xf32> -> vector<2x32xf32>
    %cst_61 = arith.constant dense<0.000000e+00> : vector<2x256xf32>
    %113 = tpu.matmul %112, %90, %cst_61 {dimension_numbers = #tpu.dot_dimension_numbers<[1], [0], [0], [1], [0, 0, 1, 1], [], []>} : vector<2x32xf32>, vector<32x256xf32>, vector<2x256xf32> -> vector<2x256xf32>
    %114 = vector.extract_strided_slice %113 {offsets = [0, 0], sizes = [1, 256], strides = [1, 1]} : vector<2x256xf32> to vector<1x256xf32>
    %115 = vector.broadcast %114 : vector<1x256xf32> to vector<12x256xf32>
    %116 = arith.mulf %84, %115 : vector<12x256xf32>
    %117 = vector.extract_strided_slice %113 {offsets = [1, 0], sizes = [1, 256], strides = [1, 1]} : vector<2x256xf32> to vector<1x256xf32>
    %118 = vector.broadcast %117 : vector<1x256xf32> to vector<12x256xf32>
    %119 = arith.addf %116, %118 : vector<12x256xf32>
    %cst_62 = arith.constant 0.000000e+00 : f32
    %120 = vector.broadcast %cst_62 : f32 to vector<12x256xf32>
    %121 = arith.maximumf %119, %120 : vector<12x256xf32>
    %c1_i32_63 = arith.constant 1 : i32
    %122 = tpu.memref_slice %arg13[%c1_i32_63] : memref<3x!tpu.dma_semaphore, #tpu.memory_space<semaphore_mem>> -> memref<1x!tpu.dma_semaphore, #tpu.memory_space<semaphore_mem>>
    %123 = tpu.memref_squeeze %122 : memref<1x!tpu.dma_semaphore, #tpu.memory_space<semaphore_mem>> -> memref<!tpu.dma_semaphore, #tpu.memory_space<semaphore_mem>>
    tpu.wait_dma2 semaphore(%123 : memref<!tpu.dma_semaphore, #tpu.memory_space<semaphore_mem>>) src(%arg3 : memref<256x768xbf16, #tpu.memory_space<any>>) dst(%arg11 : memref<256x768xbf16, #tpu.memory_space<vmem>>)
    %124 = arith.truncf %121 : vector<12x256xf32> to vector<12x256xbf16>
    %c0_64 = arith.constant 0 : index
    %c0_65 = arith.constant 0 : index
    %125 = vector.load %arg11[%c0_64, %c0_65] : memref<256x768xbf16, #tpu.memory_space<vmem>>, vector<256x768xbf16>
    %cst_66 = arith.constant dense<0.000000e+00> : vector<12x768xf32>
    %126 = tpu.matmul %124, %125, %cst_66 {dimension_numbers = #tpu.dot_dimension_numbers<[1], [0], [0], [1], [0, 0, 1, 1], [], []>} : vector<12x256xbf16>, vector<256x768xbf16>, vector<12x768xf32> -> vector<12x768xf32>
    %c7 = arith.constant 7 : index
    %c0_67 = arith.constant 0 : index
    %c0_68 = arith.constant 0 : index
    %127 = vector.load %arg5[%c7, %c0_67, %c0_68] : memref<14x56x26xf32, #tpu.memory_space<vmem>>, vector<1x26x12xf32>
    %128 = vector.shape_cast %127 : vector<1x26x12xf32> to vector<26x12xf32>
    %129 = vector.extract_strided_slice %126 {offsets = [0, 0], sizes = [12, 256], strides = [1, 1]} : vector<12x768xf32> to vector<12x256xf32>
    %cst_69 = arith.constant dense<0.000000e+00> : vector<26x256xf32>
    %130 = tpu.matmul %128, %129, %cst_69 {dimension_numbers = #tpu.dot_dimension_numbers<[1], [0], [0], [1], [0, 0, 1, 1], [], []>} : vector<26x12xf32>, vector<12x256xf32>, vector<26x256xf32> -> vector<26x256xf32>
    %c8 = arith.constant 8 : index
    %c0_70 = arith.constant 0 : index
    %c0_71 = arith.constant 0 : index
    %131 = vector.load %arg5[%c8, %c0_70, %c0_71] : memref<14x56x26xf32, #tpu.memory_space<vmem>>, vector<1x26x12xf32>
    %132 = vector.shape_cast %131 : vector<1x26x12xf32> to vector<26x12xf32>
    %133 = vector.extract_strided_slice %126 {offsets = [0, 256], sizes = [12, 256], strides = [1, 1]} : vector<12x768xf32> to vector<12x256xf32>
    %cst_72 = arith.constant dense<0.000000e+00> : vector<26x256xf32>
    %134 = tpu.matmul %132, %133, %cst_72 {dimension_numbers = #tpu.dot_dimension_numbers<[1], [0], [0], [1], [0, 0, 1, 1], [], []>} : vector<26x12xf32>, vector<12x256xf32>, vector<26x256xf32> -> vector<26x256xf32>
    %135 = arith.addf %130, %134 : vector<26x256xf32>
    %c9 = arith.constant 9 : index
    %c0_73 = arith.constant 0 : index
    %c0_74 = arith.constant 0 : index
    %136 = vector.load %arg5[%c9, %c0_73, %c0_74] : memref<14x56x26xf32, #tpu.memory_space<vmem>>, vector<1x26x12xf32>
    %137 = vector.shape_cast %136 : vector<1x26x12xf32> to vector<26x12xf32>
    %138 = vector.extract_strided_slice %126 {offsets = [0, 512], sizes = [12, 256], strides = [1, 1]} : vector<12x768xf32> to vector<12x256xf32>
    %cst_75 = arith.constant dense<0.000000e+00> : vector<26x256xf32>
    %139 = tpu.matmul %137, %138, %cst_75 {dimension_numbers = #tpu.dot_dimension_numbers<[1], [0], [0], [1], [0, 0, 1, 1], [], []>} : vector<26x12xf32>, vector<12x256xf32>, vector<26x256xf32> -> vector<26x256xf32>
    %140 = arith.addf %135, %139 : vector<26x256xf32>
    %c2_76 = arith.constant 2 : index
    %c0_77 = arith.constant 0 : index
    %c0_78 = arith.constant 0 : index
    %141 = vector.load %arg6[%c2_76, %c0_77, %c0_78] : memref<3x256x64xbf16, #tpu.memory_space<vmem>>, vector<1x256x16xbf16>
    %142 = vector.shape_cast %141 : vector<1x256x16xbf16> to vector<256x16xbf16>
    %143 = arith.extf %142 : vector<256x16xbf16> to vector<256x16xf32>
    %c2_79 = arith.constant 2 : index
    %c0_80 = arith.constant 0 : index
    %c0_81 = arith.constant 0 : index
    %144 = vector.load %arg7[%c2_79, %c0_80, %c0_81] : memref<3x64x256xbf16, #tpu.memory_space<vmem>>, vector<1x16x256xbf16>
    %145 = vector.shape_cast %144 : vector<1x16x256xbf16> to vector<16x256xbf16>
    %146 = arith.extf %145 : vector<16x256xbf16> to vector<16x256xf32>
    %c4_82 = arith.constant 4 : index
    %c0_83 = arith.constant 0 : index
    %147 = vector.load %arg8[%c4_82, %c0_83] : memref<8x128xf32, #tpu.memory_space<vmem>>, vector<1x16xf32>
    %c5_84 = arith.constant 5 : index
    %c0_85 = arith.constant 0 : index
    %148 = vector.load %arg8[%c5_84, %c0_85] : memref<8x128xf32, #tpu.memory_space<vmem>>, vector<1x16xf32>
    %cst_86 = arith.constant dense<0.000000e+00> : vector<256xf32>
    %149 = vector.multi_reduction <add>, %140, %cst_86 [0] : vector<26x256xf32> to vector<256xf32>
    %150 = vector.shape_cast %149 : vector<256xf32> to vector<1x256xf32>
    %151 = arith.mulf %140, %140 : vector<26x256xf32>
    %cst_87 = arith.constant dense<0.000000e+00> : vector<256xf32>
    %152 = vector.multi_reduction <add>, %151, %cst_87 [0] : vector<26x256xf32> to vector<256xf32>
    %153 = vector.shape_cast %152 : vector<256xf32> to vector<1x256xf32>
    %154 = tpu.concatenate %150, %153 in 0 : vector<1x256xf32>, vector<1x256xf32> -> vector<2x256xf32>
    %cst_88 = arith.constant dense<0.000000e+00> : vector<2x16xf32>
    %155 = tpu.matmul %154, %143, %cst_88 {dimension_numbers = #tpu.dot_dimension_numbers<[1], [0], [0], [1], [0, 0, 1, 1], [], []>} : vector<2x256xf32>, vector<256x16xf32>, vector<2x16xf32> -> vector<2x16xf32>
    %cst_89 = arith.constant 2.958580e-03 : f32
    %156 = vector.broadcast %cst_89 : f32 to vector<2x16xf32>
    %157 = arith.mulf %155, %156 : vector<2x16xf32>
    %158 = vector.extract_strided_slice %157 {offsets = [0, 0], sizes = [1, 16], strides = [1, 1]} : vector<2x16xf32> to vector<1x16xf32>
    %159 = vector.extract_strided_slice %157 {offsets = [1, 0], sizes = [1, 16], strides = [1, 1]} : vector<2x16xf32> to vector<1x16xf32>
    %160 = arith.mulf %158, %158 : vector<1x16xf32>
    %161 = arith.subf %159, %160 : vector<1x16xf32>
    %cst_90 = arith.constant 9.99999974E-6 : f32
    %162 = vector.broadcast %cst_90 : f32 to vector<1x16xf32>
    %163 = arith.addf %161, %162 : vector<1x16xf32>
    %164 = math.rsqrt %163 : vector<1x16xf32>
    %165 = arith.mulf %147, %164 : vector<1x16xf32>
    %166 = arith.mulf %158, %165 : vector<1x16xf32>
    %167 = arith.subf %148, %166 : vector<1x16xf32>
    %168 = tpu.concatenate %165, %167 in 0 : vector<1x16xf32>, vector<1x16xf32> -> vector<2x16xf32>
    %cst_91 = arith.constant dense<0.000000e+00> : vector<2x256xf32>
    %169 = tpu.matmul %168, %146, %cst_91 {dimension_numbers = #tpu.dot_dimension_numbers<[1], [0], [0], [1], [0, 0, 1, 1], [], []>} : vector<2x16xf32>, vector<16x256xf32>, vector<2x256xf32> -> vector<2x256xf32>
    %170 = vector.extract_strided_slice %169 {offsets = [0, 0], sizes = [1, 256], strides = [1, 1]} : vector<2x256xf32> to vector<1x256xf32>
    %171 = vector.broadcast %170 : vector<1x256xf32> to vector<26x256xf32>
    %172 = arith.mulf %140, %171 : vector<26x256xf32>
    %173 = vector.extract_strided_slice %169 {offsets = [1, 0], sizes = [1, 256], strides = [1, 1]} : vector<2x256xf32> to vector<1x256xf32>
    %174 = vector.broadcast %173 : vector<1x256xf32> to vector<26x256xf32>
    %175 = arith.addf %172, %174 : vector<26x256xf32>
    %cst_92 = arith.constant 0.000000e+00 : f32
    %176 = vector.broadcast %cst_92 : f32 to vector<26x256xf32>
    %177 = arith.maximumf %175, %176 : vector<26x256xf32>
    %c2_i32_93 = arith.constant 2 : i32
    %178 = tpu.memref_slice %arg13[%c2_i32_93] : memref<3x!tpu.dma_semaphore, #tpu.memory_space<semaphore_mem>> -> memref<1x!tpu.dma_semaphore, #tpu.memory_space<semaphore_mem>>
    %179 = tpu.memref_squeeze %178 : memref<1x!tpu.dma_semaphore, #tpu.memory_space<semaphore_mem>> -> memref<!tpu.dma_semaphore, #tpu.memory_space<semaphore_mem>>
    tpu.wait_dma2 semaphore(%179 : memref<!tpu.dma_semaphore, #tpu.memory_space<semaphore_mem>>) src(%arg4 : memref<256x512xbf16, #tpu.memory_space<any>>) dst(%arg12 : memref<256x512xbf16, #tpu.memory_space<vmem>>)
    %180 = arith.truncf %177 : vector<26x256xf32> to vector<26x256xbf16>
    %c0_94 = arith.constant 0 : index
    %c0_95 = arith.constant 0 : index
    %181 = vector.load %arg12[%c0_94, %c0_95] : memref<256x512xbf16, #tpu.memory_space<vmem>>, vector<256x512xbf16>
    %cst_96 = arith.constant dense<0.000000e+00> : vector<26x512xf32>
    %182 = tpu.matmul %180, %181, %cst_96 {dimension_numbers = #tpu.dot_dimension_numbers<[1], [0], [0], [1], [0, 0, 1, 1], [], []>} : vector<26x256xbf16>, vector<256x512xbf16>, vector<26x512xf32> -> vector<26x512xf32>
    %c10 = arith.constant 10 : index
    %c0_97 = arith.constant 0 : index
    %c0_98 = arith.constant 0 : index
    %183 = vector.load %arg5[%c10, %c0_97, %c0_98] : memref<14x56x26xf32, #tpu.memory_space<vmem>>, vector<1x56x26xf32>
    %184 = vector.shape_cast %183 : vector<1x56x26xf32> to vector<56x26xf32>
    %185 = vector.extract_strided_slice %182 {offsets = [0, 0], sizes = [26, 128], strides = [1, 1]} : vector<26x512xf32> to vector<26x128xf32>
    %cst_99 = arith.constant dense<0.000000e+00> : vector<56x128xf32>
    %186 = tpu.matmul %184, %185, %cst_99 {dimension_numbers = #tpu.dot_dimension_numbers<[1], [0], [0], [1], [0, 0, 1, 1], [], []>} : vector<56x26xf32>, vector<26x128xf32>, vector<56x128xf32> -> vector<56x128xf32>
    %c11 = arith.constant 11 : index
    %c0_100 = arith.constant 0 : index
    %c0_101 = arith.constant 0 : index
    %187 = vector.load %arg5[%c11, %c0_100, %c0_101] : memref<14x56x26xf32, #tpu.memory_space<vmem>>, vector<1x56x26xf32>
    %188 = vector.shape_cast %187 : vector<1x56x26xf32> to vector<56x26xf32>
    %189 = vector.extract_strided_slice %182 {offsets = [0, 128], sizes = [26, 128], strides = [1, 1]} : vector<26x512xf32> to vector<26x128xf32>
    %cst_102 = arith.constant dense<0.000000e+00> : vector<56x128xf32>
    %190 = tpu.matmul %188, %189, %cst_102 {dimension_numbers = #tpu.dot_dimension_numbers<[1], [0], [0], [1], [0, 0, 1, 1], [], []>} : vector<56x26xf32>, vector<26x128xf32>, vector<56x128xf32> -> vector<56x128xf32>
    %191 = arith.addf %186, %190 : vector<56x128xf32>
    %c12 = arith.constant 12 : index
    %c0_103 = arith.constant 0 : index
    %c0_104 = arith.constant 0 : index
    %192 = vector.load %arg5[%c12, %c0_103, %c0_104] : memref<14x56x26xf32, #tpu.memory_space<vmem>>, vector<1x56x26xf32>
    %193 = vector.shape_cast %192 : vector<1x56x26xf32> to vector<56x26xf32>
    %194 = vector.extract_strided_slice %182 {offsets = [0, 256], sizes = [26, 128], strides = [1, 1]} : vector<26x512xf32> to vector<26x128xf32>
    %cst_105 = arith.constant dense<0.000000e+00> : vector<56x128xf32>
    %195 = tpu.matmul %193, %194, %cst_105 {dimension_numbers = #tpu.dot_dimension_numbers<[1], [0], [0], [1], [0, 0, 1, 1], [], []>} : vector<56x26xf32>, vector<26x128xf32>, vector<56x128xf32> -> vector<56x128xf32>
    %196 = arith.addf %191, %195 : vector<56x128xf32>
    %c13 = arith.constant 13 : index
    %c0_106 = arith.constant 0 : index
    %c0_107 = arith.constant 0 : index
    %197 = vector.load %arg5[%c13, %c0_106, %c0_107] : memref<14x56x26xf32, #tpu.memory_space<vmem>>, vector<1x56x26xf32>
    %198 = vector.shape_cast %197 : vector<1x56x26xf32> to vector<56x26xf32>
    %199 = vector.extract_strided_slice %182 {offsets = [0, 384], sizes = [26, 128], strides = [1, 1]} : vector<26x512xf32> to vector<26x128xf32>
    %cst_108 = arith.constant dense<0.000000e+00> : vector<56x128xf32>
    %200 = tpu.matmul %198, %199, %cst_108 {dimension_numbers = #tpu.dot_dimension_numbers<[1], [0], [0], [1], [0, 0, 1, 1], [], []>} : vector<56x26xf32>, vector<26x128xf32>, vector<56x128xf32> -> vector<56x128xf32>
    %201 = arith.addf %196, %200 : vector<56x128xf32>
    %c6_109 = arith.constant 6 : index
    %c0_110 = arith.constant 0 : index
    %202 = vector.load %arg8[%c6_109, %c0_110] : memref<8x128xf32, #tpu.memory_space<vmem>>, vector<1x128xf32>
    %203 = vector.broadcast %202 : vector<1x128xf32> to vector<56x128xf32>
    %204 = arith.addf %201, %203 : vector<56x128xf32>
    %205 = math.tanh %204 : vector<56x128xf32>
    %c0_111 = arith.constant 0 : index
    %c0_112 = arith.constant 0 : index
    %206 = vector.load %arg9[%c0_111, %c0_112] : memref<56x128xf32, #tpu.memory_space<vmem>>, vector<56x128xf32>
    tpu.vector_store %arg9[%c0_111, %c0_112], %205 {strides = array<i32>} : memref<56x128xf32, #tpu.memory_space<vmem>>, vector<56x128xf32>,
    return
  }
}

</mosaic_0001>

<llo_original>
// kernel: generator_forward.1
$region0: #{generator_forward.1}
  #allocation0 [shape = 'u32[]', space=smem, size = 0x4, offset = 0x4, fixed_abs, tag = 'smem constant byte address 0x4 - core index']
  #allocation1 [shape = 'u32[144,128]{1,0:T(1,128)}', space=vmem, size = 0x12000, scoped, tag = 'internal scratch']
  #allocation2 [shape = 'bf16[256,1024]{1,0:T(8,128)(2,1)}', space=vmem, size = 0x80000, scoped, tag = 'scratch operand']
  #allocation3 [shape = 'bf16[256,768]{1,0:T(8,128)(2,1)}', space=vmem, size = 0x60000, scoped, tag = 'scratch operand']
  #allocation4 [shape = 'bf16[256,512]{1,0:T(8,128)(2,1)}', space=vmem, size = 0x40000, scoped, tag = 'scratch operand']
  #allocation5 [shape = 's32[3]{0}', space=sflag, size = 0xc, scoped, tag = 'scratch operand']
  #allocation8 [shape = 's32[]', space=sflag, size = 0x4, offset = 0, fixed_abs, tag = 'sflag constant byte address 0x0 - dummy sync flag']
  #allocation9 [shape = 's32[]', space=sflag, size = 0x4, offset = 0, fixed_abs, tag = 'sflag constant byte address 0x0 - dummy sync flag']
  #allocation10 [shape = 's32[]', space=sflag, size = 0x4, offset = 0, fixed_abs, tag = 'sflag constant byte address 0x0 - dummy sync flag']
  #allocation11 [shape = 'u32[]', space=smem, size = 0x4, offset = 0x44, fixed_abs, tag = 'smem constant byte address 0x44 - assertion arg 0']
  #allocation12 [shape = 'u32[]', space=smem, size = 0x4, offset = 0x48, fixed_abs, tag = 'smem constant byte address 0x48 - assertion arg 1']
  #allocation13 [shape = 's32[]', space=sflag, size = 0x4, offset = 0, fixed_abs, tag = 'sflag constant byte address 0x0 - dummy sync flag']
  %s0 = inlined_call_operand.vmem [shape: f32[2,8], index: 0, kind: input, shape index: {}]
  %s1 = inlined_call_operand.vmem [shape: bf16[8,768], index: 1, kind: input, shape index: {}]
  %s2 = inlined_call_operand.vmem [shape: bf16[256,1024], index: 2, kind: input, shape index: {}]
  %s3 = inlined_call_operand.hbm [shape: bf16[256,768], index: 3, kind: input, shape index: {}]
  %s4 = inlined_call_operand.vmem [shape: bf16[256,512], index: 4, kind: input, shape index: {}]
  %s5 = inlined_call_operand.vmem [shape: f32[14,56,26], index: 5, kind: input, shape index: {}]
  %s6 = inlined_call_operand.vmem [shape: bf16[3,256,64], index: 6, kind: input, shape index: {}]
  %s7 = inlined_call_operand.vmem [shape: bf16[3,64,256], index: 7, kind: input, shape index: {}]
  %s8 = inlined_call_operand.vmem [shape: f32[8,128], index: 8, kind: input, shape index: {}]
  %s9 = inlined_call_operand.hbm [shape: f32[56,128], index: 9, kind: output, shape index: {}]
  %s10 = sld [smem:[#allocation0]]
  $region106: #{generator_forward.1} parent=0
    _
  %s12 = ssub.s32 1, %s10
  %s13 = scalar_select 0, %s12, %s10
  $region1: #{generator_forward.1} parent=0
    #allocation6 [shape = 'u8[28672]{0}', space=vmem, size = 0x7000, scoped, tag = 'output window, operand 0, single buffered']
    #allocation7 [shape = 's32[1]{0}', space=sflag, size = 0x4, scoped, tag = 'scoped memory for generator_forward.1']
    %14 = vsyncpa [#allocation7], 0
    // Predicated region
    $region2: #{generator_forward.1} parent=1 // pred_check
      _
    $region3: #{generator_forward.1} parent=1 // pred_check_branch
      %16 = sbr.rel (0) target = $region5
    $region4: #{generator_forward.1} parent=1 // pred_region
      _
    $region5: #{generator_forward.1} parent=1 // pred_fallthru
      _
    // Predicated region
    $region6: #{generator_forward.1} parent=1 // pred_check
      _
    $region7: #{generator_forward.1} parent=1 // pred_check_branch
      %18 = sbr.rel (0) target = $region9
    $region8: #{generator_forward.1} parent=1 // pred_region
      _
    $region9: #{generator_forward.1} parent=1 // pred_fallthru
      _
    // Predicated region
    $region10: #{generator_forward.1} parent=1 // pred_check
      _
    $region11: #{generator_forward.1} parent=1 // pred_check_branch
      %20 = sbr.rel (0) target = $region13
    $region12: #{generator_forward.1} parent=1 // pred_region
      _
    $region13: #{generator_forward.1} parent=1 // pred_fallthru
      _
    // Predicated region
    $region14: #{generator_forward.1} parent=1 // pred_check
      _
    $region15: #{generator_forward.1} parent=1 // pred_check_branch
      %22 = sbr.rel (0) target = $region17
    $region16: #{generator_forward.1} parent=1 // pred_region
      _
    $region17: #{generator_forward.1} parent=1 // pred_fallthru
      _
    // Predicated region
    $region18: #{generator_forward.1} parent=1 // pred_check
      _
    $region19: #{generator_forward.1} parent=1 // pred_check_branch
      %24 = sbr.rel (0) target = $region21
    $region20: #{generator_forward.1} parent=1 // pred_region
      _
    $region21: #{generator_forward.1} parent=1 // pred_fallthru
      _
    // Predicated region
    $region22: #{generator_forward.1} parent=1 // pred_check
      _
    $region23: #{generator_forward.1} parent=1 // pred_check_branch
      %26 = sbr.rel (0) target = $region25
    $region24: #{generator_forward.1} parent=1 // pred_region
      _
    $region25: #{generator_forward.1} parent=1 // pred_fallthru
      _
    %p29 = scmp.lt.u32.totalorder 1024, 8
    %p30 = pneg %p29
    // Predicated region
    $region26: #{generator_forward.1} parent=1 // pred_check
      _
    $region27: #{generator_forward.1} parent=1 // pred_check_branch
      %32 = sbr.rel (%p29) target = $region29
    $region28: #{generator_forward.1} parent=1 // pred_region
      %s48 = sand.u32 1024, 7
      %p49 = scmp.eq.s32.totalorder %s48, 0
      // Predicated region
      $region41: #{generator_forward.1} parent=28 // pred_check
        %p50 = pneg %p49
      $region42: #{generator_forward.1} parent=28 // pred_check_branch
        %52 = sbr.rel (%p50) target = $region44
      $region43: #{generator_forward.1} parent=28 // pred_region
        loop: start=0, step=1, limit=1
        $region45: #{generator_forward.1} parent=43 // loop_pre_header
          _
        $region46: #{generator_forward.1} parent=43 // loop_header
          %s54 = sphi 0, %s58
          %p55 = scmp.ge.s32.totalorder %s54, 1
          %s59 = sphi %s2, %s2
          %s60 = sphi [#allocation2], [#allocation2]
        $region47: #{generator_forward.1} parent=43 // loop_header_branch
          %57 = sbr.rel (%p55) target = $region51
        $region48: #{generator_forward.1} parent=43 // loop_body
          %v61 = vld [vmem:[%s59] sm:$0xff]
          %62 = vst [vmem:[%s60] sm:$0xff] %v61
          %v63 = vld [vmem:[%s59 + $0x8] sm:$0xff]
          %64 = vst [vmem:[%s60 + $0x8] sm:$0xff] %v63
          %v65 = vld [vmem:[%s59 + $0x10] sm:$0xff]
          %66 = vst [vmem:[%s60 + $0x10] sm:$0xff] %v65
          %v67 = vld [vmem:[%s59 + $0x18] sm:$0xff]
          %68 = vst [vmem:[%s60 + $0x18] sm:$0xff] %v67
          %v69 = vld [vmem:[%s59 + $0x20] sm:$0xff]
          %70 = vst [vmem:[%s60 + $0x20] sm:$0xff] %v69
          %v71 = vld [vmem:[%s59 + $0x28] sm:$0xff]
          %72 = vst [vmem:[%s60 + $0x28] sm:$0xff] %v71
          %v73 = vld [vmem:[%s59 + $0x30] sm:$0xff]
          %74 = vst [vmem:[%s60 + $0x30] sm:$0xff] %v73
          %v75 = vld [vmem:[%s59 + $0x38] sm:$0xff]
          %76 = vst [vmem:[%s60 + $0x38] sm:$0xff] %v75
          %v77 = vld [vmem:[%s59 + $0x40] sm:$0xff]
          %78 = vst [vmem:[%s60 + $0x40] sm:$0xff] %v77
          %v79 = vld [vmem:[%s59 + $0x48] sm:$0xff]
          %80 = vst [vmem:[%s60 + $0x48] sm:$0xff] %v79
          %v81 = vld [vmem:[%s59 + $0x50] sm:$0xff]
          %82 = vst [vmem:[%s60 + $0x50] sm:$0xff] %v81
          %v83 = vld [vmem:[%s59 + $0x58] sm:$0xff]
          %84 = vst [vmem:[%s60 + $0x58] sm:$0xff] %v83
          %v85 = vld [vmem:[%s59 + $0x60] sm:$0xff]
          %86 = vst [vmem:[%s60 + $0x60] sm:$0xff] %v85
          %v87 = vld [vmem:[%s59 + $0x68] sm:$0xff]
          %88 = vst [vmem:[%s60 + $0x68] sm:$0xff] %v87
          %v89 = vld [vmem:[%s59 + $0x70] sm:$0xff]
          %90 = vst [vmem:[%s60 + $0x70] sm:$0xff] %v89
          %v91 = vld [vmem:[%s59 + $0x78] sm:$0xff]
          %92 = vst [vmem:[%s60 + $0x78] sm:$0xff] %v91
          %v93 = vld [vmem:[%s59 + $0x80] sm:$0xff]
          %94 = vst [vmem:[%s60 + $0x80] sm:$0xff] %v93
          %v95 = vld [vmem:[%s59 + $0x88] sm:$0xff]
          %96 = vst [vmem:[%s60 + $0x88] sm:$0xff] %v95
          %v97 = vld [vmem:[%s59 + $0x90] sm:$0xff]
          %98 = vst [vmem:[%s60 + $0x90] sm:$0xff] %v97
          %v99 = vld [vmem:[%s59 + $0x98] sm:$0xff]
          %100 = vst [vmem:[%s60 + $0x98] sm:$0xff] %v99
          %v101 = vld [vmem:[%s59 + $0xa0] sm:$0xff]
          %102 = vst [vmem:[%s60 + $0xa0] sm:$0xff] %v101
          %v103 = vld [vmem:[%s59 + $0xa8] sm:$0xff]
          %104 = vst [vmem:[%s60 + $0xa8] sm:$0xff] %v103
          %v105 = vld [vmem:[%s59 + $0xb0] sm:$0xff]
          %106 = vst [vmem:[%s60 + $0xb0] sm:$0xff] %v105
          %v107 = vld [vmem:[%s59 + $0xb8] sm:$0xff]
          %108 = vst [vmem:[%s60 + $0xb8] sm:$0xff] %v107
          %v109 = vld [vmem:[%s59 + $0xc0] sm:$0xff]
          %110 = vst [vmem:[%s60 + $0xc0] sm:$0xff] %v109
          %v111 = vld [vmem:[%s59 + $0xc8] sm:$0xff]
          %112 = vst [vmem:[%s60 + $0xc8] sm:$0xff] %v111
          %v113 = vld [vmem:[%s59 + $0xd0] sm:$0xff]
          %114 = vst [vmem:[%s60 + $0xd0] sm:$0xff] %v113
          %v115 = vld [vmem:[%s59 + $0xd8] sm:$0xff]
          %116 = vst [vmem:[%s60 + $0xd8] sm:$0xff] %v115
          %v117 = vld [vmem:[%s59 + $0xe0] sm:$0xff]
          %118 = vst [vmem:[%s60 + $0xe0] sm:$0xff] %v117
          %v119 = vld [vmem:[%s59 + $0xe8] sm:$0xff]
          %120 = vst [vmem:[%s60 + $0xe8] sm:$0xff] %v119
          %v121 = vld [vmem:[%s59 + $0xf0] sm:$0xff]
          %122 = vst [vmem:[%s60 + $0xf0] sm:$0xff] %v121
          %v123 = vld [vmem:[%s59 + $0xf8] sm:$0xff]
          %124 = vst [vmem:[%s60 + $0xf8] sm:$0xff] %v123
          %v125 = vld [vmem:[%s59 + $0x100] sm:$0xff]
          %126 = vst [vmem:[%s60 + $0x100] sm:$0xff] %v125
          %v127 = vld [vmem:[%s59 + $0x108] sm:$0xff]
          %128 = vst [vmem:[%s60 + $0x108] sm:$0xff] %v127
          %v129 = vld [vmem:[%s59 + $0x110] sm:$0xff]
          %130 = vst [vmem:[%s60 + $0x110] sm:$0xff] %v129
          %v131 = vld [vmem:[%s59 + $0x118] sm:$0xff]
          %132 = vst [vmem:[%s60 + $0x118] sm:$0xff] %v131
          %v133 = vld [vmem:[%s59 + $0x120] sm:$0xff]
          %134 = vst [vmem:[%s60 + $0x120] sm:$0xff] %v133
          %v135 = vld [vmem:[%s59 + $0x128] sm:$0xff]
          %136 = vst [vmem:[%s60 + $0x128] sm:$0xff] %v135
          %v137 = vld [vmem:[%s59 + $0x130] sm:$0xff]
          %138 = vst [vmem:[%s60 + $0x130] sm:$0xff] %v137
          %v139 = vld [vmem:[%s59 + $0x138] sm:$0xff]
          %140 = vst [vmem:[%s60 + $0x138] sm:$0xff] %v139
          %v141 = vld [vmem:[%s59 + $0x140] sm:$0xff]
          %142 = vst [vmem:[%s60 + $0x140] sm:$0xff] %v141
          %v143 = vld [vmem:[%s59 + $0x148] sm:$0xff]
          %144 = vst [vmem:[%s60 + $0x148] sm:$0xff] %v143
          %v145 = vld [vmem:[%s59 + $0x150] sm:$0xff]
          %146 = vst [vmem:[%s60 + $0x150] sm:$0xff] %v145
          %v147 = vld [vmem:[%s59 + $0x158] sm:$0xff]
          %148 = vst [vmem:[%s60 + $0x158] sm:$0xff] %v147
          %v149 = vld [vmem:[%s59 + $0x160] sm:$0xff]
          %150 = vst [vmem:[%s60 + $0x160] sm:$0xff] %v149
          %v151 = vld [vmem:[%s59 + $0x168] sm:$0xff]
          %152 = vst [vmem:[%s60 + $0x168] sm:$0xff] %v151
          %v153 = vld [vmem:[%s59 + $0x170] sm:$0xff]
          %154 = vst [vmem:[%s60 + $0x170] sm:$0xff] %v153
          %v155 = vld [vmem:[%s59 + $0x178] sm:$0xff]
          %156 = vst [vmem:[%s60 + $0x178] sm:$0xff] %v155
          %v157 = vld [vmem:[%s59 + $0x180] sm:$0xff]
          %158 = vst [vmem:[%s60 + $0x180] sm:$0xff] %v157
          %v159 = vld [vmem:[%s59 + $0x188] sm:$0xff]
          %160 = vst [vmem:[%s60 + $0x188] sm:$0xff] %v159
          %v161 = vld [vmem:[%s59 + $0x190] sm:$0xff]
          %162 = vst [vmem:[%s60 + $0x190] sm:$0xff] %v161
          %v163 = vld [vmem:[%s59 + $0x198] sm:$0xff]
          %164 = vst [vmem:[%s60 + $0x198] sm:$0xff] %v163
          %v165 = vld [vmem:[%s59 + $0x1a0] sm:$0xff]
          %166 = vst [vmem:[%s60 + $0x1a0] sm:$0xff] %v165
          %v167 = vld [vmem:[%s59 + $0x1a8] sm:$0xff]
          %168 = vst [vmem:[%s60 + $0x1a8] sm:$0xff] %v167
          %v169 = vld [vmem:[%s59 + $0x1b0] sm:$0xff]
          %170 = vst [vmem:[%s60 + $0x1b0] sm:$0xff] %v169
          %v171 = vld [vmem:[%s59 + $0x1b8] sm:$0xff]
          %172 = vst [vmem:[%s60 + $0x1b8] sm:$0xff] %v171
          %v173 = vld [vmem:[%s59 + $0x1c0] sm:$0xff]
          %174 = vst [vmem:[%s60 + $0x1c0] sm:$0xff] %v173
          %v175 = vld [vmem:[%s59 + $0x1c8] sm:$0xff]
          %176 = vst [vmem:[%s60 + $0x1c8] sm:$0xff] %v175
          %v177 = vld [vmem:[%s59 + $0x1d0] sm:$0xff]
          %178 = vst [vmem:[%s60 + $0x1d0] sm:$0xff] %v177
          %v179 = vld [vmem:[%s59 + $0x1d8] sm:$0xff]
          %180 = vst [vmem:[%s60 + $0x1d8] sm:$0xff] %v179
          %v181 = vld [vmem:[%s59 + $0x1e0] sm:$0xff]
          %182 = vst [vmem:[%s60 + $0x1e0] sm:$0xff] %v181
          %v183 = vld [vmem:[%s59 + $0x1e8] sm:$0xff]
          %184 = vst [vmem:[%s60 + $0x1e8] sm:$0xff] %v183
          %v185 = vld [vmem:[%s59 + $0x1f0] sm:$0xff]
          %186 = vst [vmem:[%s60 + $0x1f0] sm:$0xff] %v185
          %v187 = vld [vmem:[%s59 + $0x1f8] sm:$0xff]
          %188 = vst [vmem:[%s60 + $0x1f8] sm:$0xff] %v187
          %v189 = vld [vmem:[%s59 + $0x200] sm:$0xff]
          %190 = vst [vmem:[%s60 + $0x200] sm:$0xff] %v189
          %v191 = vld [vmem:[%s59 + $0x208] sm:$0xff]
          %192 = vst [vmem:[%s60 + $0x208] sm:$0xff] %v191
          %v193 = vld [vmem:[%s59 + $0x210] sm:$0xff]
          %194 = vst [vmem:[%s60 + $0x210] sm:$0xff] %v193
          %v195 = vld [vmem:[%s59 + $0x218] sm:$0xff]
          %196 = vst [vmem:[%s60 + $0x218] sm:$0xff] %v195
          %v197 = vld [vmem:[%s59 + $0x220] sm:$0xff]
          %198 = vst [vmem:[%s60 + $0x220] sm:$0xff] %v197
          %v199 = vld [vmem:[%s59 + $0x228] sm:$0xff]
          %200 = vst [vmem:[%s60 + $0x228] sm:$0xff] %v199
          %v201 = vld [vmem:[%s59 + $0x230] sm:$0xff]
          %202 = vst [vmem:[%s60 + $0x230] sm:$0xff] %v201
          %v203 = vld [vmem:[%s59 + $0x238] sm:$0xff]
          %204 = vst [vmem:[%s60 + $0x238] sm:$0xff] %v203
          %v205 = vld [vmem:[%s59 + $0x240] sm:$0xff]
          %206 = vst [vmem:[%s60 + $0x240] sm:$0xff] %v205
          %v207 = vld [vmem:[%s59 + $0x248] sm:$0xff]
          %208 = vst [vmem:[%s60 + $0x248] sm:$0xff] %v207
          %v209 = vld [vmem:[%s59 + $0x250] sm:$0xff]
          %210 = vst [vmem:[%s60 + $0x250] sm:$0xff] %v209
          %v211 = vld [vmem:[%s59 + $0x258] sm:$0xff]
          %212 = vst [vmem:[%s60 + $0x258] sm:$0xff] %v211
          %v213 = vld [vmem:[%s59 + $0x260] sm:$0xff]
          %214 = vst [vmem:[%s60 + $0x260] sm:$0xff] %v213
          %v215 = vld [vmem:[%s59 + $0x268] sm:$0xff]
          %216 = vst [vmem:[%s60 + $0x268] sm:$0xff] %v215
          %v217 = vld [vmem:[%s59 + $0x270] sm:$0xff]
          %218 = vst [vmem:[%s60 + $0x270] sm:$0xff] %v217
          %v219 = vld [vmem:[%s59 + $0x278] sm:$0xff]
          %220 = vst [vmem:[%s60 + $0x278] sm:$0xff] %v219
          %v221 = vld [vmem:[%s59 + $0x280] sm:$0xff]
          %222 = vst [vmem:[%s60 + $0x280] sm:$0xff] %v221
          %v223 = vld [vmem:[%s59 + $0x288] sm:$0xff]
          %224 = vst [vmem:[%s60 + $0x288] sm:$0xff] %v223
          %v225 = vld [vmem:[%s59 + $0x290] sm:$0xff]
          %226 = vst [vmem:[%s60 + $0x290] sm:$0xff] %v225
          %v227 = vld [vmem:[%s59 + $0x298] sm:$0xff]
          %228 = vst [vmem:[%s60 + $0x298] sm:$0xff] %v227
          %v229 = vld [vmem:[%s59 + $0x2a0] sm:$0xff]
          %230 = vst [vmem:[%s60 + $0x2a0] sm:$0xff] %v229
          %v231 = vld [vmem:[%s59 + $0x2a8] sm:$0xff]
          %232 = vst [vmem:[%s60 + $0x2a8] sm:$0xff] %v231
          %v233 = vld [vmem:[%s59 + $0x2b0] sm:$0xff]
          %234 = vst [vmem:[%s60 + $0x2b0] sm:$0xff] %v233
          %v235 = vld [vmem:[%s59 + $0x2b8] sm:$0xff]
          %236 = vst [vmem:[%s60 + $0x2b8] sm:$0xff] %v235
          %v237 = vld [vmem:[%s59 + $0x2c0] sm:$0xff]
          %238 = vst [vmem:[%s60 + $0x2c0] sm:$0xff] %v237
          %v239 = vld [vmem:[%s59 + $0x2c8] sm:$0xff]
          %240 = vst [vmem:[%s60 + $0x2c8] sm:$0xff] %v239
          %v241 = vld [vmem:[%s59 + $0x2d0] sm:$0xff]
          %242 = vst [vmem:[%s60 + $0x2d0] sm:$0xff] %v241
          %v243 = vld [vmem:[%s59 + $0x2d8] sm:$0xff]
          %244 = vst [vmem:[%s60 + $0x2d8] sm:$0xff] %v243
          %v245 = vld [vmem:[%s59 + $0x2e0] sm:$0xff]
          %246 = vst [vmem:[%s60 + $0x2e0] sm:$0xff] %v245
          %v247 = vld [vmem:[%s59 + $0x2e8] sm:$0xff]
          %248 = vst [vmem:[%s60 + $0x2e8] sm:$0xff] %v247
          %v249 = vld [vmem:[%s59 + $0x2f0] sm:$0xff]
          %250 = vst [vmem:[%s60 + $0x2f0] sm:$0xff] %v249
          %v251 = vld [vmem:[%s59 + $0x2f8] sm:$0xff]
          %252 = vst [vmem:[%s60 + $0x2f8] sm:$0xff] %v251
          %v253 = vld [vmem:[%s59 + $0x300] sm:$0xff]
          %254 = vst [vmem:[%s60 + $0x300] sm:$0xff] %v253
          %v255 = vld [vmem:[%s59 + $0x308] sm:$0xff]
          %256 = vst [vmem:[%s60 + $0x308] sm:$0xff] %v255
          %v257 = vld [vmem:[%s59 + $0x310] sm:$0xff]
          %258 = vst [vmem:[%s60 + $0x310] sm:$0xff] %v257
          %v259 = vld [vmem:[%s59 + $0x318] sm:$0xff]
          %260 = vst [vmem:[%s60 + $0x318] sm:$0xff] %v259
          %v261 = vld [vmem:[%s59 + $0x320] sm:$0xff]
          %262 = vst [vmem:[%s60 + $0x320] sm:$0xff] %v261
          %v263 = vld [vmem:[%s59 + $0x328] sm:$0xff]
          %264 = vst [vmem:[%s60 + $0x328] sm:$0xff] %v263
          %v265 = vld [vmem:[%s59 + $0x330] sm:$0xff]
          %266 = vst [vmem:[%s60 + $0x330] sm:$0xff] %v265
          %v267 = vld [vmem:[%s59 + $0x338] sm:$0xff]
          %268 = vst [vmem:[%s60 + $0x338] sm:$0xff] %v267
          %v269 = vld [vmem:[%s59 + $0x340] sm:$0xff]
          %270 = vst [vmem:[%s60 + $0x340] sm:$0xff] %v269
          %v271 = vld [vmem:[%s59 + $0x348] sm:$0xff]
          %272 = vst [vmem:[%s60 + $0x348] sm:$0xff] %v271
          %v273 = vld [vmem:[%s59 + $0x350] sm:$0xff]
          %274 = vst [vmem:[%s60 + $0x350] sm:$0xff] %v273
          %v275 = vld [vmem:[%s59 + $0x358] sm:$0xff]
          %276 = vst [vmem:[%s60 + $0x358] sm:$0xff] %v275
          %v277 = vld [vmem:[%s59 + $0x360] sm:$0xff]
          %278 = vst [vmem:[%s60 + $0x360] sm:$0xff] %v277
          %v279 = vld [vmem:[%s59 + $0x368] sm:$0xff]
          %280 = vst [vmem:[%s60 + $0x368] sm:$0xff] %v279
          %v281 = vld [vmem:[%s59 + $0x370] sm:$0xff]
          %282 = vst [vmem:[%s60 + $0x370] sm:$0xff] %v281
          %v283 = vld [vmem:[%s59 + $0x378] sm:$0xff]
          %284 = vst [vmem:[%s60 + $0x378] sm:$0xff] %v283
          %v285 = vld [vmem:[%s59 + $0x380] sm:$0xff]
          %286 = vst [vmem:[%s60 + $0x380] sm:$0xff] %v285
          %v287 = vld [vmem:[%s59 + $0x388] sm:$0xff]
          %288 = vst [vmem:[%s60 + $0x388] sm:$0xff] %v287
          %v289 = vld [vmem:[%s59 + $0x390] sm:$0xff]
          %290 = vst [vmem:[%s60 + $0x390] sm:$0xff] %v289
          %v291 = vld [vmem:[%s59 + $0x398] sm:$0xff]
          %292 = vst [vmem:[%s60 + $0x398] sm:$0xff] %v291
          %v293 = vld [vmem:[%s59 + $0x3a0] sm:$0xff]
          %294 = vst [vmem:[%s60 + $0x3a0] sm:$0xff] %v293
          %v295 = vld [vmem:[%s59 + $0x3a8] sm:$0xff]
          %296 = vst [vmem:[%s60 + $0x3a8] sm:$0xff] %v295
          %v297 = vld [vmem:[%s59 + $0x3b0] sm:$0xff]
          %298 = vst [vmem:[%s60 + $0x3b0] sm:$0xff] %v297
          %v299 = vld [vmem:[%s59 + $0x3b8] sm:$0xff]
          %300 = vst [vmem:[%s60 + $0x3b8] sm:$0xff] %v299
          %v301 = vld [vmem:[%s59 + $0x3c0] sm:$0xff]
          %302 = vst [vmem:[%s60 + $0x3c0] sm:$0xff] %v301
          %v303 = vld [vmem:[%s59 + $0x3c8] sm:$0xff]
          %304 = vst [vmem:[%s60 + $0x3c8] sm:$0xff] %v303
          %v305 = vld [vmem:[%s59 + $0x3d0] sm:$0xff]
          %306 = vst [vmem:[%s60 + $0x3d0] sm:$0xff] %v305
          %v307 = vld [vmem:[%s59 + $0x3d8] sm:$0xff]
          %308 = vst [vmem:[%s60 + $0x3d8] sm:$0xff] %v307
          %v309 = vld [vmem:[%s59 + $0x3e0] sm:$0xff]
          %310 = vst [vmem:[%s60 + $0x3e0] sm:$0xff] %v309
          %v311 = vld [vmem:[%s59 + $0x3e8] sm:$0xff]
          %312 = vst [vmem:[%s60 + $0x3e8] sm:$0xff] %v311
          %v313 = vld [vmem:[%s59 + $0x3f0] sm:$0xff]
          %314 = vst [vmem:[%s60 + $0x3f0] sm:$0xff] %v313
          %v315 = vld [vmem:[%s59 + $0x3f8] sm:$0xff]
          %316 = vst [vmem:[%s60 + $0x3f8] sm:$0xff] %v315
        $region49: #{generator_forward.1} parent=43 // loop_footer
          %s58 = sadd.s32 1, %s54
        $region50: #{generator_forward.1} parent=43 // loop_footer_branch
          %53 = sbr.rel target = $region46
        $region51: #{generator_forward.1} parent=43 // loop_exit
          _
      $region44: #{generator_forward.1} parent=28 // pred_fallthru
        _
      %p317 = pneg %p49
      // Predicated region
      $region52: #{generator_forward.1} parent=28 // pred_check
        _
      $region53: #{generator_forward.1} parent=28 // pred_check_branch
        %319 = sbr.rel (%p49) target = $region55
      $region54: #{generator_forward.1} parent=28 // pred_region
        %s320 = sand.u32 1024, 7
      $region55: #{generator_forward.1} parent=28 // pred_fallthru
        _
    $region29: #{generator_forward.1} parent=1 // pred_fallthru
      _
    // Predicated region
    $region30: #{generator_forward.1} parent=1 // pred_check
      %p33 = pneg %p29
    $region31: #{generator_forward.1} parent=1 // pred_check_branch
      %35 = sbr.rel (%p33) target = $region33
    $region32: #{generator_forward.1} parent=1 // pred_region
      %s36 = sshll.u32 1, 1024
      %s37 = ssub.s32 %s36, 1
      loop: start=0, step=1, limit=1
      $region34: #{generator_forward.1} parent=32 // loop_pre_header
        _
      $region35: #{generator_forward.1} parent=32 // loop_header
        %s39 = sphi 0, %s43
        %p40 = scmp.ge.s32.totalorder %s39, 1
        %s44 = sphi %s2, %s2
        %s45 = sphi [#allocation2], [#allocation2]
      $region36: #{generator_forward.1} parent=32 // loop_header_branch
        %42 = sbr.rel (%p40) target = $region40
      $region37: #{generator_forward.1} parent=32 // loop_body
        %v46 = vld [vmem:[%s44] sm:%s37]
        %47 = vst [vmem:[%s45] sm:%s37] %v46
      $region38: #{generator_forward.1} parent=32 // loop_footer
        %s43 = sadd.s32 1, %s39
      $region39: #{generator_forward.1} parent=32 // loop_footer_branch
        %38 = sbr.rel target = $region35
      $region40: #{generator_forward.1} parent=32 // loop_exit
        _
    $region33: #{generator_forward.1} parent=1 // pred_fallthru
      _
    // Predicated region
    $region56: #{generator_forward.1} parent=1 // pred_check
      _
    $region57: #{generator_forward.1} parent=1 // pred_check_branch
      %323 = sbr.rel (0) target = $region59
    $region58: #{generator_forward.1} parent=1 // pred_region
      %324 = vsyncadd [#allocation5], 16384
    $region59: #{generator_forward.1} parent=1 // pred_fallthru
      _
    %s325 = scalar_lea.sflag [#allocation5], 1
    // Predicated region
    $region60: #{generator_forward.1} parent=1 // pred_check
      _
    $region61: #{generator_forward.1} parent=1 // pred_check_branch
      %327 = sbr.rel target = $region63
    $region62: #{generator_forward.1} parent=1 // pred_region
      %328 = sst [smem:[#allocation11]] [#allocation10]
      %329 = sst [smem:[#allocation12]] [#allocation9]
    $region63: #{generator_forward.1} parent=1 // pred_fallthru
      _
    %331 = shalt.err (0)
    %s333 = sshll.u32 [#allocation3], 4
    %s334 = int_to_ptr.vmem [resolvable:$true] %s333
    %336 = dma.hbm_to_vmem [thread:$0]  %s3, 12288, %s334, %s325
    %s337 = scalar_lea.sflag [#allocation5], 2
    %p339 = scmp.lt.u32.totalorder 512, 8
    %p340 = pneg %p339
    // Predicated region
    $region64: #{generator_forward.1} parent=1 // pred_check
      _
    $region65: #{generator_forward.1} parent=1 // pred_check_branch
      %342 = sbr.rel (%p339) target = $region67
    $region66: #{generator_forward.1} parent=1 // pred_region
      %s358 = sand.u32 512, 7
      %p359 = scmp.eq.s32.totalorder %s358, 0
      // Predicated region
      $region79: #{generator_forward.1} parent=66 // pred_check
        %p360 = pneg %p359
      $region80: #{generator_forward.1} parent=66 // pred_check_branch
        %362 = sbr.rel (%p360) target = $region82
      $region81: #{generator_forward.1} parent=66 // pred_region
        loop: start=0, step=1, limit=1
        $region83: #{generator_forward.1} parent=81 // loop_pre_header
          _
        $region84: #{generator_forward.1} parent=81 // loop_header
          %s364 = sphi 0, %s368
          %p365 = scmp.ge.s32.totalorder %s364, 1
          %s369 = sphi %s4, %s4
          %s370 = sphi [#allocation4], [#allocation4]
        $region85: #{generator_forward.1} parent=81 // loop_header_branch
          %367 = sbr.rel (%p365) target = $region89
        $region86: #{generator_forward.1} parent=81 // loop_body
          %v371 = vld [vmem:[%s369] sm:$0xff]
          %372 = vst [vmem:[%s370] sm:$0xff] %v371
          %v373 = vld [vmem:[%s369 + $0x8] sm:$0xff]
          %374 = vst [vmem:[%s370 + $0x8] sm:$0xff] %v373
          %v375 = vld [vmem:[%s369 + $0x10] sm:$0xff]
          %376 = vst [vmem:[%s370 + $0x10] sm:$0xff] %v375
          %v377 = vld [vmem:[%s369 + $0x18] sm:$0xff]
          %378 = vst [vmem:[%s370 + $0x18] sm:$0xff] %v377
          %v379 = vld [vmem:[%s369 + $0x20] sm:$0xff]
          %380 = vst [vmem:[%s370 + $0x20] sm:$0xff] %v379
          %v381 = vld [vmem:[%s369 + $0x28] sm:$0xff]
          %382 = vst [vmem:[%s370 + $0x28] sm:$0xff] %v381
          %v383 = vld [vmem:[%s369 + $0x30] sm:$0xff]
          %384 = vst [vmem:[%s370 + $0x30] sm:$0xff] %v383
          %v385 = vld [vmem:[%s369 + $0x38] sm:$0xff]
          %386 = vst [vmem:[%s370 + $0x38] sm:$0xff] %v385
          %v387 = vld [vmem:[%s369 + $0x40] sm:$0xff]
          %388 = vst [vmem:[%s370 + $0x40] sm:$0xff] %v387
          %v389 = vld [vmem:[%s369 + $0x48] sm:$0xff]
          %390 = vst [vmem:[%s370 + $0x48] sm:$0xff] %v389
          %v391 = vld [vmem:[%s369 + $0x50] sm:$0xff]
          %392 = vst [vmem:[%s370 + $0x50] sm:$0xff] %v391
          %v393 = vld [vmem:[%s369 + $0x58] sm:$0xff]
          %394 = vst [vmem:[%s370 + $0x58] sm:$0xff] %v393
          %v395 = vld [vmem:[%s369 + $0x60] sm:$0xff]
          %396 = vst [vmem:[%s370 + $0x60] sm:$0xff] %v395
          %v397 = vld [vmem:[%s369 + $0x68] sm:$0xff]
          %398 = vst [vmem:[%s370 + $0x68] sm:$0xff] %v397
          %v399 = vld [vmem:[%s369 + $0x70] sm:$0xff]
          %400 = vst [vmem:[%s370 + $0x70] sm:$0xff] %v399
          %v401 = vld [vmem:[%s369 + $0x78] sm:$0xff]
          %402 = vst [vmem:[%s370 + $0x78] sm:$0xff] %v401
          %v403 = vld [vmem:[%s369 + $0x80] sm:$0xff]
          %404 = vst [vmem:[%s370 + $0x80] sm:$0xff] %v403
          %v405 = vld [vmem:[%s369 + $0x88] sm:$0xff]
          %406 = vst [vmem:[%s370 + $0x88] sm:$0xff] %v405
          %v407 = vld [vmem:[%s369 + $0x90] sm:$0xff]
          %408 = vst [vmem:[%s370 + $0x90] sm:$0xff] %v407
          %v409 = vld [vmem:[%s369 + $0x98] sm:$0xff]
          %410 = vst [vmem:[%s370 + $0x98] sm:$0xff] %v409
          %v411 = vld [vmem:[%s369 + $0xa0] sm:$0xff]
          %412 = vst [vmem:[%s370 + $0xa0] sm:$0xff] %v411
          %v413 = vld [vmem:[%s369 + $0xa8] sm:$0xff]
          %414 = vst [vmem:[%s370 + $0xa8] sm:$0xff] %v413
          %v415 = vld [vmem:[%s369 + $0xb0] sm:$0xff]
          %416 = vst [vmem:[%s370 + $0xb0] sm:$0xff] %v415
          %v417 = vld [vmem:[%s369 + $0xb8] sm:$0xff]
          %418 = vst [vmem:[%s370 + $0xb8] sm:$0xff] %v417
          %v419 = vld [vmem:[%s369 + $0xc0] sm:$0xff]
          %420 = vst [vmem:[%s370 + $0xc0] sm:$0xff] %v419
          %v421 = vld [vmem:[%s369 + $0xc8] sm:$0xff]
          %422 = vst [vmem:[%s370 + $0xc8] sm:$0xff] %v421
          %v423 = vld [vmem:[%s369 + $0xd0] sm:$0xff]
          %424 = vst [vmem:[%s370 + $0xd0] sm:$0xff] %v423
          %v425 = vld [vmem:[%s369 + $0xd8] sm:$0xff]
          %426 = vst [vmem:[%s370 + $0xd8] sm:$0xff] %v425
          %v427 = vld [vmem:[%s369 + $0xe0] sm:$0xff]
          %428 = vst [vmem:[%s370 + $0xe0] sm:$0xff] %v427
          %v429 = vld [vmem:[%s369 + $0xe8] sm:$0xff]
          %430 = vst [vmem:[%s370 + $0xe8] sm:$0xff] %v429
          %v431 = vld [vmem:[%s369 + $0xf0] sm:$0xff]
          %432 = vst [vmem:[%s370 + $0xf0] sm:$0xff] %v431
          %v433 = vld [vmem:[%s369 + $0xf8] sm:$0xff]
          %434 = vst [vmem:[%s370 + $0xf8] sm:$0xff] %v433
          %v435 = vld [vmem:[%s369 + $0x100] sm:$0xff]
          %436 = vst [vmem:[%s370 + $0x100] sm:$0xff] %v435
          %v437 = vld [vmem:[%s369 + $0x108] sm:$0xff]
          %438 = vst [vmem:[%s370 + $0x108] sm:$0xff] %v437
          %v439 = vld [vmem:[%s369 + $0x110] sm:$0xff]
          %440 = vst [vmem:[%s370 + $0x110] sm:$0xff] %v439
          %v441 = vld [vmem:[%s369 + $0x118] sm:$0xff]
          %442 = vst [vmem:[%s370 + $0x118] sm:$0xff] %v441
          %v443 = vld [vmem:[%s369 + $0x120] sm:$0xff]
          %444 = vst [vmem:[%s370 + $0x120] sm:$0xff] %v443
          %v445 = vld [vmem:[%s369 + $0x128] sm:$0xff]
          %446 = vst [vmem:[%s370 + $0x128] sm:$0xff] %v445
          %v447 = vld [vmem:[%s369 + $0x130] sm:$0xff]
          %448 = vst [vmem:[%s370 + $0x130] sm:$0xff] %v447
          %v449 = vld [vmem:[%s369 + $0x138] sm:$0xff]
          %450 = vst [vmem:[%s370 + $0x138] sm:$0xff] %v449
          %v451 = vld [vmem:[%s369 + $0x140] sm:$0xff]
          %452 = vst [vmem:[%s370 + $0x140] sm:$0xff] %v451
          %v453 = vld [vmem:[%s369 + $0x148] sm:$0xff]
          %454 = vst [vmem:[%s370 + $0x148] sm:$0xff] %v453
          %v455 = vld [vmem:[%s369 + $0x150] sm:$0xff]
          %456 = vst [vmem:[%s370 + $0x150] sm:$0xff] %v455
          %v457 = vld [vmem:[%s369 + $0x158] sm:$0xff]
          %458 = vst [vmem:[%s370 + $0x158] sm:$0xff] %v457
          %v459 = vld [vmem:[%s369 + $0x160] sm:$0xff]
          %460 = vst [vmem:[%s370 + $0x160] sm:$0xff] %v459
          %v461 = vld [vmem:[%s369 + $0x168] sm:$0xff]
          %462 = vst [vmem:[%s370 + $0x168] sm:$0xff] %v461
          %v463 = vld [vmem:[%s369 + $0x170] sm:$0xff]
          %464 = vst [vmem:[%s370 + $0x170] sm:$0xff] %v463
          %v465 = vld [vmem:[%s369 + $0x178] sm:$0xff]
          %466 = vst [vmem:[%s370 + $0x178] sm:$0xff] %v465
          %v467 = vld [vmem:[%s369 + $0x180] sm:$0xff]
          %468 = vst [vmem:[%s370 + $0x180] sm:$0xff] %v467
          %v469 = vld [vmem:[%s369 + $0x188] sm:$0xff]
          %470 = vst [vmem:[%s370 + $0x188] sm:$0xff] %v469
          %v471 = vld [vmem:[%s369 + $0x190] sm:$0xff]
          %472 = vst [vmem:[%s370 + $0x190] sm:$0xff] %v471
          %v473 = vld [vmem:[%s369 + $0x198] sm:$0xff]
          %474 = vst [vmem:[%s370 + $0x198] sm:$0xff] %v473
          %v475 = vld [vmem:[%s369 + $0x1a0] sm:$0xff]
          %476 = vst [vmem:[%s370 + $0x1a0] sm:$0xff] %v475
          %v477 = vld [vmem:[%s369 + $0x1a8] sm:$0xff]
          %478 = vst [vmem:[%s370 + $0x1a8] sm:$0xff] %v477
          %v479 = vld [vmem:[%s369 + $0x1b0] sm:$0xff]
          %480 = vst [vmem:[%s370 + $0x1b0] sm:$0xff] %v479
          %v481 = vld [vmem:[%s369 + $0x1b8] sm:$0xff]
          %482 = vst [vmem:[%s370 + $0x1b8] sm:$0xff] %v481
          %v483 = vld [vmem:[%s369 + $0x1c0] sm:$0xff]
          %484 = vst [vmem:[%s370 + $0x1c0] sm:$0xff] %v483
          %v485 = vld [vmem:[%s369 + $0x1c8] sm:$0xff]
          %486 = vst [vmem:[%s370 + $0x1c8] sm:$0xff] %v485
          %v487 = vld [vmem:[%s369 + $0x1d0] sm:$0xff]
          %488 = vst [vmem:[%s370 + $0x1d0] sm:$0xff] %v487
          %v489 = vld [vmem:[%s369 + $0x1d8] sm:$0xff]
          %490 = vst [vmem:[%s370 + $0x1d8] sm:$0xff] %v489
          %v491 = vld [vmem:[%s369 + $0x1e0] sm:$0xff]
          %492 = vst [vmem:[%s370 + $0x1e0] sm:$0xff] %v491
          %v493 = vld [vmem:[%s369 + $0x1e8] sm:$0xff]
          %494 = vst [vmem:[%s370 + $0x1e8] sm:$0xff] %v493
          %v495 = vld [vmem:[%s369 + $0x1f0] sm:$0xff]
          %496 = vst [vmem:[%s370 + $0x1f0] sm:$0xff] %v495
          %v497 = vld [vmem:[%s369 + $0x1f8] sm:$0xff]
          %498 = vst [vmem:[%s370 + $0x1f8] sm:$0xff] %v497
        $region87: #{generator_forward.1} parent=81 // loop_footer
          %s368 = sadd.s32 1, %s364
        $region88: #{generator_forward.1} parent=81 // loop_footer_branch
          %363 = sbr.rel target = $region84
        $region89: #{generator_forward.1} parent=81 // loop_exit
          _
      $region82: #{generator_forward.1} parent=66 // pred_fallthru
        _
      %p499 = pneg %p359
      // Predicated region
      $region90: #{generator_forward.1} parent=66 // pred_check
        _
      $region91: #{generator_forward.1} parent=66 // pred_check_branch
        %501 = sbr.rel (%p359) target = $region93
      $region92: #{generator_forward.1} parent=66 // pred_region
        %s502 = sand.u32 512, 7
      $region93: #{generator_forward.1} parent=66 // pred_fallthru
        _
    $region67: #{generator_forward.1} parent=1 // pred_fallthru
      _
    // Predicated region
    $region68: #{generator_forward.1} parent=1 // pred_check
      %p343 = pneg %p339
    $region69: #{generator_forward.1} parent=1 // pred_check_branch
      %345 = sbr.rel (%p343) target = $region71
    $region70: #{generator_forward.1} parent=1 // pred_region
      %s346 = sshll.u32 1, 512
      %s347 = ssub.s32 %s346, 1
      loop: start=0, step=1, limit=1
      $region72: #{generator_forward.1} parent=70 // loop_pre_header
        _
      $region73: #{generator_forward.1} parent=70 // loop_header
        %s349 = sphi 0, %s353
        %p350 = scmp.ge.s32.totalorder %s349, 1
        %s354 = sphi %s4, %s4
        %s355 = sphi [#allocation4], [#allocation4]
      $region74: #{generator_forward.1} parent=70 // loop_header_branch
        %352 = sbr.rel (%p350) target = $region78
      $region75: #{generator_forward.1} parent=70 // loop_body
        %v356 = vld [vmem:[%s354] sm:%s347]
        %357 = vst [vmem:[%s355] sm:%s347] %v356
      $region76: #{generator_forward.1} parent=70 // loop_footer
        %s353 = sadd.s32 1, %s349
      $region77: #{generator_forward.1} parent=70 // loop_footer_branch
        %348 = sbr.rel target = $region73
      $region78: #{generator_forward.1} parent=70 // loop_exit
        _
    $region71: #{generator_forward.1} parent=1 // pred_fallthru
      _
    // Predicated region
    $region94: #{generator_forward.1} parent=1 // pred_check
      _
    $region95: #{generator_forward.1} parent=1 // pred_check_branch
      %505 = sbr.rel (0) target = $region97
    $region96: #{generator_forward.1} parent=1 // pred_region
      %506 = vsyncadd %s337, 8192
    $region97: #{generator_forward.1} parent=1 // pred_fallthru
      _
    %v507 = vld [vmem:[%s0] sm:$0x3]
    %v508 = vpack.c.bf16 %v507, %v507
    %v509 = vld [vmem:[%s1] sm:$0xff]
    %v510 = vld [vmem:[%s1 + $0x8] sm:$0xff]
    %v511 = vld [vmem:[%s1 + $0x10] sm:$0xff]
    %v515 = vunpack.c.l.b16 %v509
    %v516 = vunpack.c.h.b16 %v509
    %v517 = vunpack.c.l.b16 %v510
    %v518 = vunpack.c.h.b16 %v510
    %v519 = vunpack.c.l.b16 %v511
    %v520 = vunpack.c.h.b16 %v511
    %v521 = vpack.c.b16 %v515, %v515
    %v522 = vpack.c.b16 %v516, %v516
    %v523 = vpack.c.b16 %v517, %v517
    %v524 = vpack.c.b16 %v518, %v518
    %v525 = vpack.c.b16 %v519, %v519
    %v526 = vpack.c.b16 %v520, %v520
    %vm527 = vcmask 64512
    %v529 = vsel %vm527, %v508, 0
    %vm531 = vcmask 1043456
    %v533 = vsel %vm531, %v521, 0
    %v536 = vsel %vm531, %v522, 0
    %v539 = vsel %vm531, %v523, 0
    %v542 = vsel %vm531, %v524, 0
    %v545 = vsel %vm531, %v525, 0
    %v548 = vsel %vm531, %v526, 0
    %550 = vmatprep.subr.bf16.mxu0 0
    %551 = vmatpush1.bf16.msra.mxu0 0
    %552 = vmatprep.subr.bf16.mxu0 0
    %553 = vmatpush1.bf16.msra.mxu0 0
    %554 = vmatprep.subr.bf16.mxu0 0
    %555 = vmatpush1.bf16.msra.mxu0 0
    %556 = vmatprep.subr.bf16.mxu0 0
    %557 = vmatpush1.bf16.msra.mxu0 0
    %558 = vmatprep.subr.bf16.mxu0 0
    %559 = vmatpush1.bf16.msra.mxu0 0
    %560 = vmatprep.subr.bf16.mxu0 0
    %561 = vmatpush1.bf16.msra.mxu0 0
    %562 = vmatprep.subr.bf16.mxu0 0
    %563 = vmatpush1.bf16.msra.mxu0 0
    %564 = vmatprep.subr.bf16.mxu0 %v536
    %565 = vmatpush1.bf16.msra.mxu0 %v533
    %566 = vmatprep.subr.bf16.mxu0 0
    %567 = vmatpush2.bf16.msra.mxu0 0
    %568 = vmatprep.subr.bf16.mxu0 0
    %569 = vmatpush2.bf16.msra.mxu0 0
    %570 = vmatprep.subr.bf16.mxu0 0
    %571 = vmatpush2.bf16.msra.mxu0 0
    %572 = vmatprep.subr.bf16.mxu0 0
    %573 = vmatpush2.bf16.msra.mxu0 0
    %574 = vmatprep.subr.bf16.mxu0 0
    %575 = vmatpush2.bf16.msra.mxu0 0
    %576 = vmatprep.subr.bf16.mxu0 0
    %577 = vmatpush2.bf16.msra.mxu0 0
    %578 = vmatprep.subr.bf16.mxu0 0
    %579 = vmatpush2.bf16.msra.mxu0 0
    %580 = vmatprep.subr.bf16.mxu0 0
    %581 = vmatpush2.bf16.msra.mxu0 0
    %582 = vmatprep.mubr.bf16.mxu0 0
    %583 = vmatmul.mubr.bf16.gmra.mxu0 %v529
    %v584 = vpop.f32.mrf.mxu0
    %v585 = vadd.f32 0.0, %v584
    %v586 = vpop.f32.mrf.mxu0
    %v587 = vadd.f32 0.0, %v586
    %v588 = vpop.f32.mrf.mxu0
    %v589 = vpop.f32.mrf.mxu0
    %590 = vdwg.mxu0
    %591 = vmatprep.subr.bf16.mxu0 0
    %592 = vmatpush1.bf16.msra.mxu0 0
    %593 = vmatprep.subr.bf16.mxu0 0
    %594 = vmatpush1.bf16.msra.mxu0 0
    %595 = vmatprep.subr.bf16.mxu0 0
    %596 = vmatpush1.bf16.msra.mxu0 0
    %597 = vmatprep.subr.bf16.mxu0 0
    %598 = vmatpush1.bf16.msra.mxu0 0
    %599 = vmatprep.subr.bf16.mxu0 0
    %600 = vmatpush1.bf16.msra.mxu0 0
    %601 = vmatprep.subr.bf16.mxu0 0
    %602 = vmatpush1.bf16.msra.mxu0 0
    %603 = vmatprep.subr.bf16.mxu0 0
    %604 = vmatpush1.bf16.msra.mxu0 0
    %605 = vmatprep.subr.bf16.mxu0 %v542
    %606 = vmatpush1.bf16.msra.mxu0 %v539
    %607 = vmatprep.subr.bf16.mxu0 0
    %608 = vmatpush2.bf16.msra.mxu0 0
    %609 = vmatprep.subr.bf16.mxu0 0
    %610 = vmatpush2.bf16.msra.mxu0 0
    %611 = vmatprep.subr.bf16.mxu0 0
    %612 = vmatpush2.bf16.msra.mxu0 0
    %613 = vmatprep.subr.bf16.mxu0 0
    %614 = vmatpush2.bf16.msra.mxu0 0
    %615 = vmatprep.subr.bf16.mxu0 0
    %616 = vmatpush2.bf16.msra.mxu0 0
    %617 = vmatprep.subr.bf16.mxu0 0
    %618 = vmatpush2.bf16.msra.mxu0 0
    %619 = vmatprep.subr.bf16.mxu0 0
    %620 = vmatpush2.bf16.msra.mxu0 0
    %621 = vmatprep.subr.bf16.mxu0 0
    %622 = vmatpush2.bf16.msra.mxu0 0
    %623 = vmatprep.mubr.bf16.mxu0 0
    %624 = vmatmul.mubr.bf16.gmra.mxu0 %v529
    %v625 = vpop.f32.mrf.mxu0
    %v626 = vadd.f32 0.0, %v625
    %v627 = vpop.f32.mrf.mxu0
    %v628 = vadd.f32 0.0, %v627
    %v629 = vpop.f32.mrf.mxu0
    %v630 = vpop.f32.mrf.mxu0
    %631 = vdwg.mxu0
    %632 = vmatprep.subr.bf16.mxu0 0
    %633 = vmatpush1.bf16.msra.mxu0 0
    %634 = vmatprep.subr.bf16.mxu0 0
    %635 = vmatpush1.bf16.msra.mxu0 0
    %636 = vmatprep.subr.bf16.mxu0 0
    %637 = vmatpush1.bf16.msra.mxu0 0
    %638 = vmatprep.subr.bf16.mxu0 0
    %639 = vmatpush1.bf16.msra.mxu0 0
    %640 = vmatprep.subr.bf16.mxu0 0
    %641 = vmatpush1.bf16.msra.mxu0 0
    %642 = vmatprep.subr.bf16.mxu0 0
    %643 = vmatpush1.bf16.msra.mxu0 0
    %644 = vmatprep.subr.bf16.mxu0 0
    %645 = vmatpush1.bf16.msra.mxu0 0
    %646 = vmatprep.subr.bf16.mxu0 %v548
    %647 = vmatpush1.bf16.msra.mxu0 %v545
    %648 = vmatprep.subr.bf16.mxu0 0
    %649 = vmatpush2.bf16.msra.mxu0 0
    %650 = vmatprep.subr.bf16.mxu0 0
    %651 = vmatpush2.bf16.msra.mxu0 0
    %652 = vmatprep.subr.bf16.mxu0 0
    %653 = vmatpush2.bf16.msra.mxu0 0
    %654 = vmatprep.subr.bf16.mxu0 0
    %655 = vmatpush2.bf16.msra.mxu0 0
    %656 = vmatprep.subr.bf16.mxu0 0
    %657 = vmatpush2.bf16.msra.mxu0 0
    %658 = vmatprep.subr.bf16.mxu0 0
    %659 = vmatpush2.bf16.msra.mxu0 0
    %660 = vmatprep.subr.bf16.mxu0 0
    %661 = vmatpush2.bf16.msra.mxu0 0
    %662 = vmatprep.subr.bf16.mxu0 0
    %663 = vmatpush2.bf16.msra.mxu0 0
    %664 = vmatprep.mubr.bf16.mxu0 0
    %665 = vmatmul.mubr.bf16.gmra.mxu0 %v529
    %v666 = vpop.f32.mrf.mxu0
    %v667 = vadd.f32 0.0, %v666
    %v668 = vpop.f32.mrf.mxu0
    %v669 = vadd.f32 0.0, %v668
    %v670 = vpop.f32.mrf.mxu0
    %v671 = vpop.f32.mrf.mxu0
    %672 = vdwg.mxu0
    %v673 = vld [vmem:[%s5] sm:$0x3f]
    %s674 = scalar_lea.vmem %s5, 56
    %v675 = vld [vmem:[%s674] sm:$0x3f]
    %vm676 = vcmask 15360
    %v678 = vsel %vm676, %v675, 0
    %vm680 = vcmask 1041408
    %v682 = vsel %vm680, %v626, 0
    %v685 = vsel %vm680, %v628, 0
    %687 = vmatprep.subr.mxu0 0.0
    %688 = vmatpush1.msra.mxu0 0.0
    %689 = vmatprep.subr.mxu0 0.0
    %690 = vmatpush1.msra.mxu0 0.0
    %691 = vmatprep.subr.mxu0 0.0
    %692 = vmatpush1.msra.mxu0 0.0
    %693 = vmatprep.subr.mxu0 0.0
    %694 = vmatpush1.msra.mxu0 0.0
    %695 = vmatprep.subr.mxu0 0.0
    %696 = vmatpush1.msra.mxu0 0.0
    %697 = vmatprep.subr.mxu0 0.0
    %698 = vmatpush1.msra.mxu0 0.0
    %699 = vmatprep.subr.mxu0 0.0
    %700 = vmatpush1.msra.mxu0 0.0
    %701 = vmatprep.subr.mxu0 0.0
    %702 = vmatpush1.msra.mxu0 0.0
    %703 = vmatprep.subr.mxu0 0.0
    %704 = vmatpush1.msra.mxu0 0.0
    %705 = vmatprep.subr.mxu0 0.0
    %706 = vmatpush1.msra.mxu0 0.0
    %707 = vmatprep.subr.mxu0 0.0
    %708 = vmatpush1.msra.mxu0 0.0
    %709 = vmatprep.subr.mxu0 0.0
    %710 = vmatpush1.msra.mxu0 0.0
    %711 = vmatprep.subr.mxu0 0.0
    %712 = vmatpush1.msra.mxu0 0.0
    %713 = vmatprep.subr.mxu0 0.0
    %714 = vmatpush1.msra.mxu0 0.0
    %715 = vmatprep.subr.mxu0 0.0
    %716 = vmatpush1.msra.mxu0 0.0
    %717 = vmatprep.subr.mxu0 %v685
    %718 = vmatpush1.msra.mxu0 %v682
    %719 = vmatprep.subr.mxu0 0.0
    %720 = vmatpush2.msra.mxu0 0.0
    %721 = vmatprep.subr.mxu0 0.0
    %722 = vmatpush2.msra.mxu0 0.0
    %723 = vmatprep.subr.mxu0 0.0
    %724 = vmatpush2.msra.mxu0 0.0
    %725 = vmatprep.subr.mxu0 0.0
    %726 = vmatpush2.msra.mxu0 0.0
    %727 = vmatprep.subr.mxu0 0.0
    %728 = vmatpush2.msra.mxu0 0.0
    %729 = vmatprep.subr.mxu0 0.0
    %730 = vmatpush2.msra.mxu0 0.0
    %731 = vmatprep.subr.mxu0 0.0
    %732 = vmatpush2.msra.mxu0 0.0
    %733 = vmatprep.subr.mxu0 0.0
    %734 = vmatpush2.msra.mxu0 0.0
    %735 = vmatprep.subr.mxu0 0.0
    %736 = vmatpush2.msra.mxu0 0.0
    %737 = vmatprep.subr.mxu0 0.0
    %738 = vmatpush2.msra.mxu0 0.0
    %739 = vmatprep.subr.mxu0 0.0
    %740 = vmatpush2.msra.mxu0 0.0
    %741 = vmatprep.subr.mxu0 0.0
    %742 = vmatpush2.msra.mxu0 0.0
    %743 = vmatprep.subr.mxu0 0.0
    %744 = vmatpush2.msra.mxu0 0.0
    %745 = vmatprep.subr.mxu0 0.0
    %746 = vmatpush2.msra.mxu0 0.0
    %747 = vmatprep.subr.mxu0 0.0
    %748 = vmatpush2.msra.mxu0 0.0
    %749 = vmatprep.subr.mxu0 0.0
    %750 = vmatpush2.msra.mxu0 0.0
    %751 = vmatprep.mubr.f32.mxu0 0.0
    %752 = vmatmul.mubr.f32.gmra.mxu0 %v678
    %v753 = vpop.f32.mrf.mxu0
    %v754 = vadd.f32 0.0, %v753
    %v755 = vpop.f32.mrf.mxu0
    %v756 = vadd.f32 0.0, %v755
    %757 = vdwg.mxu0
    %v759 = vsel %vm676, %v673, 0
    %v762 = vsel %vm680, %v585, 0
    %v765 = vsel %vm680, %v587, 0
    %767 = vmatprep.subr.mxu0 0.0
    %768 = vmatpush1.msra.mxu0 0.0
    %769 = vmatprep.subr.mxu0 0.0
    %770 = vmatpush1.msra.mxu0 0.0
    %771 = vmatprep.subr.mxu0 0.0
    %772 = vmatpush1.msra.mxu0 0.0
    %773 = vmatprep.subr.mxu0 0.0
    %774 = vmatpush1.msra.mxu0 0.0
    %775 = vmatprep.subr.mxu0 0.0
    %776 = vmatpush1.msra.mxu0 0.0
    %777 = vmatprep.subr.mxu0 0.0
    %778 = vmatpush1.msra.mxu0 0.0
    %779 = vmatprep.subr.mxu0 0.0
    %780 = vmatpush1.msra.mxu0 0.0
    %781 = vmatprep.subr.mxu0 0.0
    %782 = vmatpush1.msra.mxu0 0.0
    %783 = vmatprep.subr.mxu0 0.0
    %784 = vmatpush1.msra.mxu0 0.0
    %785 = vmatprep.subr.mxu0 0.0
    %786 = vmatpush1.msra.mxu0 0.0
    %787 = vmatprep.subr.mxu0 0.0
    %788 = vmatpush1.msra.mxu0 0.0
    %789 = vmatprep.subr.mxu0 0.0
    %790 = vmatpush1.msra.mxu0 0.0
    %791 = vmatprep.subr.mxu0 0.0
    %792 = vmatpush1.msra.mxu0 0.0
    %793 = vmatprep.subr.mxu0 0.0
    %794 = vmatpush1.msra.mxu0 0.0
    %795 = vmatprep.subr.mxu0 0.0
    %796 = vmatpush1.msra.mxu0 0.0
    %797 = vmatprep.subr.mxu0 %v765
    %798 = vmatpush1.msra.mxu0 %v762
    %799 = vmatprep.subr.mxu0 0.0
    %800 = vmatpush2.msra.mxu0 0.0
    %801 = vmatprep.subr.mxu0 0.0
    %802 = vmatpush2.msra.mxu0 0.0
    %803 = vmatprep.subr.mxu0 0.0
    %804 = vmatpush2.msra.mxu0 0.0
    %805 = vmatprep.subr.mxu0 0.0
    %806 = vmatpush2.msra.mxu0 0.0
    %807 = vmatprep.subr.mxu0 0.0
    %808 = vmatpush2.msra.mxu0 0.0
    %809 = vmatprep.subr.mxu0 0.0
    %810 = vmatpush2.msra.mxu0 0.0
    %811 = vmatprep.subr.mxu0 0.0
    %812 = vmatpush2.msra.mxu0 0.0
    %813 = vmatprep.subr.mxu0 0.0
    %814 = vmatpush2.msra.mxu0 0.0
    %815 = vmatprep.subr.mxu0 0.0
    %816 = vmatpush2.msra.mxu0 0.0
    %817 = vmatprep.subr.mxu0 0.0
    %818 = vmatpush2.msra.mxu0 0.0
    %819 = vmatprep.subr.mxu0 0.0
    %820 = vmatpush2.msra.mxu0 0.0
    %821 = vmatprep.subr.mxu0 0.0
    %822 = vmatpush2.msra.mxu0 0.0
    %823 = vmatprep.subr.mxu0 0.0
    %824 = vmatpush2.msra.mxu0 0.0
    %825 = vmatprep.subr.mxu0 0.0
    %826 = vmatpush2.msra.mxu0 0.0
    %827 = vmatprep.subr.mxu0 0.0
    %828 = vmatpush2.msra.mxu0 0.0
    %829 = vmatprep.subr.mxu0 0.0
    %830 = vmatpush2.msra.mxu0 0.0
    %831 = vmatprep.mubr.f32.mxu0 0.0
    %832 = vmatmul.mubr.f32.gmra.mxu0 %v759
    %v833 = vpop.f32.mrf.mxu0
    %v834 = vadd.f32 %v754, %v833
    %v835 = vpop.f32.mrf.mxu0
    %v836 = vadd.f32 %v756, %v835
    %837 = vdwg.mxu0
    %s838 = scalar_lea.vmem %s5, 112
    %v839 = vld [vmem:[%s838] sm:$0x3f]
    %v841 = vsel %vm676, %v839, 0
    %v844 = vsel %vm680, %v667, 0
    %v847 = vsel %vm680, %v669, 0
    %849 = vmatprep.subr.mxu0 0.0
    %850 = vmatpush1.msra.mxu0 0.0
    %851 = vmatprep.subr.mxu0 0.0
    %852 = vmatpush1.msra.mxu0 0.0
    %853 = vmatprep.subr.mxu0 0.0
    %854 = vmatpush1.msra.mxu0 0.0
    %855 = vmatprep.subr.mxu0 0.0
    %856 = vmatpush1.msra.mxu0 0.0
    %857 = vmatprep.subr.mxu0 0.0
    %858 = vmatpush1.msra.mxu0 0.0
    %859 = vmatprep.subr.mxu0 0.0
    %860 = vmatpush1.msra.mxu0 0.0
    %861 = vmatprep.subr.mxu0 0.0
    %862 = vmatpush1.msra.mxu0 0.0
    %863 = vmatprep.subr.mxu0 0.0
    %864 = vmatpush1.msra.mxu0 0.0
    %865 = vmatprep.subr.mxu0 0.0
    %866 = vmatpush1.msra.mxu0 0.0
    %867 = vmatprep.subr.mxu0 0.0
    %868 = vmatpush1.msra.mxu0 0.0
    %869 = vmatprep.subr.mxu0 0.0
    %870 = vmatpush1.msra.mxu0 0.0
    %871 = vmatprep.subr.mxu0 0.0
    %872 = vmatpush1.msra.mxu0 0.0
    %873 = vmatprep.subr.mxu0 0.0
    %874 = vmatpush1.msra.mxu0 0.0
    %875 = vmatprep.subr.mxu0 0.0
    %876 = vmatpush1.msra.mxu0 0.0
    %877 = vmatprep.subr.mxu0 0.0
    %878 = vmatpush1.msra.mxu0 0.0
    %879 = vmatprep.subr.mxu0 %v847
    %880 = vmatpush1.msra.mxu0 %v844
    %881 = vmatprep.subr.mxu0 0.0
    %882 = vmatpush2.msra.mxu0 0.0
    %883 = vmatprep.subr.mxu0 0.0
    %884 = vmatpush2.msra.mxu0 0.0
    %885 = vmatprep.subr.mxu0 0.0
    %886 = vmatpush2.msra.mxu0 0.0
    %887 = vmatprep.subr.mxu0 0.0
    %888 = vmatpush2.msra.mxu0 0.0
    %889 = vmatprep.subr.mxu0 0.0
    %890 = vmatpush2.msra.mxu0 0.0
    %891 = vmatprep.subr.mxu0 0.0
    %892 = vmatpush2.msra.mxu0 0.0
    %893 = vmatprep.subr.mxu0 0.0
    %894 = vmatpush2.msra.mxu0 0.0
    %895 = vmatprep.subr.mxu0 0.0
    %896 = vmatpush2.msra.mxu0 0.0
    %897 = vmatprep.subr.mxu0 0.0
    %898 = vmatpush2.msra.mxu0 0.0
    %899 = vmatprep.subr.mxu0 0.0
    %900 = vmatpush2.msra.mxu0 0.0
    %901 = vmatprep.subr.mxu0 0.0
    %902 = vmatpush2.msra.mxu0 0.0
    %903 = vmatprep.subr.mxu0 0.0
    %904 = vmatpush2.msra.mxu0 0.0
    %905 = vmatprep.subr.mxu0 0.0
    %906 = vmatpush2.msra.mxu0 0.0
    %907 = vmatprep.subr.mxu0 0.0
    %908 = vmatpush2.msra.mxu0 0.0
    %909 = vmatprep.subr.mxu0 0.0
    %910 = vmatpush2.msra.mxu0 0.0
    %911 = vmatprep.subr.mxu0 0.0
    %912 = vmatpush2.msra.mxu0 0.0
    %913 = vmatprep.mubr.f32.mxu0 0.0
    %914 = vmatmul.mubr.f32.gmra.mxu0 %v841
    %v915 = vpop.f32.mrf.mxu0
    %v916 = vadd.f32 0.0, %v915
    %v917 = vpop.f32.mrf.mxu0
    %v918 = vadd.f32 0.0, %v917
    %919 = vdwg.mxu0
    %v920 = vadd.f32 %v834, %v916
    %v921 = vadd.f32 %v836, %v918
    %v922 = vld [vmem:[%s6] sm:$0xf]
    %v923 = vld [vmem:[%s6 + $0x4] sm:$0xf]
    %v924 = vld [vmem:[%s6 + $0x8] sm:$0xf]
    %v925 = vld [vmem:[%s6 + $0xc] sm:$0xf]
    %v926 = vld [vmem:[%s6 + $0x10] sm:$0xf]
    %v927 = vld [vmem:[%s6 + $0x14] sm:$0xf]
    %v928 = vld [vmem:[%s6 + $0x18] sm:$0xf]
    %v929 = vld [vmem:[%s6 + $0x1c] sm:$0xf]
    %v930 = vld [vmem:[%s6 + $0x20] sm:$0xf]
    %v931 = vld [vmem:[%s6 + $0x24] sm:$0xf]
    %v932 = vld [vmem:[%s6 + $0x28] sm:$0xf]
    %v933 = vld [vmem:[%s6 + $0x2c] sm:$0xf]
    %v934 = vld [vmem:[%s6 + $0x30] sm:$0xf]
    %v935 = vld [vmem:[%s6 + $0x34] sm:$0xf]
    %v936 = vld [vmem:[%s6 + $0x38] sm:$0xf]
    %v937 = vld [vmem:[%s6 + $0x3c] sm:$0xf]
    %v938 = vld [vmem:[%s6 + $0x40] sm:$0xf]
    %v939 = vld [vmem:[%s6 + $0x44] sm:$0xf]
    %v940 = vld [vmem:[%s6 + $0x48] sm:$0xf]
    %v941 = vld [vmem:[%s6 + $0x4c] sm:$0xf]
    %v942 = vld [vmem:[%s6 + $0x50] sm:$0xf]
    %v943 = vld [vmem:[%s6 + $0x54] sm:$0xf]
    %v944 = vld [vmem:[%s6 + $0x58] sm:$0xf]
    %v945 = vld [vmem:[%s6 + $0x5c] sm:$0xf]
    %v946 = vld [vmem:[%s6 + $0x60] sm:$0xf]
    %v947 = vld [vmem:[%s6 + $0x64] sm:$0xf]
    %v948 = vld [vmem:[%s6 + $0x68] sm:$0xf]
    %v949 = vld [vmem:[%s6 + $0x6c] sm:$0xf]
    %v950 = vld [vmem:[%s6 + $0x70] sm:$0xf]
    %v951 = vld [vmem:[%s6 + $0x74] sm:$0xf]
    %v952 = vld [vmem:[%s6 + $0x78] sm:$0xf]
    %v953 = vld [vmem:[%s6 + $0x7c] sm:$0xf]
    %v954 = vunpack.c.l.bf16 %v922
    %v955 = vunpack.c.l.bf16 %v923
    %v956 = vunpack.c.l.bf16 %v924
    %v957 = vunpack.c.l.bf16 %v925
    %v958 = vunpack.c.l.bf16 %v926
    %v959 = vunpack.c.l.bf16 %v927
    %v960 = vunpack.c.l.bf16 %v928
    %v961 = vunpack.c.l.bf16 %v929
    %v962 = vunpack.c.l.bf16 %v930
    %v963 = vunpack.c.l.bf16 %v931
    %v964 = vunpack.c.l.bf16 %v932
    %v965 = vunpack.c.l.bf16 %v933
    %v966 = vunpack.c.l.bf16 %v934
    %v967 = vunpack.c.l.bf16 %v935
    %v968 = vunpack.c.l.bf16 %v936
    %v969 = vunpack.c.l.bf16 %v937
    %v970 = vunpack.c.l.bf16 %v938
    %v971 = vunpack.c.l.bf16 %v939
    %v972 = vunpack.c.l.bf16 %v940
    %v973 = vunpack.c.l.bf16 %v941
    %v974 = vunpack.c.l.bf16 %v942
    %v975 = vunpack.c.l.bf16 %v943
    %v976 = vunpack.c.l.bf16 %v944
    %v977 = vunpack.c.l.bf16 %v945
    %v978 = vunpack.c.l.bf16 %v946
    %v979 = vunpack.c.l.bf16 %v947
    %v980 = vunpack.c.l.bf16 %v948
    %v981 = vunpack.c.l.bf16 %v949
    %v982 = vunpack.c.l.bf16 %v950
    %v983 = vunpack.c.l.bf16 %v951
    %v984 = vunpack.c.l.bf16 %v952
    %v985 = vunpack.c.l.bf16 %v953
    %v986 = vld [vmem:[%s7] sm:$0xff]
    %v987 = vld [vmem:[%s7 + $0x8] sm:$0xff]
    %v988 = vld [vmem:[%s7 + $0x10] sm:$0xff]
    %v989 = vld [vmem:[%s7 + $0x18] sm:$0xff]
    %v990 = vld [vmem:[%s7 + $0x20] sm:$0xff]
    %v991 = vld [vmem:[%s7 + $0x28] sm:$0xff]
    %v992 = vld [vmem:[%s7 + $0x30] sm:$0xff]
    %v993 = vld [vmem:[%s7 + $0x38] sm:$0xff]
    %v994 = vunpack.c.l.bf16 %v986
    %v995 = vunpack.c.h.bf16 %v986
    %v996 = vunpack.c.l.bf16 %v987
    %v997 = vunpack.c.h.bf16 %v987
    %v998 = vunpack.c.l.bf16 %v988
    %v999 = vunpack.c.h.bf16 %v988
    %v1000 = vunpack.c.l.bf16 %v989
    %v1001 = vunpack.c.h.bf16 %v989
    %v1002 = vunpack.c.l.bf16 %v990
    %v1003 = vunpack.c.h.bf16 %v990
    %v1004 = vunpack.c.l.bf16 %v991
    %v1005 = vunpack.c.h.bf16 %v991
    %v1006 = vunpack.c.l.bf16 %v992
    %v1007 = vunpack.c.h.bf16 %v992
    %v1008 = vunpack.c.l.bf16 %v993
    %v1009 = vunpack.c.h.bf16 %v993
    %v1010 = vld [vmem:[%s8] sm:$0x1]
    %v1011 = vld [vmem:[%s8 + $0x1] sm:$0x1]
    %vm1012 = vcmask 1045504
    %v1013 = vsel %vm1012, %v920, 0.0
    %v1014 = vrot.slane %v1013, 4
    %v1015 = vadd.f32 %v1013, %v1014
    %v1016 = vrot.slane %v1015, 2
    %v1017 = vadd.f32 %v1015, %v1016
    %v1018 = vrot.slane %v1017, 1
    %v1019 = vadd.f32 %v1017, %v1018
    %v1020 = vsel %vm1012, %v921, 0.0
    %v1021 = vrot.slane %v1020, 4
    %v1022 = vadd.f32 %v1020, %v1021
    %v1023 = vrot.slane %v1022, 2
    %v1024 = vadd.f32 %v1022, %v1023
    %v1025 = vrot.slane %v1024, 1
    %v1026 = vadd.f32 %v1024, %v1025
    %v1027 = vmul.f32 %v920, %v920
    %v1028 = vmul.f32 %v921, %v921
    %v1029 = vsel %vm1012, %v1027, 0.0
    %v1030 = vrot.slane %v1029, 4
    %v1031 = vadd.f32 %v1029, %v1030
    %v1032 = vrot.slane %v1031, 2
    %v1033 = vadd.f32 %v1031, %v1032
    %v1034 = vrot.slane %v1033, 1
    %v1035 = vadd.f32 %v1033, %v1034
    %v1036 = vsel %vm1012, %v1028, 0.0
    %v1037 = vrot.slane %v1036, 4
    %v1038 = vadd.f32 %v1036, %v1037
    %v1039 = vrot.slane %v1038, 2
    %v1040 = vadd.f32 %v1038, %v1039
    %v1041 = vrot.slane %v1040, 1
    %v1042 = vadd.f32 %v1040, %v1041
    %vm1043 = vcmask 1040384
    %v1044 = vsel %vm1043, %v1019, %v1035
    %v1045 = vsel %vm1043, %v1026, %v1042
    %1046 = vmatprep.subr.mxu0 0.0
    %1047 = vmatpush1.msra.mxu0 %v969
    %1048 = vmatprep.subr.mxu0 0.0
    %1049 = vmatpush1.msra.mxu0 %v968
    %1050 = vmatprep.subr.mxu0 0.0
    %1051 = vmatpush1.msra.mxu0 %v967
    %1052 = vmatprep.subr.mxu0 0.0
    %1053 = vmatpush1.msra.mxu0 %v966
    %1054 = vmatprep.subr.mxu0 0.0
    %1055 = vmatpush1.msra.mxu0 %v965
    %1056 = vmatprep.subr.mxu0 0.0
    %1057 = vmatpush1.msra.mxu0 %v964
    %1058 = vmatprep.subr.mxu0 0.0
    %1059 = vmatpush1.msra.mxu0 %v963
    %1060 = vmatprep.subr.mxu0 0.0
    %1061 = vmatpush1.msra.mxu0 %v962
    %1062 = vmatprep.subr.mxu0 0.0
    %1063 = vmatpush1.msra.mxu0 %v961
    %1064 = vmatprep.subr.mxu0 0.0
    %1065 = vmatpush1.msra.mxu0 %v960
    %1066 = vmatprep.subr.mxu0 0.0
    %1067 = vmatpush1.msra.mxu0 %v959
    %1068 = vmatprep.subr.mxu0 0.0
    %1069 = vmatpush1.msra.mxu0 %v958
    %1070 = vmatprep.subr.mxu0 0.0
    %1071 = vmatpush1.msra.mxu0 %v957
    %1072 = vmatprep.subr.mxu0 0.0
    %1073 = vmatpush1.msra.mxu0 %v956
    %1074 = vmatprep.subr.mxu0 0.0
    %1075 = vmatpush1.msra.mxu0 %v955
    %1076 = vmatprep.subr.mxu0 0.0
    %1077 = vmatpush1.msra.mxu0 %v954
    %1078 = vmatprep.subr.mxu0 0.0
    %1079 = vmatpush2.msra.mxu0 %v985
    %1080 = vmatprep.subr.mxu0 0.0
    %1081 = vmatpush2.msra.mxu0 %v984
    %1082 = vmatprep.subr.mxu0 0.0
    %1083 = vmatpush2.msra.mxu0 %v983
    %1084 = vmatprep.subr.mxu0 0.0
    %1085 = vmatpush2.msra.mxu0 %v982
    %1086 = vmatprep.subr.mxu0 0.0
    %1087 = vmatpush2.msra.mxu0 %v981
    %1088 = vmatprep.subr.mxu0 0.0
    %1089 = vmatpush2.msra.mxu0 %v980
    %1090 = vmatprep.subr.mxu0 0.0
    %1091 = vmatpush2.msra.mxu0 %v979
    %1092 = vmatprep.subr.mxu0 0.0
    %1093 = vmatpush2.msra.mxu0 %v978
    %1094 = vmatprep.subr.mxu0 0.0
    %1095 = vmatpush2.msra.mxu0 %v977
    %1096 = vmatprep.subr.mxu0 0.0
    %1097 = vmatpush2.msra.mxu0 %v976
    %1098 = vmatprep.subr.mxu0 0.0
    %1099 = vmatpush2.msra.mxu0 %v975
    %1100 = vmatprep.subr.mxu0 0.0
    %1101 = vmatpush2.msra.mxu0 %v974
    %1102 = vmatprep.subr.mxu0 0.0
    %1103 = vmatpush2.msra.mxu0 %v973
    %1104 = vmatprep.subr.mxu0 0.0
    %1105 = vmatpush2.msra.mxu0 %v972
    %1106 = vmatprep.subr.mxu0 0.0
    %1107 = vmatpush2.msra.mxu0 %v971
    %1108 = vmatprep.subr.mxu0 0.0
    %1109 = vmatpush2.msra.mxu0 %v970
    %1110 = vmatprep.mubr.f32.mxu0 %v1045
    %1111 = vmatmul.mubr.f32.gmra.mxu0 %v1044
    %v1112 = vpop.f32.mrf.mxu0
    %v1113 = vadd.f32 0.0, %v1112
    %v1114 = vpop.f32.mrf.mxu0
    %1115 = vdwg.mxu0
    %v1116 = vmul.f32 %v1113, 0.055555556
    %v1117 = vmul.f32 %v1116, %v1116
    %v1119 = vrot.slane %v1117, 7
    %v1121 = vsub.f32 %v1116, %v1119
    %v1122 = vadd.f32 %v1121, 1e-05
    %v1123 = vrsqrt.pop %v1122
    %v1125 = vrot.slane %v1123, 1
    %v1127 = vmul.f32 %v1010, %v1125
    %v1128 = vmul.f32 %v1116, %v1127
    %v1129 = vsub.f32 %v1011, %v1128
    %v1131 = vrot.slane %v1129, 7
    %v1133 = vsel %vm1043, %v1127, %v1131
    %vm1134 = vcmask 523264
    %v1136 = vsel %vm1134, %v1133, 0
    %1138 = vmatprep.subr.mxu0 0.0
    %1139 = vmatpush1.msra.mxu0 0.0
    %1140 = vmatprep.subr.mxu0 0.0
    %1141 = vmatpush1.msra.mxu0 0.0
    %1142 = vmatprep.subr.mxu0 0.0
    %1143 = vmatpush1.msra.mxu0 0.0
    %1144 = vmatprep.subr.mxu0 0.0
    %1145 = vmatpush1.msra.mxu0 0.0
    %1146 = vmatprep.subr.mxu0 0.0
    %1147 = vmatpush1.msra.mxu0 0.0
    %1148 = vmatprep.subr.mxu0 0.0
    %1149 = vmatpush1.msra.mxu0 0.0
    %1150 = vmatprep.subr.mxu0 0.0
    %1151 = vmatpush1.msra.mxu0 0.0
    %1152 = vmatprep.subr.mxu0 0.0
    %1153 = vmatpush1.msra.mxu0 0.0
    %1154 = vmatprep.subr.mxu0 %v1009
    %1155 = vmatpush1.msra.mxu0 %v1008
    %1156 = vmatprep.subr.mxu0 %v1007
    %1157 = vmatpush1.msra.mxu0 %v1006
    %1158 = vmatprep.subr.mxu0 %v1005
    %1159 = vmatpush1.msra.mxu0 %v1004
    %1160 = vmatprep.subr.mxu0 %v1003
    %1161 = vmatpush1.msra.mxu0 %v1002
    %1162 = vmatprep.subr.mxu0 %v1001
    %1163 = vmatpush1.msra.mxu0 %v1000
    %1164 = vmatprep.subr.mxu0 %v999
    %1165 = vmatpush1.msra.mxu0 %v998
    %1166 = vmatprep.subr.mxu0 %v997
    %1167 = vmatpush1.msra.mxu0 %v996
    %1168 = vmatprep.subr.mxu0 %v995
    %1169 = vmatpush1.msra.mxu0 %v994
    %1170 = vmatprep.subr.mxu0 0.0
    %1171 = vmatpush2.msra.mxu0 0.0
    %1172 = vmatprep.subr.mxu0 0.0
    %1173 = vmatpush2.msra.mxu0 0.0
    %1174 = vmatprep.subr.mxu0 0.0
    %1175 = vmatpush2.msra.mxu0 0.0
    %1176 = vmatprep.subr.mxu0 0.0
    %1177 = vmatpush2.msra.mxu0 0.0
    %1178 = vmatprep.subr.mxu0 0.0
    %1179 = vmatpush2.msra.mxu0 0.0
    %1180 = vmatprep.subr.mxu0 0.0
    %1181 = vmatpush2.msra.mxu0 0.0
    %1182 = vmatprep.subr.mxu0 0.0
    %1183 = vmatpush2.msra.mxu0 0.0
    %1184 = vmatprep.subr.mxu0 0.0
    %1185 = vmatpush2.msra.mxu0 0.0
    %1186 = vmatprep.subr.mxu0 0.0
    %1187 = vmatpush2.msra.mxu0 0.0
    %1188 = vmatprep.subr.mxu0 0.0
    %1189 = vmatpush2.msra.mxu0 0.0
    %1190 = vmatprep.subr.mxu0 0.0
    %1191 = vmatpush2.msra.mxu0 0.0
    %1192 = vmatprep.subr.mxu0 0.0
    %1193 = vmatpush2.msra.mxu0 0.0
    %1194 = vmatprep.subr.mxu0 0.0
    %1195 = vmatpush2.msra.mxu0 0.0
    %1196 = vmatprep.subr.mxu0 0.0
    %1197 = vmatpush2.msra.mxu0 0.0
    %1198 = vmatprep.subr.mxu0 0.0
    %1199 = vmatpush2.msra.mxu0 0.0
    %1200 = vmatprep.subr.mxu0 0.0
    %1201 = vmatpush2.msra.mxu0 0.0
    %1202 = vmatprep.mubr.f32.mxu0 0.0
    %1203 = vmatmul.mubr.f32.gmra.mxu0 %v1136
    %v1204 = vpop.f32.mrf.mxu0
    %v1205 = vadd.f32 0.0, %v1204
    %v1206 = vpop.f32.mrf.mxu0
    %v1207 = vadd.f32 0.0, %v1206
    %1208 = vdwg.mxu0
    %v1209 = vlaneseq
    %v1210 = vshrl.u32 %v1209, 7
    %v1211 = vsub.s32 0, %v1210
    %v1212 = vrot.slane %v1205, %v1211
    %v1213 = vlaneseq
    %v1214 = vshrl.u32 %v1213, 7
    %v1215 = vsub.s32 0, %v1214
    %v1216 = vrot.slane %v1207, %v1215
    %v1217 = vmul.f32 %v920, %v1212
    %v1218 = vmul.f32 %v921, %v1216
    %v1219 = vlaneseq
    %v1220 = vshrl.u32 %v1219, 7
    %v1221 = vsub.s32 1, %v1220
    %v1222 = vrot.slane %v1205, %v1221
    %v1223 = vlaneseq
    %v1224 = vshrl.u32 %v1223, 7
    %v1225 = vsub.s32 1, %v1224
    %v1226 = vrot.slane %v1207, %v1225
    %v1227 = vadd.f32 %v1217, %v1222
    %v1228 = vadd.f32 %v1218, %v1226
    %v1229 = vmax.f32 %v1227, 0.0
    %v1230 = vmax.f32 %v1228, 0.0
    %s1231 = smul.u32 4, 32
    %s1232 = smul.u32 %s1231, 8
    %s1233 = sshll.u32 %s1232, 4
    %1234 = dma.done [#allocation5], %s1233
    %v1235 = vpack.c.bf16 %v1229, %v1229
    %v1236 = vpack.c.bf16 %v1230, %v1230
    %v1237 = vld [vmem:[#allocation2] sm:$0xff]
    %v1238 = vld [vmem:[#allocation2 + $0x8] sm:$0xff]
    %v1239 = vld [vmem:[#allocation2 + $0x10] sm:$0xff]
    %v1240 = vld [vmem:[#allocation2 + $0x18] sm:$0xff]
    %v1241 = vld [vmem:[#allocation2 + $0x20] sm:$0xff]
    %v1242 = vld [vmem:[#allocation2 + $0x28] sm:$0xff]
    %v1243 = vld [vmem:[#allocation2 + $0x30] sm:$0xff]
    %v1244 = vld [vmem:[#allocation2 + $0x38] sm:$0xff]
    %v1245 = vld [vmem:[#allocation2 + $0x40] sm:$0xff]
    %v1246 = vld [vmem:[#allocation2 + $0x48] sm:$0xff]
    %v1247 = vld [vmem:[#allocation2 + $0x50] sm:$0xff]
    %v1248 = vld [vmem:[#allocation2 + $0x58] sm:$0xff]
    %v1249 = vld [vmem:[#allocation2 + $0x60] sm:$0xff]
    %v1250 = vld [vmem:[#allocation2 + $0x68] sm:$0xff]
    %v1251 = vld [vmem:[#allocation2 + $0x70] sm:$0xff]
    %v1252 = vld [vmem:[#allocation2 + $0x78] sm:$0xff]
    %v1253 = vld [vmem:[#allocation2 + $0x80] sm:$0xff]
    %v1254 = vld [vmem:[#allocation2 + $0x88] sm:$0xff]
    %v1255 = vld [vmem:[#allocation2 + $0x90] sm:$0xff]
    %v1256 = vld [vmem:[#allocation2 + $0x98] sm:$0xff]
    %v1257 = vld [vmem:[#allocation2 + $0xa0] sm:$0xff]
    %v1258 = vld [vmem:[#allocation2 + $0xa8] sm:$0xff]
    %v1259 = vld [vmem:[#allocation2 + $0xb0] sm:$0xff]
    %v1260 = vld [vmem:[#allocation2 + $0xb8] sm:$0xff]
    %v1261 = vld [vmem:[#allocation2 + $0xc0] sm:$0xff]
    %v1262 = vld [vmem:[#allocation2 + $0xc8] sm:$0xff]
    %v1263 = vld [vmem:[#allocation2 + $0xd0] sm:$0xff]
    %v1264 = vld [vmem:[#allocation2 + $0xd8] sm:$0xff]
    %v1265 = vld [vmem:[#allocation2 + $0xe0] sm:$0xff]
    %v1266 = vld [vmem:[#allocation2 + $0xe8] sm:$0xff]
    %v1267 = vld [vmem:[#allocation2 + $0xf0] sm:$0xff]
    %v1268 = vld [vmem:[#allocation2 + $0xf8] sm:$0xff]
    %v1269 = vld [vmem:[#allocation2 + $0x100] sm:$0xff]
    %v1270 = vld [vmem:[#allocation2 + $0x108] sm:$0xff]
    %v1271 = vld [vmem:[#allocation2 + $0x110] sm:$0xff]
    %v1272 = vld [vmem:[#allocation2 + $0x118] sm:$0xff]
    %v1273 = vld [vmem:[#allocation2 + $0x120] sm:$0xff]
    %v1274 = vld [vmem:[#allocation2 + $0x128] sm:$0xff]
    %v1275 = vld [vmem:[#allocation2 + $0x130] sm:$0xff]
    %v1276 = vld [vmem:[#allocation2 + $0x138] sm:$0xff]
    %v1277 = vld [vmem:[#allocation2 + $0x140] sm:$0xff]
    %v1278 = vld [vmem:[#allocation2 + $0x148] sm:$0xff]
    %v1279 = vld [vmem:[#allocation2 + $0x150] sm:$0xff]
    %v1280 = vld [vmem:[#allocation2 + $0x158] sm:$0xff]
    %v1281 = vld [vmem:[#allocation2 + $0x160] sm:$0xff]
    %v1282 = vld [vmem:[#allocation2 + $0x168] sm:$0xff]
    %v1283 = vld [vmem:[#allocation2 + $0x170] sm:$0xff]
    %v1284 = vld [vmem:[#allocation2 + $0x178] sm:$0xff]
    %v1285 = vld [vmem:[#allocation2 + $0x180] sm:$0xff]
    %v1286 = vld [vmem:[#allocation2 + $0x188] sm:$0xff]
    %v1287 = vld [vmem:[#allocation2 + $0x190] sm:$0xff]
    %v1288 = vld [vmem:[#allocation2 + $0x198] sm:$0xff]
    %v1289 = vld [vmem:[#allocation2 + $0x1a0] sm:$0xff]
    %v1290 = vld [vmem:[#allocation2 + $0x1a8] sm:$0xff]
    %v1291 = vld [vmem:[#allocation2 + $0x1b0] sm:$0xff]
    %v1292 = vld [vmem:[#allocation2 + $0x1b8] sm:$0xff]
    %v1293 = vld [vmem:[#allocation2 + $0x1c0] sm:$0xff]
    %v1294 = vld [vmem:[#allocation2 + $0x1c8] sm:$0xff]
    %v1295 = vld [vmem:[#allocation2 + $0x1d0] sm:$0xff]
    %v1296 = vld [vmem:[#allocation2 + $0x1d8] sm:$0xff]
    %v1297 = vld [vmem:[#allocation2 + $0x1e0] sm:$0xff]
    %v1298 = vld [vmem:[#allocation2 + $0x1e8] sm:$0xff]
    %v1299 = vld [vmem:[#allocation2 + $0x1f0] sm:$0xff]
    %v1300 = vld [vmem:[#allocation2 + $0x1f8] sm:$0xff]
    %v1301 = vld [vmem:[#allocation2 + $0x200] sm:$0xff]
    %v1302 = vld [vmem:[#allocation2 + $0x208] sm:$0xff]
    %v1303 = vld [vmem:[#allocation2 + $0x210] sm:$0xff]
    %v1304 = vld [vmem:[#allocation2 + $0x218] sm:$0xff]
    %v1305 = vld [vmem:[#allocation2 + $0x220] sm:$0xff]
    %v1306 = vld [vmem:[#allocation2 + $0x228] sm:$0xff]
    %v1307 = vld [vmem:[#allocation2 + $0x230] sm:$0xff]
    %v1308 = vld [vmem:[#allocation2 + $0x238] sm:$0xff]
    %v1309 = vld [vmem:[#allocation2 + $0x240] sm:$0xff]
    %v1310 = vld [vmem:[#allocation2 + $0x248] sm:$0xff]
    %v1311 = vld [vmem:[#allocation2 + $0x250] sm:$0xff]
    %v1312 = vld [vmem:[#allocation2 + $0x258] sm:$0xff]
    %v1313 = vld [vmem:[#allocation2 + $0x260] sm:$0xff]
    %v1314 = vld [vmem:[#allocation2 + $0x268] sm:$0xff]
    %v1315 = vld [vmem:[#allocation2 + $0x270] sm:$0xff]
    %v1316 = vld [vmem:[#allocation2 + $0x278] sm:$0xff]
    %v1317 = vld [vmem:[#allocation2 + $0x280] sm:$0xff]
    %v1318 = vld [vmem:[#allocation2 + $0x288] sm:$0xff]
    %v1319 = vld [vmem:[#allocation2 + $0x290] sm:$0xff]
    %v1320 = vld [vmem:[#allocation2 + $0x298] sm:$0xff]
    %v1321 = vld [vmem:[#allocation2 + $0x2a0] sm:$0xff]
    %v1322 = vld [vmem:[#allocation2 + $0x2a8] sm:$0xff]
    %v1323 = vld [vmem:[#allocation2 + $0x2b0] sm:$0xff]
    %v1324 = vld [vmem:[#allocation2 + $0x2b8] sm:$0xff]
    %v1325 = vld [vmem:[#allocation2 + $0x2c0] sm:$0xff]
    %v1326 = vld [vmem:[#allocation2 + $0x2c8] sm:$0xff]
    %v1327 = vld [vmem:[#allocation2 + $0x2d0] sm:$0xff]
    %v1328 = vld [vmem:[#allocation2 + $0x2d8] sm:$0xff]
    %v1329 = vld [vmem:[#allocation2 + $0x2e0] sm:$0xff]
    %v1330 = vld [vmem:[#allocation2 + $0x2e8] sm:$0xff]
    %v1331 = vld [vmem:[#allocation2 + $0x2f0] sm:$0xff]
    %v1332 = vld [vmem:[#allocation2 + $0x2f8] sm:$0xff]
    %v1333 = vld [vmem:[#allocation2 + $0x300] sm:$0xff]
    %v1334 = vld [vmem:[#allocation2 + $0x308] sm:$0xff]
    %v1335 = vld [vmem:[#allocation2 + $0x310] sm:$0xff]
    %v1336 = vld [vmem:[#allocation2 + $0x318] sm:$0xff]
    %v1337 = vld [vmem:[#allocation2 + $0x320] sm:$0xff]
    %v1338 = vld [vmem:[#allocation2 + $0x328] sm:$0xff]
    %v1339 = vld [vmem:[#allocation2 + $0x330] sm:$0xff]
    %v1340 = vld [vmem:[#allocation2 + $0x338] sm:$0xff]
    %v1341 = vld [vmem:[#allocation2 + $0x340] sm:$0xff]
    %v1342 = vld [vmem:[#allocation2 + $0x348] sm:$0xff]
    %v1343 = vld [vmem:[#allocation2 + $0x350] sm:$0xff]
    %v1344 = vld [vmem:[#allocation2 + $0x358] sm:$0xff]
    %v1345 = vld [vmem:[#allocation2 + $0x360] sm:$0xff]
    %v1346 = vld [vmem:[#allocation2 + $0x368] sm:$0xff]
    %v1347 = vld [vmem:[#allocation2 + $0x370] sm:$0xff]
    %v1348 = vld [vmem:[#allocation2 + $0x378] sm:$0xff]
    %v1349 = vld [vmem:[#allocation2 + $0x380] sm:$0xff]
    %v1350 = vld [vmem:[#allocation2 + $0x388] sm:$0xff]
    %v1351 = vld [vmem:[#allocation2 + $0x390] sm:$0xff]
    %v1352 = vld [vmem:[#allocation2 + $0x398] sm:$0xff]
    %v1353 = vld [vmem:[#allocation2 + $0x3a0] sm:$0xff]
    %v1354 = vld [vmem:[#allocation2 + $0x3a8] sm:$0xff]
    %v1355 = vld [vmem:[#allocation2 + $0x3b0] sm:$0xff]
    %v1356 = vld [vmem:[#allocation2 + $0x3b8] sm:$0xff]
    %v1357 = vld [vmem:[#allocation2 + $0x3c0] sm:$0xff]
    %v1358 = vld [vmem:[#allocation2 + $0x3c8] sm:$0xff]
    %v1359 = vld [vmem:[#allocation2 + $0x3d0] sm:$0xff]
    %v1360 = vld [vmem:[#allocation2 + $0x3d8] sm:$0xff]
    %v1361 = vld [vmem:[#allocation2 + $0x3e0] sm:$0xff]
    %v1362 = vld [vmem:[#allocation2 + $0x3e8] sm:$0xff]
    %v1363 = vld [vmem:[#allocation2 + $0x3f0] sm:$0xff]
    %v1364 = vld [vmem:[#allocation2 + $0x3f8] sm:$0xff]
    %v1493 = vunpack.c.l.b16 %v1237
    %v1494 = vunpack.c.h.b16 %v1237
    %v1495 = vunpack.c.l.b16 %v1238
    %v1496 = vunpack.c.h.b16 %v1238
    %v1497 = vunpack.c.l.b16 %v1239
    %v1498 = vunpack.c.h.b16 %v1239
    %v1499 = vunpack.c.l.b16 %v1240
    %v1500 = vunpack.c.h.b16 %v1240
    %v1501 = vunpack.c.l.b16 %v1241
    %v1502 = vunpack.c.h.b16 %v1241
    %v1503 = vunpack.c.l.b16 %v1242
    %v1504 = vunpack.c.h.b16 %v1242
    %v1505 = vunpack.c.l.b16 %v1243
    %v1506 = vunpack.c.h.b16 %v1243
    %v1507 = vunpack.c.l.b16 %v1244
    %v1508 = vunpack.c.h.b16 %v1244
    %v1509 = vunpack.c.l.b16 %v1245
    %v1510 = vunpack.c.h.b16 %v1245
    %v1511 = vunpack.c.l.b16 %v1246
    %v1512 = vunpack.c.h.b16 %v1246
    %v1513 = vunpack.c.l.b16 %v1247
    %v1514 = vunpack.c.h.b16 %v1247
    %v1515 = vunpack.c.l.b16 %v1248
    %v1516 = vunpack.c.h.b16 %v1248
    %v1517 = vunpack.c.l.b16 %v1249
    %v1518 = vunpack.c.h.b16 %v1249
    %v1519 = vunpack.c.l.b16 %v1250
    %v1520 = vunpack.c.h.b16 %v1250
    %v1521 = vunpack.c.l.b16 %v1251
    %v1522 = vunpack.c.h.b16 %v1251
    %v1523 = vunpack.c.l.b16 %v1252
    %v1524 = vunpack.c.h.b16 %v1252
    %v1525 = vunpack.c.l.b16 %v1253
    %v1526 = vunpack.c.h.b16 %v1253
    %v1527 = vunpack.c.l.b16 %v1254
    %v1528 = vunpack.c.h.b16 %v1254
    %v1529 = vunpack.c.l.b16 %v1255
    %v1530 = vunpack.c.h.b16 %v1255
    %v1531 = vunpack.c.l.b16 %v1256
    %v1532 = vunpack.c.h.b16 %v1256
    %v1533 = vunpack.c.l.b16 %v1257
    %v1534 = vunpack.c.h.b16 %v1257
    %v1535 = vunpack.c.l.b16 %v1258
    %v1536 = vunpack.c.h.b16 %v1258
    %v1537 = vunpack.c.l.b16 %v1259
    %v1538 = vunpack.c.h.b16 %v1259
    %v1539 = vunpack.c.l.b16 %v1260
    %v1540 = vunpack.c.h.b16 %v1260
    %v1541 = vunpack.c.l.b16 %v1261
    %v1542 = vunpack.c.h.b16 %v1261
    %v1543 = vunpack.c.l.b16 %v1262
    %v1544 = vunpack.c.h.b16 %v1262
    %v1545 = vunpack.c.l.b16 %v1263
    %v1546 = vunpack.c.h.b16 %v1263
    %v1547 = vunpack.c.l.b16 %v1264
    %v1548 = vunpack.c.h.b16 %v1264
    %v1549 = vunpack.c.l.b16 %v1265
    %v1550 = vunpack.c.h.b16 %v1265
    %v1551 = vunpack.c.l.b16 %v1266
    %v1552 = vunpack.c.h.b16 %v1266
    %v1553 = vunpack.c.l.b16 %v1267
    %v1554 = vunpack.c.h.b16 %v1267
    %v1555 = vunpack.c.l.b16 %v1268
    %v1556 = vunpack.c.h.b16 %v1268
    %v1557 = vunpack.c.l.b16 %v1269
    %v1558 = vunpack.c.h.b16 %v1269
    %v1559 = vunpack.c.l.b16 %v1270
    %v1560 = vunpack.c.h.b16 %v1270
    %v1561 = vunpack.c.l.b16 %v1271
    %v1562 = vunpack.c.h.b16 %v1271
    %v1563 = vunpack.c.l.b16 %v1272
    %v1564 = vunpack.c.h.b16 %v1272
    %v1565 = vunpack.c.l.b16 %v1273
    %v1566 = vunpack.c.h.b16 %v1273
    %v1567 = vunpack.c.l.b16 %v1274
    %v1568 = vunpack.c.h.b16 %v1274
    %v1569 = vunpack.c.l.b16 %v1275
    %v1570 = vunpack.c.h.b16 %v1275
    %v1571 = vunpack.c.l.b16 %v1276
    %v1572 = vunpack.c.h.b16 %v1276
    %v1573 = vunpack.c.l.b16 %v1277
    %v1574 = vunpack.c.h.b16 %v1277
    %v1575 = vunpack.c.l.b16 %v1278
    %v1576 = vunpack.c.h.b16 %v1278
    %v1577 = vunpack.c.l.b16 %v1279
    %v1578 = vunpack.c.h.b16 %v1279
    %v1579 = vunpack.c.l.b16 %v1280
    %v1580 = vunpack.c.h.b16 %v1280
    %v1581 = vunpack.c.l.b16 %v1281
    %v1582 = vunpack.c.h.b16 %v1281
    %v1583 = vunpack.c.l.b16 %v1282
    %v1584 = vunpack.c.h.b16 %v1282
    %v1585 = vunpack.c.l.b16 %v1283
    %v1586 = vunpack.c.h.b16 %v1283
    %v1587 = vunpack.c.l.b16 %v1284
    %v1588 = vunpack.c.h.b16 %v1284
    %v1589 = vunpack.c.l.b16 %v1285
    %v1590 = vunpack.c.h.b16 %v1285
    %v1591 = vunpack.c.l.b16 %v1286
    %v1592 = vunpack.c.h.b16 %v1286
    %v1593 = vunpack.c.l.b16 %v1287
    %v1594 = vunpack.c.h.b16 %v1287
    %v1595 = vunpack.c.l.b16 %v1288
    %v1596 = vunpack.c.h.b16 %v1288
    %v1597 = vunpack.c.l.b16 %v1289
    %v1598 = vunpack.c.h.b16 %v1289
    %v1599 = vunpack.c.l.b16 %v1290
    %v1600 = vunpack.c.h.b16 %v1290
    %v1601 = vunpack.c.l.b16 %v1291
    %v1602 = vunpack.c.h.b16 %v1291
    %v1603 = vunpack.c.l.b16 %v1292
    %v1604 = vunpack.c.h.b16 %v1292
    %v1605 = vunpack.c.l.b16 %v1293
    %v1606 = vunpack.c.h.b16 %v1293
    %v1607 = vunpack.c.l.b16 %v1294
    %v1608 = vunpack.c.h.b16 %v1294
    %v1609 = vunpack.c.l.b16 %v1295
    %v1610 = vunpack.c.h.b16 %v1295
    %v1611 = vunpack.c.l.b16 %v1296
    %v1612 = vunpack.c.h.b16 %v1296
    %v1613 = vunpack.c.l.b16 %v1297
    %v1614 = vunpack.c.h.b16 %v1297
    %v1615 = vunpack.c.l.b16 %v1298
    %v1616 = vunpack.c.h.b16 %v1298
    %v1617 = vunpack.c.l.b16 %v1299
    %v1618 = vunpack.c.h.b16 %v1299
    %v1619 = vunpack.c.l.b16 %v1300
    %v1620 = vunpack.c.h.b16 %v1300
    %v1621 = vunpack.c.l.b16 %v1301
    %v1622 = vunpack.c.h.b16 %v1301
    %v1623 = vunpack.c.l.b16 %v1302
    %v1624 = vunpack.c.h.b16 %v1302
    %v1625 = vunpack.c.l.b16 %v1303
    %v1626 = vunpack.c.h.b16 %v1303
    %v1627 = vunpack.c.l.b16 %v1304
    %v1628 = vunpack.c.h.b16 %v1304
    %v1629 = vunpack.c.l.b16 %v1305
    %v1630 = vunpack.c.h.b16 %v1305
    %v1631 = vunpack.c.l.b16 %v1306
    %v1632 = vunpack.c.h.b16 %v1306
    %v1633 = vunpack.c.l.b16 %v1307
    %v1634 = vunpack.c.h.b16 %v1307
    %v1635 = vunpack.c.l.b16 %v1308
    %v1636 = vunpack.c.h.b16 %v1308
    %v1637 = vunpack.c.l.b16 %v1309
    %v1638 = vunpack.c.h.b16 %v1309
    %v1639 = vunpack.c.l.b16 %v1310
    %v1640 = vunpack.c.h.b16 %v1310
    %v1641 = vunpack.c.l.b16 %v1311
    %v1642 = vunpack.c.h.b16 %v1311
    %v1643 = vunpack.c.l.b16 %v1312
    %v1644 = vunpack.c.h.b16 %v1312
    %v1645 = vunpack.c.l.b16 %v1313
    %v1646 = vunpack.c.h.b16 %v1313
    %v1647 = vunpack.c.l.b16 %v1314
    %v1648 = vunpack.c.h.b16 %v1314
    %v1649 = vunpack.c.l.b16 %v1315
    %v1650 = vunpack.c.h.b16 %v1315
    %v1651 = vunpack.c.l.b16 %v1316
    %v1652 = vunpack.c.h.b16 %v1316
    %v1653 = vunpack.c.l.b16 %v1317
    %v1654 = vunpack.c.h.b16 %v1317
    %v1655 = vunpack.c.l.b16 %v1318
    %v1656 = vunpack.c.h.b16 %v1318
    %v1657 = vunpack.c.l.b16 %v1319
    %v1658 = vunpack.c.h.b16 %v1319
    %v1659 = vunpack.c.l.b16 %v1320
    %v1660 = vunpack.c.h.b16 %v1320
    %v1661 = vunpack.c.l.b16 %v1321
    %v1662 = vunpack.c.h.b16 %v1321
    %v1663 = vunpack.c.l.b16 %v1322
    %v1664 = vunpack.c.h.b16 %v1322
    %v1665 = vunpack.c.l.b16 %v1323
    %v1666 = vunpack.c.h.b16 %v1323
    %v1667 = vunpack.c.l.b16 %v1324
    %v1668 = vunpack.c.h.b16 %v1324
    %v1669 = vunpack.c.l.b16 %v1325
    %v1670 = vunpack.c.h.b16 %v1325
    %v1671 = vunpack.c.l.b16 %v1326
    %v1672 = vunpack.c.h.b16 %v1326
    %v1673 = vunpack.c.l.b16 %v1327
    %v1674 = vunpack.c.h.b16 %v1327
    %v1675 = vunpack.c.l.b16 %v1328
    %v1676 = vunpack.c.h.b16 %v1328
    %v1677 = vunpack.c.l.b16 %v1329
    %v1678 = vunpack.c.h.b16 %v1329
    %v1679 = vunpack.c.l.b16 %v1330
    %v1680 = vunpack.c.h.b16 %v1330
    %v1681 = vunpack.c.l.b16 %v1331
    %v1682 = vunpack.c.h.b16 %v1331
    %v1683 = vunpack.c.l.b16 %v1332
    %v1684 = vunpack.c.h.b16 %v1332
    %v1685 = vunpack.c.l.b16 %v1333
    %v1686 = vunpack.c.h.b16 %v1333
    %v1687 = vunpack.c.l.b16 %v1334
    %v1688 = vunpack.c.h.b16 %v1334
    %v1689 = vunpack.c.l.b16 %v1335
    %v1690 = vunpack.c.h.b16 %v1335
    %v1691 = vunpack.c.l.b16 %v1336
    %v1692 = vunpack.c.h.b16 %v1336
    %v1693 = vunpack.c.l.b16 %v1337
    %v1694 = vunpack.c.h.b16 %v1337
    %v1695 = vunpack.c.l.b16 %v1338
    %v1696 = vunpack.c.h.b16 %v1338
    %v1697 = vunpack.c.l.b16 %v1339
    %v1698 = vunpack.c.h.b16 %v1339
    %v1699 = vunpack.c.l.b16 %v1340
    %v1700 = vunpack.c.h.b16 %v1340
    %v1701 = vunpack.c.l.b16 %v1341
    %v1702 = vunpack.c.h.b16 %v1341
    %v1703 = vunpack.c.l.b16 %v1342
    %v1704 = vunpack.c.h.b16 %v1342
    %v1705 = vunpack.c.l.b16 %v1343
    %v1706 = vunpack.c.h.b16 %v1343
    %v1707 = vunpack.c.l.b16 %v1344
    %v1708 = vunpack.c.h.b16 %v1344
    %v1709 = vunpack.c.l.b16 %v1345
    %v1710 = vunpack.c.h.b16 %v1345
    %v1711 = vunpack.c.l.b16 %v1346
    %v1712 = vunpack.c.h.b16 %v1346
    %v1713 = vunpack.c.l.b16 %v1347
    %v1714 = vunpack.c.h.b16 %v1347
    %v1715 = vunpack.c.l.b16 %v1348
    %v1716 = vunpack.c.h.b16 %v1348
    %v1717 = vunpack.c.l.b16 %v1349
    %v1718 = vunpack.c.h.b16 %v1349
    %v1719 = vunpack.c.l.b16 %v1350
    %v1720 = vunpack.c.h.b16 %v1350
    %v1721 = vunpack.c.l.b16 %v1351
    %v1722 = vunpack.c.h.b16 %v1351
    %v1723 = vunpack.c.l.b16 %v1352
    %v1724 = vunpack.c.h.b16 %v1352
    %v1725 = vunpack.c.l.b16 %v1353
    %v1726 = vunpack.c.h.b16 %v1353
    %v1727 = vunpack.c.l.b16 %v1354
    %v1728 = vunpack.c.h.b16 %v1354
    %v1729 = vunpack.c.l.b16 %v1355
    %v1730 = vunpack.c.h.b16 %v1355
    %v1731 = vunpack.c.l.b16 %v1356
    %v1732 = vunpack.c.h.b16 %v1356
    %v1733 = vunpack.c.l.b16 %v1357
    %v1734 = vunpack.c.h.b16 %v1357
    %v1735 = vunpack.c.l.b16 %v1358
    %v1736 = vunpack.c.h.b16 %v1358
    %v1737 = vunpack.c.l.b16 %v1359
    %v1738 = vunpack.c.h.b16 %v1359
    %v1739 = vunpack.c.l.b16 %v1360
    %v1740 = vunpack.c.h.b16 %v1360
    %v1741 = vunpack.c.l.b16 %v1361
    %v1742 = vunpack.c.h.b16 %v1361
    %v1743 = vunpack.c.l.b16 %v1362
    %v1744 = vunpack.c.h.b16 %v1362
    %v1745 = vunpack.c.l.b16 %v1363
    %v1746 = vunpack.c.h.b16 %v1363
    %v1747 = vunpack.c.l.b16 %v1364
    %v1748 = vunpack.c.h.b16 %v1364
    %v1749 = vpack.c.b16 %v1501, %v1493
    %v1750 = vpack.c.b16 %v1502, %v1494
    %v1751 = vpack.c.b16 %v1503, %v1495
    %v1752 = vpack.c.b16 %v1504, %v1496
    %v1753 = vpack.c.b16 %v1505, %v1497
    %v1754 = vpack.c.b16 %v1506, %v1498
    %v1755 = vpack.c.b16 %v1507, %v1499
    %v1756 = vpack.c.b16 %v1508, %v1500
    %v1757 = vpack.c.b16 %v1517, %v1509
    %v1758 = vpack.c.b16 %v1518, %v1510
    %v1759 = vpack.c.b16 %v1519, %v1511
    %v1760 = vpack.c.b16 %v1520, %v1512
    %v1761 = vpack.c.b16 %v1521, %v1513
    %v1762 = vpack.c.b16 %v1522, %v1514
    %v1763 = vpack.c.b16 %v1523, %v1515
    %v1764 = vpack.c.b16 %v1524, %v1516
    %v1765 = vpack.c.b16 %v1533, %v1525
    %v1766 = vpack.c.b16 %v1534, %v1526
    %v1767 = vpack.c.b16 %v1535, %v1527
    %v1768 = vpack.c.b16 %v1536, %v1528
    %v1769 = vpack.c.b16 %v1537, %v1529
    %v1770 = vpack.c.b16 %v1538, %v1530
    %v1771 = vpack.c.b16 %v1539, %v1531
    %v1772 = vpack.c.b16 %v1540, %v1532
    %v1773 = vpack.c.b16 %v1549, %v1541
    %v1774 = vpack.c.b16 %v1550, %v1542
    %v1775 = vpack.c.b16 %v1551, %v1543
    %v1776 = vpack.c.b16 %v1552, %v1544
    %v1777 = vpack.c.b16 %v1553, %v1545
    %v1778 = vpack.c.b16 %v1554, %v1546
    %v1779 = vpack.c.b16 %v1555, %v1547
    %v1780 = vpack.c.b16 %v1556, %v1548
    %v1781 = vpack.c.b16 %v1565, %v1557
    %v1782 = vpack.c.b16 %v1566, %v1558
    %v1783 = vpack.c.b16 %v1567, %v1559
    %v1784 = vpack.c.b16 %v1568, %v1560
    %v1785 = vpack.c.b16 %v1569, %v1561
    %v1786 = vpack.c.b16 %v1570, %v1562
    %v1787 = vpack.c.b16 %v1571, %v1563
    %v1788 = vpack.c.b16 %v1572, %v1564
    %v1789 = vpack.c.b16 %v1581, %v1573
    %v1790 = vpack.c.b16 %v1582, %v1574
    %v1791 = vpack.c.b16 %v1583, %v1575
    %v1792 = vpack.c.b16 %v1584, %v1576
    %v1793 = vpack.c.b16 %v1585, %v1577
    %v1794 = vpack.c.b16 %v1586, %v1578
    %v1795 = vpack.c.b16 %v1587, %v1579
    %v1796 = vpack.c.b16 %v1588, %v1580
    %v1797 = vpack.c.b16 %v1597, %v1589
    %v1798 = vpack.c.b16 %v1598, %v1590
    %v1799 = vpack.c.b16 %v1599, %v1591
    %v1800 = vpack.c.b16 %v1600, %v1592
    %v1801 = vpack.c.b16 %v1601, %v1593
    %v1802 = vpack.c.b16 %v1602, %v1594
    %v1803 = vpack.c.b16 %v1603, %v1595
    %v1804 = vpack.c.b16 %v1604, %v1596
    %v1805 = vpack.c.b16 %v1613, %v1605
    %v1806 = vpack.c.b16 %v1614, %v1606
    %v1807 = vpack.c.b16 %v1615, %v1607
    %v1808 = vpack.c.b16 %v1616, %v1608
    %v1809 = vpack.c.b16 %v1617, %v1609
    %v1810 = vpack.c.b16 %v1618, %v1610
    %v1811 = vpack.c.b16 %v1619, %v1611
    %v1812 = vpack.c.b16 %v1620, %v1612
    %v1813 = vpack.c.b16 %v1629, %v1621
    %v1814 = vpack.c.b16 %v1630, %v1622
    %v1815 = vpack.c.b16 %v1631, %v1623
    %v1816 = vpack.c.b16 %v1632, %v1624
    %v1817 = vpack.c.b16 %v1633, %v1625
    %v1818 = vpack.c.b16 %v1634, %v1626
    %v1819 = vpack.c.b16 %v1635, %v1627
    %v1820 = vpack.c.b16 %v1636, %v1628
    %v1821 = vpack.c.b16 %v1645, %v1637
    %v1822 = vpack.c.b16 %v1646, %v1638
    %v1823 = vpack.c.b16 %v1647, %v1639
    %v1824 = vpack.c.b16 %v1648, %v1640
    %v1825 = vpack.c.b16 %v1649, %v1641
    %v1826 = vpack.c.b16 %v1650, %v1642
    %v1827 = vpack.c.b16 %v1651, %v1643
    %v1828 = vpack.c.b16 %v1652, %v1644
    %v1829 = vpack.c.b16 %v1661, %v1653
    %v1830 = vpack.c.b16 %v1662, %v1654
    %v1831 = vpack.c.b16 %v1663, %v1655
    %v1832 = vpack.c.b16 %v1664, %v1656
    %v1833 = vpack.c.b16 %v1665, %v1657
    %v1834 = vpack.c.b16 %v1666, %v1658
    %v1835 = vpack.c.b16 %v1667, %v1659
    %v1836 = vpack.c.b16 %v1668, %v1660
    %v1837 = vpack.c.b16 %v1677, %v1669
    %v1838 = vpack.c.b16 %v1678, %v1670
    %v1839 = vpack.c.b16 %v1679, %v1671
    %v1840 = vpack.c.b16 %v1680, %v1672
    %v1841 = vpack.c.b16 %v1681, %v1673
    %v1842 = vpack.c.b16 %v1682, %v1674
    %v1843 = vpack.c.b16 %v1683, %v1675
    %v1844 = vpack.c.b16 %v1684, %v1676
    %v1845 = vpack.c.b16 %v1693, %v1685
    %v1846 = vpack.c.b16 %v1694, %v1686
    %v1847 = vpack.c.b16 %v1695, %v1687
    %v1848 = vpack.c.b16 %v1696, %v1688
    %v1849 = vpack.c.b16 %v1697, %v1689
    %v1850 = vpack.c.b16 %v1698, %v1690
    %v1851 = vpack.c.b16 %v1699, %v1691
    %v1852 = vpack.c.b16 %v1700, %v1692
    %v1853 = vpack.c.b16 %v1709, %v1701
    %v1854 = vpack.c.b16 %v1710, %v1702
    %v1855 = vpack.c.b16 %v1711, %v1703
    %v1856 = vpack.c.b16 %v1712, %v1704
    %v1857 = vpack.c.b16 %v1713, %v1705
    %v1858 = vpack.c.b16 %v1714, %v1706
    %v1859 = vpack.c.b16 %v1715, %v1707
    %v1860 = vpack.c.b16 %v1716, %v1708
    %v1861 = vpack.c.b16 %v1725, %v1717
    %v1862 = vpack.c.b16 %v1726, %v1718
    %v1863 = vpack.c.b16 %v1727, %v1719
    %v1864 = vpack.c.b16 %v1728, %v1720
    %v1865 = vpack.c.b16 %v1729, %v1721
    %v1866 = vpack.c.b16 %v1730, %v1722
    %v1867 = vpack.c.b16 %v1731, %v1723
    %v1868 = vpack.c.b16 %v1732, %v1724
    %v1869 = vpack.c.b16 %v1741, %v1733
    %v1870 = vpack.c.b16 %v1742, %v1734
    %v1871 = vpack.c.b16 %v1743, %v1735
    %v1872 = vpack.c.b16 %v1744, %v1736
    %v1873 = vpack.c.b16 %v1745, %v1737
    %v1874 = vpack.c.b16 %v1746, %v1738
    %v1875 = vpack.c.b16 %v1747, %v1739
    %v1876 = vpack.c.b16 %v1748, %v1740
    %2005 = vmatprep.subr.bf16.mxu0 %v1806
    %2006 = vmatpush1.bf16.msra.mxu0 %v1805
    %2007 = vmatprep.subr.bf16.mxu0 %v1798
    %2008 = vmatpush1.bf16.msra.mxu0 %v1797
    %2009 = vmatprep.subr.bf16.mxu0 %v1790
    %2010 = vmatpush1.bf16.msra.mxu0 %v1789
    %2011 = vmatprep.subr.bf16.mxu0 %v1782
    %2012 = vmatpush1.bf16.msra.mxu0 %v1781
    %2013 = vmatprep.subr.bf16.mxu0 %v1774
    %2014 = vmatpush1.bf16.msra.mxu0 %v1773
    %2015 = vmatprep.subr.bf16.mxu0 %v1766
    %2016 = vmatpush1.bf16.msra.mxu0 %v1765
    %2017 = vmatprep.subr.bf16.mxu0 %v1758
    %2018 = vmatpush1.bf16.msra.mxu0 %v1757
    %2019 = vmatprep.subr.bf16.mxu0 %v1750
    %2020 = vmatpush1.bf16.msra.mxu0 %v1749
    %2021 = vmatprep.subr.bf16.mxu0 %v1870
    %2022 = vmatpush2.bf16.msra.mxu0 %v1869
    %2023 = vmatprep.subr.bf16.mxu0 %v1862
    %2024 = vmatpush2.bf16.msra.mxu0 %v1861
    %2025 = vmatprep.subr.bf16.mxu0 %v1854
    %2026 = vmatpush2.bf16.msra.mxu0 %v1853
    %2027 = vmatprep.subr.bf16.mxu0 %v1846
    %2028 = vmatpush2.bf16.msra.mxu0 %v1845
    %2029 = vmatprep.subr.bf16.mxu0 %v1838
    %2030 = vmatpush2.bf16.msra.mxu0 %v1837
    %2031 = vmatprep.subr.bf16.mxu0 %v1830
    %2032 = vmatpush2.bf16.msra.mxu0 %v1829
    %2033 = vmatprep.subr.bf16.mxu0 %v1822
    %2034 = vmatpush2.bf16.msra.mxu0 %v1821
    %2035 = vmatprep.subr.bf16.mxu0 %v1814
    %2036 = vmatpush2.bf16.msra.mxu0 %v1813
    %2037 = vmatprep.mubr.bf16.mxu0 %v1236
    %2038 = vmatmul.mubr.bf16.gmra.mxu0 %v1235
    %v2039 = vpop.f32.mrf.mxu0
    %v2040 = vadd.f32 0.0, %v2039
    %v2041 = vpop.f32.mrf.mxu0
    %v2042 = vadd.f32 0.0, %v2041
    %v2043 = vpop.f32.mrf.mxu0
    %v2044 = vpop.f32.mrf.mxu0
    %2045 = vdwg.mxu0
    %2046 = vmatprep.subr.bf16.mxu0 %v1808
    %2047 = vmatpush1.bf16.msra.mxu0 %v1807
    %2048 = vmatprep.subr.bf16.mxu0 %v1800
    %2049 = vmatpush1.bf16.msra.mxu0 %v1799
    %2050 = vmatprep.subr.bf16.mxu0 %v1792
    %2051 = vmatpush1.bf16.msra.mxu0 %v1791
    %2052 = vmatprep.subr.bf16.mxu0 %v1784
    %2053 = vmatpush1.bf16.msra.mxu0 %v1783
    %2054 = vmatprep.subr.bf16.mxu0 %v1776
    %2055 = vmatpush1.bf16.msra.mxu0 %v1775
    %2056 = vmatprep.subr.bf16.mxu0 %v1768
    %2057 = vmatpush1.bf16.msra.mxu0 %v1767
    %2058 = vmatprep.subr.bf16.mxu0 %v1760
    %2059 = vmatpush1.bf16.msra.mxu0 %v1759
    %2060 = vmatprep.subr.bf16.mxu0 %v1752
    %2061 = vmatpush1.bf16.msra.mxu0 %v1751
    %2062 = vmatprep.subr.bf16.mxu0 %v1872
    %2063 = vmatpush2.bf16.msra.mxu0 %v1871
    %2064 = vmatprep.subr.bf16.mxu0 %v1864
    %2065 = vmatpush2.bf16.msra.mxu0 %v1863
    %2066 = vmatprep.subr.bf16.mxu0 %v1856
    %2067 = vmatpush2.bf16.msra.mxu0 %v1855
    %2068 = vmatprep.subr.bf16.mxu0 %v1848
    %2069 = vmatpush2.bf16.msra.mxu0 %v1847
    %2070 = vmatprep.subr.bf16.mxu0 %v1840
    %2071 = vmatpush2.bf16.msra.mxu0 %v1839
    %2072 = vmatprep.subr.bf16.mxu0 %v1832
    %2073 = vmatpush2.bf16.msra.mxu0 %v1831
    %2074 = vmatprep.subr.bf16.mxu0 %v1824
    %2075 = vmatpush2.bf16.msra.mxu0 %v1823
    %2076 = vmatprep.subr.bf16.mxu0 %v1816
    %2077 = vmatpush2.bf16.msra.mxu0 %v1815
    %2078 = vmatprep.mubr.bf16.mxu0 %v1236
    %2079 = vmatmul.mubr.bf16.gmra.mxu0 %v1235
    %v2080 = vpop.f32.mrf.mxu0
    %v2081 = vadd.f32 0.0, %v2080
    %v2082 = vpop.f32.mrf.mxu0
    %v2083 = vadd.f32 0.0, %v2082
    %v2084 = vpop.f32.mrf.mxu0
    %v2085 = vpop.f32.mrf.mxu0
    %2086 = vdwg.mxu0
    %2087 = vmatprep.subr.bf16.mxu0 %v1810
    %2088 = vmatpush1.bf16.msra.mxu0 %v1809
    %2089 = vmatprep.subr.bf16.mxu0 %v1802
    %2090 = vmatpush1.bf16.msra.mxu0 %v1801
    %2091 = vmatprep.subr.bf16.mxu0 %v1794
    %2092 = vmatpush1.bf16.msra.mxu0 %v1793
    %2093 = vmatprep.subr.bf16.mxu0 %v1786
    %2094 = vmatpush1.bf16.msra.mxu0 %v1785
    %2095 = vmatprep.subr.bf16.mxu0 %v1778
    %2096 = vmatpush1.bf16.msra.mxu0 %v1777
    %2097 = vmatprep.subr.bf16.mxu0 %v1770
    %2098 = vmatpush1.bf16.msra.mxu0 %v1769
    %2099 = vmatprep.subr.bf16.mxu0 %v1762
    %2100 = vmatpush1.bf16.msra.mxu0 %v1761
    %2101 = vmatprep.subr.bf16.mxu0 %v1754
    %2102 = vmatpush1.bf16.msra.mxu0 %v1753
    %2103 = vmatprep.subr.bf16.mxu0 %v1874
    %2104 = vmatpush2.bf16.msra.mxu0 %v1873
    %2105 = vmatprep.subr.bf16.mxu0 %v1866
    %2106 = vmatpush2.bf16.msra.mxu0 %v1865
    %2107 = vmatprep.subr.bf16.mxu0 %v1858
    %2108 = vmatpush2.bf16.msra.mxu0 %v1857
    %2109 = vmatprep.subr.bf16.mxu0 %v1850
    %2110 = vmatpush2.bf16.msra.mxu0 %v1849
    %2111 = vmatprep.subr.bf16.mxu0 %v1842
    %2112 = vmatpush2.bf16.msra.mxu0 %v1841
    %2113 = vmatprep.subr.bf16.mxu0 %v1834
    %2114 = vmatpush2.bf16.msra.mxu0 %v1833
    %2115 = vmatprep.subr.bf16.mxu0 %v1826
    %2116 = vmatpush2.bf16.msra.mxu0 %v1825
    %2117 = vmatprep.subr.bf16.mxu0 %v1818
    %2118 = vmatpush2.bf16.msra.mxu0 %v1817
    %2119 = vmatprep.mubr.bf16.mxu0 %v1236
    %2120 = vmatmul.mubr.bf16.gmra.mxu0 %v1235
    %v2121 = vpop.f32.mrf.mxu0
    %v2122 = vadd.f32 0.0, %v2121
    %v2123 = vpop.f32.mrf.mxu0
    %v2124 = vadd.f32 0.0, %v2123
    %v2125 = vpop.f32.mrf.mxu0
    %v2126 = vpop.f32.mrf.mxu0
    %2127 = vdwg.mxu0
    %2128 = vmatprep.subr.bf16.mxu0 %v1812
    %2129 = vmatpush1.bf16.msra.mxu0 %v1811
    %2130 = vmatprep.subr.bf16.mxu0 %v1804
    %2131 = vmatpush1.bf16.msra.mxu0 %v1803
    %2132 = vmatprep.subr.bf16.mxu0 %v1796
    %2133 = vmatpush1.bf16.msra.mxu0 %v1795
    %2134 = vmatprep.subr.bf16.mxu0 %v1788
    %2135 = vmatpush1.bf16.msra.mxu0 %v1787
    %2136 = vmatprep.subr.bf16.mxu0 %v1780
    %2137 = vmatpush1.bf16.msra.mxu0 %v1779
    %2138 = vmatprep.subr.bf16.mxu0 %v1772
    %2139 = vmatpush1.bf16.msra.mxu0 %v1771
    %2140 = vmatprep.subr.bf16.mxu0 %v1764
    %2141 = vmatpush1.bf16.msra.mxu0 %v1763
    %2142 = vmatprep.subr.bf16.mxu0 %v1756
    %2143 = vmatpush1.bf16.msra.mxu0 %v1755
    %2144 = vmatprep.subr.bf16.mxu0 %v1876
    %2145 = vmatpush2.bf16.msra.mxu0 %v1875
    %2146 = vmatprep.subr.bf16.mxu0 %v1868
    %2147 = vmatpush2.bf16.msra.mxu0 %v1867
    %2148 = vmatprep.subr.bf16.mxu0 %v1860
    %2149 = vmatpush2.bf16.msra.mxu0 %v1859
    %2150 = vmatprep.subr.bf16.mxu0 %v1852
    %2151 = vmatpush2.bf16.msra.mxu0 %v1851
    %2152 = vmatprep.subr.bf16.mxu0 %v1844
    %2153 = vmatpush2.bf16.msra.mxu0 %v1843
    %2154 = vmatprep.subr.bf16.mxu0 %v1836
    %2155 = vmatpush2.bf16.msra.mxu0 %v1835
    %2156 = vmatprep.subr.bf16.mxu0 %v1828
    %2157 = vmatpush2.bf16.msra.mxu0 %v1827
    %2158 = vmatprep.subr.bf16.mxu0 %v1820
    %2159 = vmatpush2.bf16.msra.mxu0 %v1819
    %2160 = vmatprep.mubr.bf16.mxu0 %v1236
    %2161 = vmatmul.mubr.bf16.gmra.mxu0 %v1235
    %v2162 = vpop.f32.mrf.mxu0
    %v2163 = vadd.f32 0.0, %v2162
    %v2164 = vpop.f32.mrf.mxu0
    %v2165 = vadd.f32 0.0, %v2164
    %v2166 = vpop.f32.mrf.mxu0
    %v2167 = vpop.f32.mrf.mxu0
    %2168 = vdwg.mxu0
    %s2169 = scalar_lea.vmem %s5, 168
    %v2170 = vld [vmem:[%s2169] sm:$0xff]
    %v2171 = vld [vmem:[%s2169 + $0x8] sm:$0xf]
    %s2172 = scalar_lea.vmem %s5, 224
    %v2173 = vld [vmem:[%s2172] sm:$0xff]
    %v2174 = vld [vmem:[%s2172 + $0x8] sm:$0xf]
    %vm2175 = vcmask 48128
    %v2177 = vsel %vm2175, %v2173, 0
    %v2180 = vsel %vm2175, %v2174, 0
    %v2183 = vsel %vm1012, %v2081, 0
    %v2186 = vsel %vm1012, %v2083, 0
    %2188 = vmatprep.subr.mxu0 0.0
    %2189 = vmatpush1.msra.mxu0 0.0
    %2190 = vmatprep.subr.mxu0 0.0
    %2191 = vmatpush1.msra.mxu0 0.0
    %2192 = vmatprep.subr.mxu0 0.0
    %2193 = vmatpush1.msra.mxu0 0.0
    %2194 = vmatprep.subr.mxu0 0.0
    %2195 = vmatpush1.msra.mxu0 0.0
    %2196 = vmatprep.subr.mxu0 0.0
    %2197 = vmatpush1.msra.mxu0 0.0
    %2198 = vmatprep.subr.mxu0 0.0
    %2199 = vmatpush1.msra.mxu0 0.0
    %2200 = vmatprep.subr.mxu0 0.0
    %2201 = vmatpush1.msra.mxu0 0.0
    %2202 = vmatprep.subr.mxu0 0.0
    %2203 = vmatpush1.msra.mxu0 0.0
    %2204 = vmatprep.subr.mxu0 0.0
    %2205 = vmatpush1.msra.mxu0 0.0
    %2206 = vmatprep.subr.mxu0 0.0
    %2207 = vmatpush1.msra.mxu0 0.0
    %2208 = vmatprep.subr.mxu0 0.0
    %2209 = vmatpush1.msra.mxu0 0.0
    %2210 = vmatprep.subr.mxu0 0.0
    %2211 = vmatpush1.msra.mxu0 0.0
    %2212 = vmatprep.subr.mxu0 0.0
    %2213 = vmatpush1.msra.mxu0 0.0
    %2214 = vmatprep.subr.mxu0 0.0
    %2215 = vmatpush1.msra.mxu0 0.0
    %2216 = vmatprep.subr.mxu0 0.0
    %2217 = vmatpush1.msra.mxu0 0.0
    %2218 = vmatprep.subr.mxu0 %v2186
    %2219 = vmatpush1.msra.mxu0 %v2183
    %2220 = vmatprep.subr.mxu0 0.0
    %2221 = vmatpush2.msra.mxu0 0.0
    %2222 = vmatprep.subr.mxu0 0.0
    %2223 = vmatpush2.msra.mxu0 0.0
    %2224 = vmatprep.subr.mxu0 0.0
    %2225 = vmatpush2.msra.mxu0 0.0
    %2226 = vmatprep.subr.mxu0 0.0
    %2227 = vmatpush2.msra.mxu0 0.0
    %2228 = vmatprep.subr.mxu0 0.0
    %2229 = vmatpush2.msra.mxu0 0.0
    %2230 = vmatprep.subr.mxu0 0.0
    %2231 = vmatpush2.msra.mxu0 0.0
    %2232 = vmatprep.subr.mxu0 0.0
    %2233 = vmatpush2.msra.mxu0 0.0
    %2234 = vmatprep.subr.mxu0 0.0
    %2235 = vmatpush2.msra.mxu0 0.0
    %2236 = vmatprep.subr.mxu0 0.0
    %2237 = vmatpush2.msra.mxu0 0.0
    %2238 = vmatprep.subr.mxu0 0.0
    %2239 = vmatpush2.msra.mxu0 0.0
    %2240 = vmatprep.subr.mxu0 0.0
    %2241 = vmatpush2.msra.mxu0 0.0
    %2242 = vmatprep.subr.mxu0 0.0
    %2243 = vmatpush2.msra.mxu0 0.0
    %2244 = vmatprep.subr.mxu0 0.0
    %2245 = vmatpush2.msra.mxu0 0.0
    %2246 = vmatprep.subr.mxu0 0.0
    %2247 = vmatpush2.msra.mxu0 0.0
    %2248 = vmatprep.subr.mxu0 0.0
    %2249 = vmatpush2.msra.mxu0 0.0
    %2250 = vmatprep.subr.mxu0 0.0
    %2251 = vmatpush2.msra.mxu0 0.0
    %2252 = vmatprep.mubr.f32.mxu0 0.0
    %2253 = vmatmul.mubr.f32.gmra.mxu0 %v2177
    %v2254 = vpop.f32.mrf.mxu0
    %v2255 = vadd.f32 0.0, %v2254
    %v2256 = vpop.f32.mrf.mxu0
    %v2257 = vadd.f32 0.0, %v2256
    %2258 = vmatprep.mubr.f32.mxu0 0.0
    %2259 = vmatmul.mubr.f32.gmra.mxu0 %v2180
    %v2260 = vpop.f32.mrf.mxu0
    %v2261 = vadd.f32 0.0, %v2260
    %v2262 = vpop.f32.mrf.mxu0
    %v2263 = vadd.f32 0.0, %v2262
    %2264 = vdwg.mxu0
    %v2266 = vsel %vm2175, %v2170, 0
    %v2269 = vsel %vm2175, %v2171, 0
    %v2272 = vsel %vm1012, %v2040, 0
    %v2275 = vsel %vm1012, %v2042, 0
    %2277 = vmatprep.subr.mxu0 0.0
    %2278 = vmatpush1.msra.mxu0 0.0
    %2279 = vmatprep.subr.mxu0 0.0
    %2280 = vmatpush1.msra.mxu0 0.0
    %2281 = vmatprep.subr.mxu0 0.0
    %2282 = vmatpush1.msra.mxu0 0.0
    %2283 = vmatprep.subr.mxu0 0.0
    %2284 = vmatpush1.msra.mxu0 0.0
    %2285 = vmatprep.subr.mxu0 0.0
    %2286 = vmatpush1.msra.mxu0 0.0
    %2287 = vmatprep.subr.mxu0 0.0
    %2288 = vmatpush1.msra.mxu0 0.0
    %2289 = vmatprep.subr.mxu0 0.0
    %2290 = vmatpush1.msra.mxu0 0.0
    %2291 = vmatprep.subr.mxu0 0.0
    %2292 = vmatpush1.msra.mxu0 0.0
    %2293 = vmatprep.subr.mxu0 0.0
    %2294 = vmatpush1.msra.mxu0 0.0
    %2295 = vmatprep.subr.mxu0 0.0
    %2296 = vmatpush1.msra.mxu0 0.0
    %2297 = vmatprep.subr.mxu0 0.0
    %2298 = vmatpush1.msra.mxu0 0.0
    %2299 = vmatprep.subr.mxu0 0.0
    %2300 = vmatpush1.msra.mxu0 0.0
    %2301 = vmatprep.subr.mxu0 0.0
    %2302 = vmatpush1.msra.mxu0 0.0
    %2303 = vmatprep.subr.mxu0 0.0
    %2304 = vmatpush1.msra.mxu0 0.0
    %2305 = vmatprep.subr.mxu0 0.0
    %2306 = vmatpush1.msra.mxu0 0.0
    %2307 = vmatprep.subr.mxu0 %v2275
    %2308 = vmatpush1.msra.mxu0 %v2272
    %2309 = vmatprep.subr.mxu0 0.0
    %2310 = vmatpush2.msra.mxu0 0.0
    %2311 = vmatprep.subr.mxu0 0.0
    %2312 = vmatpush2.msra.mxu0 0.0
    %2313 = vmatprep.subr.mxu0 0.0
    %2314 = vmatpush2.msra.mxu0 0.0
    %2315 = vmatprep.subr.mxu0 0.0
    %2316 = vmatpush2.msra.mxu0 0.0
    %2317 = vmatprep.subr.mxu0 0.0
    %2318 = vmatpush2.msra.mxu0 0.0
    %2319 = vmatprep.subr.mxu0 0.0
    %2320 = vmatpush2.msra.mxu0 0.0
    %2321 = vmatprep.subr.mxu0 0.0
    %2322 = vmatpush2.msra.mxu0 0.0
    %2323 = vmatprep.subr.mxu0 0.0
    %2324 = vmatpush2.msra.mxu0 0.0
    %2325 = vmatprep.subr.mxu0 0.0
    %2326 = vmatpush2.msra.mxu0 0.0
    %2327 = vmatprep.subr.mxu0 0.0
    %2328 = vmatpush2.msra.mxu0 0.0
    %2329 = vmatprep.subr.mxu0 0.0
    %2330 = vmatpush2.msra.mxu0 0.0
    %2331 = vmatprep.subr.mxu0 0.0
    %2332 = vmatpush2.msra.mxu0 0.0
    %2333 = vmatprep.subr.mxu0 0.0
    %2334 = vmatpush2.msra.mxu0 0.0
    %2335 = vmatprep.subr.mxu0 0.0
    %2336 = vmatpush2.msra.mxu0 0.0
    %2337 = vmatprep.subr.mxu0 0.0
    %2338 = vmatpush2.msra.mxu0 0.0
    %2339 = vmatprep.subr.mxu0 0.0
    %2340 = vmatpush2.msra.mxu0 0.0
    %2341 = vmatprep.mubr.f32.mxu0 0.0
    %2342 = vmatmul.mubr.f32.gmra.mxu0 %v2266
    %v2343 = vpop.f32.mrf.mxu0
    %v2344 = vadd.f32 %v2255, %v2343
    %v2345 = vpop.f32.mrf.mxu0
    %v2346 = vadd.f32 %v2257, %v2345
    %2347 = vmatprep.mubr.f32.mxu0 0.0
    %2348 = vmatmul.mubr.f32.gmra.mxu0 %v2269
    %v2349 = vpop.f32.mrf.mxu0
    %v2350 = vadd.f32 %v2261, %v2349
    %v2351 = vpop.f32.mrf.mxu0
    %v2352 = vadd.f32 %v2263, %v2351
    %2353 = vdwg.mxu0
    %s2354 = scalar_lea.vmem %s5, 280
    %v2355 = vld [vmem:[%s2354] sm:$0xff]
    %v2356 = vld [vmem:[%s2354 + $0x8] sm:$0xf]
    %v2358 = vsel %vm2175, %v2355, 0
    %v2361 = vsel %vm2175, %v2356, 0
    %v2364 = vsel %vm1012, %v2122, 0
    %v2367 = vsel %vm1012, %v2124, 0
    %2369 = vmatprep.subr.mxu0 0.0
    %2370 = vmatpush1.msra.mxu0 0.0
    %2371 = vmatprep.subr.mxu0 0.0
    %2372 = vmatpush1.msra.mxu0 0.0
    %2373 = vmatprep.subr.mxu0 0.0
    %2374 = vmatpush1.msra.mxu0 0.0
    %2375 = vmatprep.subr.mxu0 0.0
    %2376 = vmatpush1.msra.mxu0 0.0
    %2377 = vmatprep.subr.mxu0 0.0
    %2378 = vmatpush1.msra.mxu0 0.0
    %2379 = vmatprep.subr.mxu0 0.0
    %2380 = vmatpush1.msra.mxu0 0.0
    %2381 = vmatprep.subr.mxu0 0.0
    %2382 = vmatpush1.msra.mxu0 0.0
    %2383 = vmatprep.subr.mxu0 0.0
    %2384 = vmatpush1.msra.mxu0 0.0
    %2385 = vmatprep.subr.mxu0 0.0
    %2386 = vmatpush1.msra.mxu0 0.0
    %2387 = vmatprep.subr.mxu0 0.0
    %2388 = vmatpush1.msra.mxu0 0.0
    %2389 = vmatprep.subr.mxu0 0.0
    %2390 = vmatpush1.msra.mxu0 0.0
    %2391 = vmatprep.subr.mxu0 0.0
    %2392 = vmatpush1.msra.mxu0 0.0
    %2393 = vmatprep.subr.mxu0 0.0
    %2394 = vmatpush1.msra.mxu0 0.0
    %2395 = vmatprep.subr.mxu0 0.0
    %2396 = vmatpush1.msra.mxu0 0.0
    %2397 = vmatprep.subr.mxu0 0.0
    %2398 = vmatpush1.msra.mxu0 0.0
    %2399 = vmatprep.subr.mxu0 %v2367
    %2400 = vmatpush1.msra.mxu0 %v2364
    %2401 = vmatprep.subr.mxu0 0.0
    %2402 = vmatpush2.msra.mxu0 0.0
    %2403 = vmatprep.subr.mxu0 0.0
    %2404 = vmatpush2.msra.mxu0 0.0
    %2405 = vmatprep.subr.mxu0 0.0
    %2406 = vmatpush2.msra.mxu0 0.0
    %2407 = vmatprep.subr.mxu0 0.0
    %2408 = vmatpush2.msra.mxu0 0.0
    %2409 = vmatprep.subr.mxu0 0.0
    %2410 = vmatpush2.msra.mxu0 0.0
    %2411 = vmatprep.subr.mxu0 0.0
    %2412 = vmatpush2.msra.mxu0 0.0
    %2413 = vmatprep.subr.mxu0 0.0
    %2414 = vmatpush2.msra.mxu0 0.0
    %2415 = vmatprep.subr.mxu0 0.0
    %2416 = vmatpush2.msra.mxu0 0.0
    %2417 = vmatprep.subr.mxu0 0.0
    %2418 = vmatpush2.msra.mxu0 0.0
    %2419 = vmatprep.subr.mxu0 0.0
    %2420 = vmatpush2.msra.mxu0 0.0
    %2421 = vmatprep.subr.mxu0 0.0
    %2422 = vmatpush2.msra.mxu0 0.0
    %2423 = vmatprep.subr.mxu0 0.0
    %2424 = vmatpush2.msra.mxu0 0.0
    %2425 = vmatprep.subr.mxu0 0.0
    %2426 = vmatpush2.msra.mxu0 0.0
    %2427 = vmatprep.subr.mxu0 0.0
    %2428 = vmatpush2.msra.mxu0 0.0
    %2429 = vmatprep.subr.mxu0 0.0
    %2430 = vmatpush2.msra.mxu0 0.0
    %2431 = vmatprep.subr.mxu0 0.0
    %2432 = vmatpush2.msra.mxu0 0.0
    %2433 = vmatprep.mubr.f32.mxu0 0.0
    %2434 = vmatmul.mubr.f32.gmra.mxu0 %v2358
    %v2435 = vpop.f32.mrf.mxu0
    %v2436 = vadd.f32 0.0, %v2435
    %v2437 = vpop.f32.mrf.mxu0
    %v2438 = vadd.f32 0.0, %v2437
    %2439 = vmatprep.mubr.f32.mxu0 0.0
    %2440 = vmatmul.mubr.f32.gmra.mxu0 %v2361
    %v2441 = vpop.f32.mrf.mxu0
    %v2442 = vadd.f32 0.0, %v2441
    %v2443 = vpop.f32.mrf.mxu0
    %v2444 = vadd.f32 0.0, %v2443
    %2445 = vdwg.mxu0
    %v2446 = vadd.f32 %v2344, %v2436
    %v2447 = vadd.f32 %v2346, %v2438
    %v2448 = vadd.f32 %v2350, %v2442
    %v2449 = vadd.f32 %v2352, %v2444
    %s2450 = scalar_lea.vmem %s5, 336
    %v2451 = vld [vmem:[%s2450] sm:$0xff]
    %v2452 = vld [vmem:[%s2450 + $0x8] sm:$0xf]
    %v2454 = vsel %vm2175, %v2451, 0
    %v2457 = vsel %vm2175, %v2452, 0
    %v2460 = vsel %vm1012, %v2163, 0
    %v2463 = vsel %vm1012, %v2165, 0
    %2465 = vmatprep.subr.mxu0 0.0
    %2466 = vmatpush1.msra.mxu0 0.0
    %2467 = vmatprep.subr.mxu0 0.0
    %2468 = vmatpush1.msra.mxu0 0.0
    %2469 = vmatprep.subr.mxu0 0.0
    %2470 = vmatpush1.msra.mxu0 0.0
    %2471 = vmatprep.subr.mxu0 0.0
    %2472 = vmatpush1.msra.mxu0 0.0
    %2473 = vmatprep.subr.mxu0 0.0
    %2474 = vmatpush1.msra.mxu0 0.0
    %2475 = vmatprep.subr.mxu0 0.0
    %2476 = vmatpush1.msra.mxu0 0.0
    %2477 = vmatprep.subr.mxu0 0.0
    %2478 = vmatpush1.msra.mxu0 0.0
    %2479 = vmatprep.subr.mxu0 0.0
    %2480 = vmatpush1.msra.mxu0 0.0
    %2481 = vmatprep.subr.mxu0 0.0
    %2482 = vmatpush1.msra.mxu0 0.0
    %2483 = vmatprep.subr.mxu0 0.0
    %2484 = vmatpush1.msra.mxu0 0.0
    %2485 = vmatprep.subr.mxu0 0.0
    %2486 = vmatpush1.msra.mxu0 0.0
    %2487 = vmatprep.subr.mxu0 0.0
    %2488 = vmatpush1.msra.mxu0 0.0
    %2489 = vmatprep.subr.mxu0 0.0
    %2490 = vmatpush1.msra.mxu0 0.0
    %2491 = vmatprep.subr.mxu0 0.0
    %2492 = vmatpush1.msra.mxu0 0.0
    %2493 = vmatprep.subr.mxu0 0.0
    %2494 = vmatpush1.msra.mxu0 0.0
    %2495 = vmatprep.subr.mxu0 %v2463
    %2496 = vmatpush1.msra.mxu0 %v2460
    %2497 = vmatprep.subr.mxu0 0.0
    %2498 = vmatpush2.msra.mxu0 0.0
    %2499 = vmatprep.subr.mxu0 0.0
    %2500 = vmatpush2.msra.mxu0 0.0
    %2501 = vmatprep.subr.mxu0 0.0
    %2502 = vmatpush2.msra.mxu0 0.0
    %2503 = vmatprep.subr.mxu0 0.0
    %2504 = vmatpush2.msra.mxu0 0.0
    %2505 = vmatprep.subr.mxu0 0.0
    %2506 = vmatpush2.msra.mxu0 0.0
    %2507 = vmatprep.subr.mxu0 0.0
    %2508 = vmatpush2.msra.mxu0 0.0
    %2509 = vmatprep.subr.mxu0 0.0
    %2510 = vmatpush2.msra.mxu0 0.0
    %2511 = vmatprep.subr.mxu0 0.0
    %2512 = vmatpush2.msra.mxu0 0.0
    %2513 = vmatprep.subr.mxu0 0.0
    %2514 = vmatpush2.msra.mxu0 0.0
    %2515 = vmatprep.subr.mxu0 0.0
    %2516 = vmatpush2.msra.mxu0 0.0
    %2517 = vmatprep.subr.mxu0 0.0
    %2518 = vmatpush2.msra.mxu0 0.0
    %2519 = vmatprep.subr.mxu0 0.0
    %2520 = vmatpush2.msra.mxu0 0.0
    %2521 = vmatprep.subr.mxu0 0.0
    %2522 = vmatpush2.msra.mxu0 0.0
    %2523 = vmatprep.subr.mxu0 0.0
    %2524 = vmatpush2.msra.mxu0 0.0
    %2525 = vmatprep.subr.mxu0 0.0
    %2526 = vmatpush2.msra.mxu0 0.0
    %2527 = vmatprep.subr.mxu0 0.0
    %2528 = vmatpush2.msra.mxu0 0.0
    %2529 = vmatprep.mubr.f32.mxu0 0.0
    %2530 = vmatmul.mubr.f32.gmra.mxu0 %v2454
    %v2531 = vpop.f32.mrf.mxu0
    %v2532 = vadd.f32 0.0, %v2531
    %v2533 = vpop.f32.mrf.mxu0
    %v2534 = vadd.f32 0.0, %v2533
    %2535 = vmatprep.mubr.f32.mxu0 0.0
    %2536 = vmatmul.mubr.f32.gmra.mxu0 %v2457
    %v2537 = vpop.f32.mrf.mxu0
    %v2538 = vadd.f32 0.0, %v2537
    %v2539 = vpop.f32.mrf.mxu0
    %v2540 = vadd.f32 0.0, %v2539
    %2541 = vdwg.mxu0
    %v2542 = vadd.f32 %v2446, %v2532
    %v2543 = vadd.f32 %v2447, %v2534
    %v2544 = vadd.f32 %v2448, %v2538
    %v2545 = vadd.f32 %v2449, %v2540
    %s2546 = scalar_lea.vmem %s6, 128
    %v2547 = vld [vmem:[%s2546] sm:$0xf]
    %v2548 = vld [vmem:[%s2546 + $0x4] sm:$0xf]
    %v2549 = vld [vmem:[%s2546 + $0x8] sm:$0xf]
    %v2550 = vld [vmem:[%s2546 + $0xc] sm:$0xf]
    %v2551 = vld [vmem:[%s2546 + $0x10] sm:$0xf]
    %v2552 = vld [vmem:[%s2546 + $0x14] sm:$0xf]
    %v2553 = vld [vmem:[%s2546 + $0x18] sm:$0xf]
    %v2554 = vld [vmem:[%s2546 + $0x1c] sm:$0xf]
    %v2555 = vld [vmem:[%s2546 + $0x20] sm:$0xf]
    %v2556 = vld [vmem:[%s2546 + $0x24] sm:$0xf]
    %v2557 = vld [vmem:[%s2546 + $0x28] sm:$0xf]
    %v2558 = vld [vmem:[%s2546 + $0x2c] sm:$0xf]
    %v2559 = vld [vmem:[%s2546 + $0x30] sm:$0xf]
    %v2560 = vld [vmem:[%s2546 + $0x34] sm:$0xf]
    %v2561 = vld [vmem:[%s2546 + $0x38] sm:$0xf]
    %v2562 = vld [vmem:[%s2546 + $0x3c] sm:$0xf]
    %v2563 = vld [vmem:[%s2546 + $0x40] sm:$0xf]
    %v2564 = vld [vmem:[%s2546 + $0x44] sm:$0xf]
    %v2565 = vld [vmem:[%s2546 + $0x48] sm:$0xf]
    %v2566 = vld [vmem:[%s2546 + $0x4c] sm:$0xf]
    %v2567 = vld [vmem:[%s2546 + $0x50] sm:$0xf]
    %v2568 = vld [vmem:[%s2546 + $0x54] sm:$0xf]
    %v2569 = vld [vmem:[%s2546 + $0x58] sm:$0xf]
    %v2570 = vld [vmem:[%s2546 + $0x5c] sm:$0xf]
    %v2571 = vld [vmem:[%s2546 + $0x60] sm:$0xf]
    %v2572 = vld [vmem:[%s2546 + $0x64] sm:$0xf]
    %v2573 = vld [vmem:[%s2546 + $0x68] sm:$0xf]
    %v2574 = vld [vmem:[%s2546 + $0x6c] sm:$0xf]
    %v2575 = vld [vmem:[%s2546 + $0x70] sm:$0xf]
    %v2576 = vld [vmem:[%s2546 + $0x74] sm:$0xf]
    %v2577 = vld [vmem:[%s2546 + $0x78] sm:$0xf]
    %v2578 = vld [vmem:[%s2546 + $0x7c] sm:$0xf]
    %v2579 = vunpack.c.l.bf16 %v2547
    %v2580 = vunpack.c.l.bf16 %v2548
    %v2581 = vunpack.c.l.bf16 %v2549
    %v2582 = vunpack.c.l.bf16 %v2550
    %v2583 = vunpack.c.l.bf16 %v2551
    %v2584 = vunpack.c.l.bf16 %v2552
    %v2585 = vunpack.c.l.bf16 %v2553
    %v2586 = vunpack.c.l.bf16 %v2554
    %v2587 = vunpack.c.l.bf16 %v2555
    %v2588 = vunpack.c.l.bf16 %v2556
    %v2589 = vunpack.c.l.bf16 %v2557
    %v2590 = vunpack.c.l.bf16 %v2558
    %v2591 = vunpack.c.l.bf16 %v2559
    %v2592 = vunpack.c.l.bf16 %v2560
    %v2593 = vunpack.c.l.bf16 %v2561
    %v2594 = vunpack.c.l.bf16 %v2562
    %v2595 = vunpack.c.l.bf16 %v2563
    %v2596 = vunpack.c.l.bf16 %v2564
    %v2597 = vunpack.c.l.bf16 %v2565
    %v2598 = vunpack.c.l.bf16 %v2566
    %v2599 = vunpack.c.l.bf16 %v2567
    %v2600 = vunpack.c.l.bf16 %v2568
    %v2601 = vunpack.c.l.bf16 %v2569
    %v2602 = vunpack.c.l.bf16 %v2570
    %v2603 = vunpack.c.l.bf16 %v2571
    %v2604 = vunpack.c.l.bf16 %v2572
    %v2605 = vunpack.c.l.bf16 %v2573
    %v2606 = vunpack.c.l.bf16 %v2574
    %v2607 = vunpack.c.l.bf16 %v2575
    %v2608 = vunpack.c.l.bf16 %v2576
    %v2609 = vunpack.c.l.bf16 %v2577
    %v2610 = vunpack.c.l.bf16 %v2578
    %s2611 = scalar_lea.vmem %s7, 64
    %v2612 = vld [vmem:[%s2611] sm:$0xff]
    %v2613 = vld [vmem:[%s2611 + $0x8] sm:$0xff]
    %v2614 = vld [vmem:[%s2611 + $0x10] sm:$0xff]
    %v2615 = vld [vmem:[%s2611 + $0x18] sm:$0xff]
    %v2616 = vunpack.c.l.bf16 %v2612
    %v2617 = vunpack.c.h.bf16 %v2612
    %v2618 = vunpack.c.l.bf16 %v2613
    %v2619 = vunpack.c.h.bf16 %v2613
    %v2620 = vunpack.c.l.bf16 %v2614
    %v2621 = vunpack.c.h.bf16 %v2614
    %v2622 = vunpack.c.l.bf16 %v2615
    %v2623 = vunpack.c.h.bf16 %v2615
    %v2624 = vld [vmem:[%s8 + $0x2] sm:$0x1]
    %v2625 = vld [vmem:[%s8 + $0x3] sm:$0x1]
    %v2626 = vsel %vm531, %v2544, 0.0
    %v2627 = vadd.f32 %v2542, %v2626
    %v2628 = vrot.slane %v2627, 4
    %v2629 = vadd.f32 %v2627, %v2628
    %v2630 = vrot.slane %v2629, 2
    %v2631 = vadd.f32 %v2629, %v2630
    %v2632 = vrot.slane %v2631, 1
    %v2633 = vadd.f32 %v2631, %v2632
    %v2634 = vsel %vm531, %v2545, 0.0
    %v2635 = vadd.f32 %v2543, %v2634
    %v2636 = vrot.slane %v2635, 4
    %v2637 = vadd.f32 %v2635, %v2636
    %v2638 = vrot.slane %v2637, 2
    %v2639 = vadd.f32 %v2637, %v2638
    %v2640 = vrot.slane %v2639, 1
    %v2641 = vadd.f32 %v2639, %v2640
    %v2642 = vmul.f32 %v2542, %v2542
    %v2643 = vmul.f32 %v2543, %v2543
    %v2644 = vmul.f32 %v2544, %v2544
    %v2645 = vmul.f32 %v2545, %v2545
    %v2646 = vsel %vm531, %v2644, 0.0
    %v2647 = vadd.f32 %v2642, %v2646
    %v2648 = vrot.slane %v2647, 4
    %v2649 = vadd.f32 %v2647, %v2648
    %v2650 = vrot.slane %v2649, 2
    %v2651 = vadd.f32 %v2649, %v2650
    %v2652 = vrot.slane %v2651, 1
    %v2653 = vadd.f32 %v2651, %v2652
    %v2654 = vsel %vm531, %v2645, 0.0
    %v2655 = vadd.f32 %v2643, %v2654
    %v2656 = vrot.slane %v2655, 4
    %v2657 = vadd.f32 %v2655, %v2656
    %v2658 = vrot.slane %v2657, 2
    %v2659 = vadd.f32 %v2657, %v2658
    %v2660 = vrot.slane %v2659, 1
    %v2661 = vadd.f32 %v2659, %v2660
    %v2662 = vsel %vm1043, %v2633, %v2653
    %v2663 = vsel %vm1043, %v2641, %v2661
    %2664 = vmatprep.subr.mxu0 0.0
    %2665 = vmatpush1.msra.mxu0 %v2594
    %2666 = vmatprep.subr.mxu0 0.0
    %2667 = vmatpush1.msra.mxu0 %v2593
    %2668 = vmatprep.subr.mxu0 0.0
    %2669 = vmatpush1.msra.mxu0 %v2592
    %2670 = vmatprep.subr.mxu0 0.0
    %2671 = vmatpush1.msra.mxu0 %v2591
    %2672 = vmatprep.subr.mxu0 0.0
    %2673 = vmatpush1.msra.mxu0 %v2590
    %2674 = vmatprep.subr.mxu0 0.0
    %2675 = vmatpush1.msra.mxu0 %v2589
    %2676 = vmatprep.subr.mxu0 0.0
    %2677 = vmatpush1.msra.mxu0 %v2588
    %2678 = vmatprep.subr.mxu0 0.0
    %2679 = vmatpush1.msra.mxu0 %v2587
    %2680 = vmatprep.subr.mxu0 0.0
    %2681 = vmatpush1.msra.mxu0 %v2586
    %2682 = vmatprep.subr.mxu0 0.0
    %2683 = vmatpush1.msra.mxu0 %v2585
    %2684 = vmatprep.subr.mxu0 0.0
    %2685 = vmatpush1.msra.mxu0 %v2584
    %2686 = vmatprep.subr.mxu0 0.0
    %2687 = vmatpush1.msra.mxu0 %v2583
    %2688 = vmatprep.subr.mxu0 0.0
    %2689 = vmatpush1.msra.mxu0 %v2582
    %2690 = vmatprep.subr.mxu0 0.0
    %2691 = vmatpush1.msra.mxu0 %v2581
    %2692 = vmatprep.subr.mxu0 0.0
    %2693 = vmatpush1.msra.mxu0 %v2580
    %2694 = vmatprep.subr.mxu0 0.0
    %2695 = vmatpush1.msra.mxu0 %v2579
    %2696 = vmatprep.subr.mxu0 0.0
    %2697 = vmatpush2.msra.mxu0 %v2610
    %2698 = vmatprep.subr.mxu0 0.0
    %2699 = vmatpush2.msra.mxu0 %v2609
    %2700 = vmatprep.subr.mxu0 0.0
    %2701 = vmatpush2.msra.mxu0 %v2608
    %2702 = vmatprep.subr.mxu0 0.0
    %2703 = vmatpush2.msra.mxu0 %v2607
    %2704 = vmatprep.subr.mxu0 0.0
    %2705 = vmatpush2.msra.mxu0 %v2606
    %2706 = vmatprep.subr.mxu0 0.0
    %2707 = vmatpush2.msra.mxu0 %v2605
    %2708 = vmatprep.subr.mxu0 0.0
    %2709 = vmatpush2.msra.mxu0 %v2604
    %2710 = vmatprep.subr.mxu0 0.0
    %2711 = vmatpush2.msra.mxu0 %v2603
    %2712 = vmatprep.subr.mxu0 0.0
    %2713 = vmatpush2.msra.mxu0 %v2602
    %2714 = vmatprep.subr.mxu0 0.0
    %2715 = vmatpush2.msra.mxu0 %v2601
    %2716 = vmatprep.subr.mxu0 0.0
    %2717 = vmatpush2.msra.mxu0 %v2600
    %2718 = vmatprep.subr.mxu0 0.0
    %2719 = vmatpush2.msra.mxu0 %v2599
    %2720 = vmatprep.subr.mxu0 0.0
    %2721 = vmatpush2.msra.mxu0 %v2598
    %2722 = vmatprep.subr.mxu0 0.0
    %2723 = vmatpush2.msra.mxu0 %v2597
    %2724 = vmatprep.subr.mxu0 0.0
    %2725 = vmatpush2.msra.mxu0 %v2596
    %2726 = vmatprep.subr.mxu0 0.0
    %2727 = vmatpush2.msra.mxu0 %v2595
    %2728 = vmatprep.mubr.f32.mxu0 %v2663
    %2729 = vmatmul.mubr.f32.gmra.mxu0 %v2662
    %v2730 = vpop.f32.mrf.mxu0
    %v2731 = vadd.f32 0.0, %v2730
    %v2732 = vpop.f32.mrf.mxu0
    %2733 = vdwg.mxu0
    %v2734 = vmul.f32 %v2731, 0.013888889
    %v2735 = vmul.f32 %v2734, %v2734
    %v2737 = vrot.slane %v2735, 7
    %v2739 = vsub.f32 %v2734, %v2737
    %v2740 = vadd.f32 %v2739, 1e-05
    %v2741 = vrsqrt.pop %v2740
    %v2743 = vrot.slane %v2741, 1
    %v2745 = vmul.f32 %v2624, %v2743
    %v2746 = vmul.f32 %v2734, %v2745
    %v2747 = vsub.f32 %v2625, %v2746
    %v2749 = vrot.slane %v2747, 7
    %v2751 = vsel %vm1043, %v2745, %v2749
    %vm2752 = vcmask 261120
    %v2754 = vsel %vm2752, %v2751, 0
    %2756 = vmatprep.subr.mxu0 0.0
    %2757 = vmatpush1.msra.mxu0 0.0
    %2758 = vmatprep.subr.mxu0 0.0
    %2759 = vmatpush1.msra.mxu0 0.0
    %2760 = vmatprep.subr.mxu0 0.0
    %2761 = vmatpush1.msra.mxu0 0.0
    %2762 = vmatprep.subr.mxu0 0.0
    %2763 = vmatpush1.msra.mxu0 0.0
    %2764 = vmatprep.subr.mxu0 0.0
    %2765 = vmatpush1.msra.mxu0 0.0
    %2766 = vmatprep.subr.mxu0 0.0
    %2767 = vmatpush1.msra.mxu0 0.0
    %2768 = vmatprep.subr.mxu0 0.0
    %2769 = vmatpush1.msra.mxu0 0.0
    %2770 = vmatprep.subr.mxu0 0.0
    %2771 = vmatpush1.msra.mxu0 0.0
    %2772 = vmatprep.subr.mxu0 0.0
    %2773 = vmatpush1.msra.mxu0 0.0
    %2774 = vmatprep.subr.mxu0 0.0
    %2775 = vmatpush1.msra.mxu0 0.0
    %2776 = vmatprep.subr.mxu0 0.0
    %2777 = vmatpush1.msra.mxu0 0.0
    %2778 = vmatprep.subr.mxu0 0.0
    %2779 = vmatpush1.msra.mxu0 0.0
    %2780 = vmatprep.subr.mxu0 %v2623
    %2781 = vmatpush1.msra.mxu0 %v2622
    %2782 = vmatprep.subr.mxu0 %v2621
    %2783 = vmatpush1.msra.mxu0 %v2620
    %2784 = vmatprep.subr.mxu0 %v2619
    %2785 = vmatpush1.msra.mxu0 %v2618
    %2786 = vmatprep.subr.mxu0 %v2617
    %2787 = vmatpush1.msra.mxu0 %v2616
    %2788 = vmatprep.subr.mxu0 0.0
    %2789 = vmatpush2.msra.mxu0 0.0
    %2790 = vmatprep.subr.mxu0 0.0
    %2791 = vmatpush2.msra.mxu0 0.0
    %2792 = vmatprep.subr.mxu0 0.0
    %2793 = vmatpush2.msra.mxu0 0.0
    %2794 = vmatprep.subr.mxu0 0.0
    %2795 = vmatpush2.msra.mxu0 0.0
    %2796 = vmatprep.subr.mxu0 0.0
    %2797 = vmatpush2.msra.mxu0 0.0
    %2798 = vmatprep.subr.mxu0 0.0
    %2799 = vmatpush2.msra.mxu0 0.0
    %2800 = vmatprep.subr.mxu0 0.0
    %2801 = vmatpush2.msra.mxu0 0.0
    %2802 = vmatprep.subr.mxu0 0.0
    %2803 = vmatpush2.msra.mxu0 0.0
    %2804 = vmatprep.subr.mxu0 0.0
    %2805 = vmatpush2.msra.mxu0 0.0
    %2806 = vmatprep.subr.mxu0 0.0
    %2807 = vmatpush2.msra.mxu0 0.0
    %2808 = vmatprep.subr.mxu0 0.0
    %2809 = vmatpush2.msra.mxu0 0.0
    %2810 = vmatprep.subr.mxu0 0.0
    %2811 = vmatpush2.msra.mxu0 0.0
    %2812 = vmatprep.subr.mxu0 0.0
    %2813 = vmatpush2.msra.mxu0 0.0
    %2814 = vmatprep.subr.mxu0 0.0
    %2815 = vmatpush2.msra.mxu0 0.0
    %2816 = vmatprep.subr.mxu0 0.0
    %2817 = vmatpush2.msra.mxu0 0.0
    %2818 = vmatprep.subr.mxu0 0.0
    %2819 = vmatpush2.msra.mxu0 0.0
    %2820 = vmatprep.mubr.f32.mxu0 0.0
    %2821 = vmatmul.mubr.f32.gmra.mxu0 %v2754
    %v2822 = vpop.f32.mrf.mxu0
    %v2823 = vadd.f32 0.0, %v2822
    %v2824 = vpop.f32.mrf.mxu0
    %v2825 = vadd.f32 0.0, %v2824
    %2826 = vdwg.mxu0
    %v2827 = vlaneseq
    %v2828 = vshrl.u32 %v2827, 7
    %v2829 = vsub.s32 0, %v2828
    %v2830 = vrot.slane %v2823, %v2829
    %v2831 = vlaneseq
    %v2832 = vshrl.u32 %v2831, 7
    %v2833 = vsub.s32 0, %v2832
    %v2834 = vrot.slane %v2825, %v2833
    %v2835 = vmul.f32 %v2542, %v2830
    %v2836 = vmul.f32 %v2543, %v2834
    %v2837 = vmul.f32 %v2544, %v2830
    %v2838 = vmul.f32 %v2545, %v2834
    %v2839 = vlaneseq
    %v2840 = vshrl.u32 %v2839, 7
    %v2841 = vsub.s32 1, %v2840
    %v2842 = vrot.slane %v2823, %v2841
    %v2843 = vlaneseq
    %v2844 = vshrl.u32 %v2843, 7
    %v2845 = vsub.s32 1, %v2844
    %v2846 = vrot.slane %v2825, %v2845
    %v2847 = vadd.f32 %v2835, %v2842
    %v2848 = vadd.f32 %v2836, %v2846
    %v2849 = vadd.f32 %v2837, %v2842
    %v2850 = vadd.f32 %v2838, %v2846
    %v2851 = vmax.f32 %v2847, 0.0
    %v2852 = vmax.f32 %v2848, 0.0
    %v2853 = vmax.f32 %v2849, 0.0
    %v2854 = vmax.f32 %v2850, 0.0
    %s2855 = smul.u32 %s1231, 6
    %s2856 = sshll.u32 %s2855, 4
    %2857 = dma.done %s325, %s2856
    %v2858 = vpack.c.bf16 %v2853, %v2851
    %v2859 = vpack.c.bf16 %v2854, %v2852
    %v2860 = vld [vmem:[#allocation3] sm:$0xff]
    %v2861 = vld [vmem:[#allocation3 + $0x8] sm:$0xff]
    %v2862 = vld [vmem:[#allocation3 + $0x10] sm:$0xff]
    %v2863 = vld [vmem:[#allocation3 + $0x18] sm:$0xff]
    %v2864 = vld [vmem:[#allocation3 + $0x20] sm:$0xff]
    %v2865 = vld [vmem:[#allocation3 + $0x28] sm:$0xff]
    %v2866 = vld [vmem:[#allocation3 + $0x30] sm:$0xff]
    %v2867 = vld [vmem:[#allocation3 + $0x38] sm:$0xff]
    %v2868 = vld [vmem:[#allocation3 + $0x40] sm:$0xff]
    %v2869 = vld [vmem:[#allocation3 + $0x48] sm:$0xff]
    %v2870 = vld [vmem:[#allocation3 + $0x50] sm:$0xff]
    %v2871 = vld [vmem:[#allocation3 + $0x58] sm:$0xff]
    %v2872 = vld [vmem:[#allocation3 + $0x60] sm:$0xff]
    %v2873 = vld [vmem:[#allocation3 + $0x68] sm:$0xff]
    %v2874 = vld [vmem:[#allocation3 + $0x70] sm:$0xff]
    %v2875 = vld [vmem:[#allocation3 + $0x78] sm:$0xff]
    %v2876 = vld [vmem:[#allocation3 + $0x80] sm:$0xff]
    %v2877 = vld [vmem:[#allocation3 + $0x88] sm:$0xff]
    %v2878 = vld [vmem:[#allocation3 + $0x90] sm:$0xff]
    %v2879 = vld [vmem:[#allocation3 + $0x98] sm:$0xff]
    %v2880 = vld [vmem:[#allocation3 + $0xa0] sm:$0xff]
    %v2881 = vld [vmem:[#allocation3 + $0xa8] sm:$0xff]
    %v2882 = vld [vmem:[#allocation3 + $0xb0] sm:$0xff]
    %v2883 = vld [vmem:[#allocation3 + $0xb8] sm:$0xff]
    %v2884 = vld [vmem:[#allocation3 + $0xc0] sm:$0xff]
    %v2885 = vld [vmem:[#allocation3 + $0xc8] sm:$0xff]
    %v2886 = vld [vmem:[#allocation3 + $0xd0] sm:$0xff]
    %v2887 = vld [vmem:[#allocation3 + $0xd8] sm:$0xff]
    %v2888 = vld [vmem:[#allocation3 + $0xe0] sm:$0xff]
    %v2889 = vld [vmem:[#allocation3 + $0xe8] sm:$0xff]
    %v2890 = vld [vmem:[#allocation3 + $0xf0] sm:$0xff]
    %v2891 = vld [vmem:[#allocation3 + $0xf8] sm:$0xff]
    %v2892 = vld [vmem:[#allocation3 + $0x100] sm:$0xff]
    %v2893 = vld [vmem:[#allocation3 + $0x108] sm:$0xff]
    %v2894 = vld [vmem:[#allocation3 + $0x110] sm:$0xff]
    %v2895 = vld [vmem:[#allocation3 + $0x118] sm:$0xff]
    %v2896 = vld [vmem:[#allocation3 + $0x120] sm:$0xff]
    %v2897 = vld [vmem:[#allocation3 + $0x128] sm:$0xff]
    %v2898 = vld [vmem:[#allocation3 + $0x130] sm:$0xff]
    %v2899 = vld [vmem:[#allocation3 + $0x138] sm:$0xff]
    %v2900 = vld [vmem:[#allocation3 + $0x140] sm:$0xff]
    %v2901 = vld [vmem:[#allocation3 + $0x148] sm:$0xff]
    %v2902 = vld [vmem:[#allocation3 + $0x150] sm:$0xff]
    %v2903 = vld [vmem:[#allocation3 + $0x158] sm:$0xff]
    %v2904 = vld [vmem:[#allocation3 + $0x160] sm:$0xff]
    %v2905 = vld [vmem:[#allocation3 + $0x168] sm:$0xff]
    %v2906 = vld [vmem:[#allocation3 + $0x170] sm:$0xff]
    %v2907 = vld [vmem:[#allocation3 + $0x178] sm:$0xff]
    %v2908 = vld [vmem:[#allocation3 + $0x180] sm:$0xff]
    %v2909 = vld [vmem:[#allocation3 + $0x188] sm:$0xff]
    %v2910 = vld [vmem:[#allocation3 + $0x190] sm:$0xff]
    %v2911 = vld [vmem:[#allocation3 + $0x198] sm:$0xff]
    %v2912 = vld [vmem:[#allocation3 + $0x1a0] sm:$0xff]
    %v2913 = vld [vmem:[#allocation3 + $0x1a8] sm:$0xff]
    %v2914 = vld [vmem:[#allocation3 + $0x1b0] sm:$0xff]
    %v2915 = vld [vmem:[#allocation3 + $0x1b8] sm:$0xff]
    %v2916 = vld [vmem:[#allocation3 + $0x1c0] sm:$0xff]
    %v2917 = vld [vmem:[#allocation3 + $0x1c8] sm:$0xff]
    %v2918 = vld [vmem:[#allocation3 + $0x1d0] sm:$0xff]
    %v2919 = vld [vmem:[#allocation3 + $0x1d8] sm:$0xff]
    %v2920 = vld [vmem:[#allocation3 + $0x1e0] sm:$0xff]
    %v2921 = vld [vmem:[#allocation3 + $0x1e8] sm:$0xff]
    %v2922 = vld [vmem:[#allocation3 + $0x1f0] sm:$0xff]
    %v2923 = vld [vmem:[#allocation3 + $0x1f8] sm:$0xff]
    %v2924 = vld [vmem:[#allocation3 + $0x200] sm:$0xff]
    %v2925 = vld [vmem:[#allocation3 + $0x208] sm:$0xff]
    %v2926 = vld [vmem:[#allocation3 + $0x210] sm:$0xff]
    %v2927 = vld [vmem:[#allocation3 + $0x218] sm:$0xff]
    %v2928 = vld [vmem:[#allocation3 + $0x220] sm:$0xff]
    %v2929 = vld [vmem:[#allocation3 + $0x228] sm:$0xff]
    %v2930 = vld [vmem:[#allocation3 + $0x230] sm:$0xff]
    %v2931 = vld [vmem:[#allocation3 + $0x238] sm:$0xff]
    %v2932 = vld [vmem:[#allocation3 + $0x240] sm:$0xff]
    %v2933 = vld [vmem:[#allocation3 + $0x248] sm:$0xff]
    %v2934 = vld [vmem:[#allocation3 + $0x250] sm:$0xff]
    %v2935 = vld [vmem:[#allocation3 + $0x258] sm:$0xff]
    %v2936 = vld [vmem:[#allocation3 + $0x260] sm:$0xff]
    %v2937 = vld [vmem:[#allocation3 + $0x268] sm:$0xff]
    %v2938 = vld [vmem:[#allocation3 + $0x270] sm:$0xff]
    %v2939 = vld [vmem:[#allocation3 + $0x278] sm:$0xff]
    %v2940 = vld [vmem:[#allocation3 + $0x280] sm:$0xff]
    %v2941 = vld [vmem:[#allocation3 + $0x288] sm:$0xff]
    %v2942 = vld [vmem:[#allocation3 + $0x290] sm:$0xff]
    %v2943 = vld [vmem:[#allocation3 + $0x298] sm:$0xff]
    %v2944 = vld [vmem:[#allocation3 + $0x2a0] sm:$0xff]
    %v2945 = vld [vmem:[#allocation3 + $0x2a8] sm:$0xff]
    %v2946 = vld [vmem:[#allocation3 + $0x2b0] sm:$0xff]
    %v2947 = vld [vmem:[#allocation3 + $0x2b8] sm:$0xff]
    %v2948 = vld [vmem:[#allocation3 + $0x2c0] sm:$0xff]
    %v2949 = vld [vmem:[#allocation3 + $0x2c8] sm:$0xff]
    %v2950 = vld [vmem:[#allocation3 + $0x2d0] sm:$0xff]
    %v2951 = vld [vmem:[#allocation3 + $0x2d8] sm:$0xff]
    %v2952 = vld [vmem:[#allocation3 + $0x2e0] sm:$0xff]
    %v2953 = vld [vmem:[#allocation3 + $0x2e8] sm:$0xff]
    %v2954 = vld [vmem:[#allocation3 + $0x2f0] sm:$0xff]
    %v2955 = vld [vmem:[#allocation3 + $0x2f8] sm:$0xff]
    %v3052 = vunpack.c.l.b16 %v2860
    %v3053 = vunpack.c.h.b16 %v2860
    %v3054 = vunpack.c.l.b16 %v2861
    %v3055 = vunpack.c.h.b16 %v2861
    %v3056 = vunpack.c.l.b16 %v2862
    %v3057 = vunpack.c.h.b16 %v2862
    %v3058 = vunpack.c.l.b16 %v2863
    %v3059 = vunpack.c.h.b16 %v2863
    %v3060 = vunpack.c.l.b16 %v2864
    %v3061 = vunpack.c.h.b16 %v2864
    %v3062 = vunpack.c.l.b16 %v2865
    %v3063 = vunpack.c.h.b16 %v2865
    %v3064 = vunpack.c.l.b16 %v2866
    %v3065 = vunpack.c.h.b16 %v2866
    %v3066 = vunpack.c.l.b16 %v2867
    %v3067 = vunpack.c.h.b16 %v2867
    %v3068 = vunpack.c.l.b16 %v2868
    %v3069 = vunpack.c.h.b16 %v2868
    %v3070 = vunpack.c.l.b16 %v2869
    %v3071 = vunpack.c.h.b16 %v2869
    %v3072 = vunpack.c.l.b16 %v2870
    %v3073 = vunpack.c.h.b16 %v2870
    %v3074 = vunpack.c.l.b16 %v2871
    %v3075 = vunpack.c.h.b16 %v2871
    %v3076 = vunpack.c.l.b16 %v2872
    %v3077 = vunpack.c.h.b16 %v2872
    %v3078 = vunpack.c.l.b16 %v2873
    %v3079 = vunpack.c.h.b16 %v2873
    %v3080 = vunpack.c.l.b16 %v2874
    %v3081 = vunpack.c.h.b16 %v2874
    %v3082 = vunpack.c.l.b16 %v2875
    %v3083 = vunpack.c.h.b16 %v2875
    %v3084 = vunpack.c.l.b16 %v2876
    %v3085 = vunpack.c.h.b16 %v2876
    %v3086 = vunpack.c.l.b16 %v2877
    %v3087 = vunpack.c.h.b16 %v2877
    %v3088 = vunpack.c.l.b16 %v2878
    %v3089 = vunpack.c.h.b16 %v2878
    %v3090 = vunpack.c.l.b16 %v2879
    %v3091 = vunpack.c.h.b16 %v2879
    %v3092 = vunpack.c.l.b16 %v2880
    %v3093 = vunpack.c.h.b16 %v2880
    %v3094 = vunpack.c.l.b16 %v2881
    %v3095 = vunpack.c.h.b16 %v2881
    %v3096 = vunpack.c.l.b16 %v2882
    %v3097 = vunpack.c.h.b16 %v2882
    %v3098 = vunpack.c.l.b16 %v2883
    %v3099 = vunpack.c.h.b16 %v2883
    %v3100 = vunpack.c.l.b16 %v2884
    %v3101 = vunpack.c.h.b16 %v2884
    %v3102 = vunpack.c.l.b16 %v2885
    %v3103 = vunpack.c.h.b16 %v2885
    %v3104 = vunpack.c.l.b16 %v2886
    %v3105 = vunpack.c.h.b16 %v2886
    %v3106 = vunpack.c.l.b16 %v2887
    %v3107 = vunpack.c.h.b16 %v2887
    %v3108 = vunpack.c.l.b16 %v2888
    %v3109 = vunpack.c.h.b16 %v2888
    %v3110 = vunpack.c.l.b16 %v2889
    %v3111 = vunpack.c.h.b16 %v2889
    %v3112 = vunpack.c.l.b16 %v2890
    %v3113 = vunpack.c.h.b16 %v2890
    %v3114 = vunpack.c.l.b16 %v2891
    %v3115 = vunpack.c.h.b16 %v2891
    %v3116 = vunpack.c.l.b16 %v2892
    %v3117 = vunpack.c.h.b16 %v2892
    %v3118 = vunpack.c.l.b16 %v2893
    %v3119 = vunpack.c.h.b16 %v2893
    %v3120 = vunpack.c.l.b16 %v2894
    %v3121 = vunpack.c.h.b16 %v2894
    %v3122 = vunpack.c.l.b16 %v2895
    %v3123 = vunpack.c.h.b16 %v2895
    %v3124 = vunpack.c.l.b16 %v2896
    %v3125 = vunpack.c.h.b16 %v2896
    %v3126 = vunpack.c.l.b16 %v2897
    %v3127 = vunpack.c.h.b16 %v2897
    %v3128 = vunpack.c.l.b16 %v2898
    %v3129 = vunpack.c.h.b16 %v2898
    %v3130 = vunpack.c.l.b16 %v2899
    %v3131 = vunpack.c.h.b16 %v2899
    %v3132 = vunpack.c.l.b16 %v2900
    %v3133 = vunpack.c.h.b16 %v2900
    %v3134 = vunpack.c.l.b16 %v2901
    %v3135 = vunpack.c.h.b16 %v2901
    %v3136 = vunpack.c.l.b16 %v2902
    %v3137 = vunpack.c.h.b16 %v2902
    %v3138 = vunpack.c.l.b16 %v2903
    %v3139 = vunpack.c.h.b16 %v2903
    %v3140 = vunpack.c.l.b16 %v2904
    %v3141 = vunpack.c.h.b16 %v2904
    %v3142 = vunpack.c.l.b16 %v2905
    %v3143 = vunpack.c.h.b16 %v2905
    %v3144 = vunpack.c.l.b16 %v2906
    %v3145 = vunpack.c.h.b16 %v2906
    %v3146 = vunpack.c.l.b16 %v2907
    %v3147 = vunpack.c.h.b16 %v2907
    %v3148 = vunpack.c.l.b16 %v2908
    %v3149 = vunpack.c.h.b16 %v2908
    %v3150 = vunpack.c.l.b16 %v2909
    %v3151 = vunpack.c.h.b16 %v2909
    %v3152 = vunpack.c.l.b16 %v2910
    %v3153 = vunpack.c.h.b16 %v2910
    %v3154 = vunpack.c.l.b16 %v2911
    %v3155 = vunpack.c.h.b16 %v2911
    %v3156 = vunpack.c.l.b16 %v2912
    %v3157 = vunpack.c.h.b16 %v2912
    %v3158 = vunpack.c.l.b16 %v2913
    %v3159 = vunpack.c.h.b16 %v2913
    %v3160 = vunpack.c.l.b16 %v2914
    %v3161 = vunpack.c.h.b16 %v2914
    %v3162 = vunpack.c.l.b16 %v2915
    %v3163 = vunpack.c.h.b16 %v2915
    %v3164 = vunpack.c.l.b16 %v2916
    %v3165 = vunpack.c.h.b16 %v2916
    %v3166 = vunpack.c.l.b16 %v2917
    %v3167 = vunpack.c.h.b16 %v2917
    %v3168 = vunpack.c.l.b16 %v2918
    %v3169 = vunpack.c.h.b16 %v2918
    %v3170 = vunpack.c.l.b16 %v2919
    %v3171 = vunpack.c.h.b16 %v2919
    %v3172 = vunpack.c.l.b16 %v2920
    %v3173 = vunpack.c.h.b16 %v2920
    %v3174 = vunpack.c.l.b16 %v2921
    %v3175 = vunpack.c.h.b16 %v2921
    %v3176 = vunpack.c.l.b16 %v2922
    %v3177 = vunpack.c.h.b16 %v2922
    %v3178 = vunpack.c.l.b16 %v2923
    %v3179 = vunpack.c.h.b16 %v2923
    %v3180 = vunpack.c.l.b16 %v2924
    %v3181 = vunpack.c.h.b16 %v2924
    %v3182 = vunpack.c.l.b16 %v2925
    %v3183 = vunpack.c.h.b16 %v2925
    %v3184 = vunpack.c.l.b16 %v2926
    %v3185 = vunpack.c.h.b16 %v2926
    %v3186 = vunpack.c.l.b16 %v2927
    %v3187 = vunpack.c.h.b16 %v2927
    %v3188 = vunpack.c.l.b16 %v2928
    %v3189 = vunpack.c.h.b16 %v2928
    %v3190 = vunpack.c.l.b16 %v2929
    %v3191 = vunpack.c.h.b16 %v2929
    %v3192 = vunpack.c.l.b16 %v2930
    %v3193 = vunpack.c.h.b16 %v2930
    %v3194 = vunpack.c.l.b16 %v2931
    %v3195 = vunpack.c.h.b16 %v2931
    %v3196 = vunpack.c.l.b16 %v2932
    %v3197 = vunpack.c.h.b16 %v2932
    %v3198 = vunpack.c.l.b16 %v2933
    %v3199 = vunpack.c.h.b16 %v2933
    %v3200 = vunpack.c.l.b16 %v2934
    %v3201 = vunpack.c.h.b16 %v2934
    %v3202 = vunpack.c.l.b16 %v2935
    %v3203 = vunpack.c.h.b16 %v2935
    %v3204 = vunpack.c.l.b16 %v2936
    %v3205 = vunpack.c.h.b16 %v2936
    %v3206 = vunpack.c.l.b16 %v2937
    %v3207 = vunpack.c.h.b16 %v2937
    %v3208 = vunpack.c.l.b16 %v2938
    %v3209 = vunpack.c.h.b16 %v2938
    %v3210 = vunpack.c.l.b16 %v2939
    %v3211 = vunpack.c.h.b16 %v2939
    %v3212 = vunpack.c.l.b16 %v2940
    %v3213 = vunpack.c.h.b16 %v2940
    %v3214 = vunpack.c.l.b16 %v2941
    %v3215 = vunpack.c.h.b16 %v2941
    %v3216 = vunpack.c.l.b16 %v2942
    %v3217 = vunpack.c.h.b16 %v2942
    %v3218 = vunpack.c.l.b16 %v2943
    %v3219 = vunpack.c.h.b16 %v2943
    %v3220 = vunpack.c.l.b16 %v2944
    %v3221 = vunpack.c.h.b16 %v2944
    %v3222 = vunpack.c.l.b16 %v2945
    %v3223 = vunpack.c.h.b16 %v2945
    %v3224 = vunpack.c.l.b16 %v2946
    %v3225 = vunpack.c.h.b16 %v2946
    %v3226 = vunpack.c.l.b16 %v2947
    %v3227 = vunpack.c.h.b16 %v2947
    %v3228 = vunpack.c.l.b16 %v2948
    %v3229 = vunpack.c.h.b16 %v2948
    %v3230 = vunpack.c.l.b16 %v2949
    %v3231 = vunpack.c.h.b16 %v2949
    %v3232 = vunpack.c.l.b16 %v2950
    %v3233 = vunpack.c.h.b16 %v2950
    %v3234 = vunpack.c.l.b16 %v2951
    %v3235 = vunpack.c.h.b16 %v2951
    %v3236 = vunpack.c.l.b16 %v2952
    %v3237 = vunpack.c.h.b16 %v2952
    %v3238 = vunpack.c.l.b16 %v2953
    %v3239 = vunpack.c.h.b16 %v2953
    %v3240 = vunpack.c.l.b16 %v2954
    %v3241 = vunpack.c.h.b16 %v2954
    %v3242 = vunpack.c.l.b16 %v2955
    %v3243 = vunpack.c.h.b16 %v2955
    %v3244 = vpack.c.b16 %v3058, %v3052
    %v3245 = vpack.c.b16 %v3059, %v3053
    %v3246 = vpack.c.b16 %v3060, %v3054
    %v3247 = vpack.c.b16 %v3061, %v3055
    %v3248 = vpack.c.b16 %v3062, %v3056
    %v3249 = vpack.c.b16 %v3063, %v3057
    %v3250 = vpack.c.b16 %v3070, %v3064
    %v3251 = vpack.c.b16 %v3071, %v3065
    %v3252 = vpack.c.b16 %v3072, %v3066
    %v3253 = vpack.c.b16 %v3073, %v3067
    %v3254 = vpack.c.b16 %v3074, %v3068
    %v3255 = vpack.c.b16 %v3075, %v3069
    %v3256 = vpack.c.b16 %v3082, %v3076
    %v3257 = vpack.c.b16 %v3083, %v3077
    %v3258 = vpack.c.b16 %v3084, %v3078
    %v3259 = vpack.c.b16 %v3085, %v3079
    %v3260 = vpack.c.b16 %v3086, %v3080
    %v3261 = vpack.c.b16 %v3087, %v3081
    %v3262 = vpack.c.b16 %v3094, %v3088
    %v3263 = vpack.c.b16 %v3095, %v3089
    %v3264 = vpack.c.b16 %v3096, %v3090
    %v3265 = vpack.c.b16 %v3097, %v3091
    %v3266 = vpack.c.b16 %v3098, %v3092
    %v3267 = vpack.c.b16 %v3099, %v3093
    %v3268 = vpack.c.b16 %v3106, %v3100
    %v3269 = vpack.c.b16 %v3107, %v3101
    %v3270 = vpack.c.b16 %v3108, %v3102
    %v3271 = vpack.c.b16 %v3109, %v3103
    %v3272 = vpack.c.b16 %v3110, %v3104
    %v3273 = vpack.c.b16 %v3111, %v3105
    %v3274 = vpack.c.b16 %v3118, %v3112
    %v3275 = vpack.c.b16 %v3119, %v3113
    %v3276 = vpack.c.b16 %v3120, %v3114
    %v3277 = vpack.c.b16 %v3121, %v3115
    %v3278 = vpack.c.b16 %v3122, %v3116
    %v3279 = vpack.c.b16 %v3123, %v3117
    %v3280 = vpack.c.b16 %v3130, %v3124
    %v3281 = vpack.c.b16 %v3131, %v3125
    %v3282 = vpack.c.b16 %v3132, %v3126
    %v3283 = vpack.c.b16 %v3133, %v3127
    %v3284 = vpack.c.b16 %v3134, %v3128
    %v3285 = vpack.c.b16 %v3135, %v3129
    %v3286 = vpack.c.b16 %v3142, %v3136
    %v3287 = vpack.c.b16 %v3143, %v3137
    %v3288 = vpack.c.b16 %v3144, %v3138
    %v3289 = vpack.c.b16 %v3145, %v3139
    %v3290 = vpack.c.b16 %v3146, %v3140
    %v3291 = vpack.c.b16 %v3147, %v3141
    %v3292 = vpack.c.b16 %v3154, %v3148
    %v3293 = vpack.c.b16 %v3155, %v3149
    %v3294 = vpack.c.b16 %v3156, %v3150
    %v3295 = vpack.c.b16 %v3157, %v3151
    %v3296 = vpack.c.b16 %v3158, %v3152
    %v3297 = vpack.c.b16 %v3159, %v3153
    %v3298 = vpack.c.b16 %v3166, %v3160
    %v3299 = vpack.c.b16 %v3167, %v3161
    %v3300 = vpack.c.b16 %v3168, %v3162
    %v3301 = vpack.c.b16 %v3169, %v3163
    %v3302 = vpack.c.b16 %v3170, %v3164
    %v3303 = vpack.c.b16 %v3171, %v3165
    %v3304 = vpack.c.b16 %v3178, %v3172
    %v3305 = vpack.c.b16 %v3179, %v3173
    %v3306 = vpack.c.b16 %v3180, %v3174
    %v3307 = vpack.c.b16 %v3181, %v3175
    %v3308 = vpack.c.b16 %v3182, %v3176
    %v3309 = vpack.c.b16 %v3183, %v3177
    %v3310 = vpack.c.b16 %v3190, %v3184
    %v3311 = vpack.c.b16 %v3191, %v3185
    %v3312 = vpack.c.b16 %v3192, %v3186
    %v3313 = vpack.c.b16 %v3193, %v3187
    %v3314 = vpack.c.b16 %v3194, %v3188
    %v3315 = vpack.c.b16 %v3195, %v3189
    %v3316 = vpack.c.b16 %v3202, %v3196
    %v3317 = vpack.c.b16 %v3203, %v3197
    %v3318 = vpack.c.b16 %v3204, %v3198
    %v3319 = vpack.c.b16 %v3205, %v3199
    %v3320 = vpack.c.b16 %v3206, %v3200
    %v3321 = vpack.c.b16 %v3207, %v3201
    %v3322 = vpack.c.b16 %v3214, %v3208
    %v3323 = vpack.c.b16 %v3215, %v3209
    %v3324 = vpack.c.b16 %v3216, %v3210
    %v3325 = vpack.c.b16 %v3217, %v3211
    %v3326 = vpack.c.b16 %v3218, %v3212
    %v3327 = vpack.c.b16 %v3219, %v3213
    %v3328 = vpack.c.b16 %v3226, %v3220
    %v3329 = vpack.c.b16 %v3227, %v3221
    %v3330 = vpack.c.b16 %v3228, %v3222
    %v3331 = vpack.c.b16 %v3229, %v3223
    %v3332 = vpack.c.b16 %v3230, %v3224
    %v3333 = vpack.c.b16 %v3231, %v3225
    %v3334 = vpack.c.b16 %v3238, %v3232
    %v3335 = vpack.c.b16 %v3239, %v3233
    %v3336 = vpack.c.b16 %v3240, %v3234
    %v3337 = vpack.c.b16 %v3241, %v3235
    %v3338 = vpack.c.b16 %v3242, %v3236
    %v3339 = vpack.c.b16 %v3243, %v3237
    %3436 = vmatprep.subr.bf16.mxu0 %v3287
    %3437 = vmatpush1.bf16.msra.mxu0 %v3286
    %3438 = vmatprep.subr.bf16.mxu0 %v3281
    %3439 = vmatpush1.bf16.msra.mxu0 %v3280
    %3440 = vmatprep.subr.bf16.mxu0 %v3275
    %3441 = vmatpush1.bf16.msra.mxu0 %v3274
    %3442 = vmatprep.subr.bf16.mxu0 %v3269
    %3443 = vmatpush1.bf16.msra.mxu0 %v3268
    %3444 = vmatprep.subr.bf16.mxu0 %v3263
    %3445 = vmatpush1.bf16.msra.mxu0 %v3262
    %3446 = vmatprep.subr.bf16.mxu0 %v3257
    %3447 = vmatpush1.bf16.msra.mxu0 %v3256
    %3448 = vmatprep.subr.bf16.mxu0 %v3251
    %3449 = vmatpush1.bf16.msra.mxu0 %v3250
    %3450 = vmatprep.subr.bf16.mxu0 %v3245
    %3451 = vmatpush1.bf16.msra.mxu0 %v3244
    %3452 = vmatprep.subr.bf16.mxu0 %v3335
    %3453 = vmatpush2.bf16.msra.mxu0 %v3334
    %3454 = vmatprep.subr.bf16.mxu0 %v3329
    %3455 = vmatpush2.bf16.msra.mxu0 %v3328
    %3456 = vmatprep.subr.bf16.mxu0 %v3323
    %3457 = vmatpush2.bf16.msra.mxu0 %v3322
    %3458 = vmatprep.subr.bf16.mxu0 %v3317
    %3459 = vmatpush2.bf16.msra.mxu0 %v3316
    %3460 = vmatprep.subr.bf16.mxu0 %v3311
    %3461 = vmatpush2.bf16.msra.mxu0 %v3310
    %3462 = vmatprep.subr.bf16.mxu0 %v3305
    %3463 = vmatpush2.bf16.msra.mxu0 %v3304
    %3464 = vmatprep.subr.bf16.mxu0 %v3299
    %3465 = vmatpush2.bf16.msra.mxu0 %v3298
    %3466 = vmatprep.subr.bf16.mxu0 %v3293
    %3467 = vmatpush2.bf16.msra.mxu0 %v3292
    %3468 = vmatprep.mubr.bf16.mxu0 %v2859
    %3469 = vmatmul.mubr.bf16.gmra.mxu0 %v2858
    %v3470 = vpop.f32.mrf.mxu0
    %v3471 = vadd.f32 0.0, %v3470
    %v3472 = vpop.f32.mrf.mxu0
    %v3473 = vadd.f32 0.0, %v3472
    %v3474 = vpop.f32.mrf.mxu0
    %v3475 = vadd.f32 0.0, %v3474
    %v3476 = vpop.f32.mrf.mxu0
    %v3477 = vadd.f32 0.0, %v3476
    %3478 = vdwg.mxu0
    %3479 = vmatprep.subr.bf16.mxu0 %v3289
    %3480 = vmatpush1.bf16.msra.mxu0 %v3288
    %3481 = vmatprep.subr.bf16.mxu0 %v3283
    %3482 = vmatpush1.bf16.msra.mxu0 %v3282
    %3483 = vmatprep.subr.bf16.mxu0 %v3277
    %3484 = vmatpush1.bf16.msra.mxu0 %v3276
    %3485 = vmatprep.subr.bf16.mxu0 %v3271
    %3486 = vmatpush1.bf16.msra.mxu0 %v3270
    %3487 = vmatprep.subr.bf16.mxu0 %v3265
    %3488 = vmatpush1.bf16.msra.mxu0 %v3264
    %3489 = vmatprep.subr.bf16.mxu0 %v3259
    %3490 = vmatpush1.bf16.msra.mxu0 %v3258
    %3491 = vmatprep.subr.bf16.mxu0 %v3253
    %3492 = vmatpush1.bf16.msra.mxu0 %v3252
    %3493 = vmatprep.subr.bf16.mxu0 %v3247
    %3494 = vmatpush1.bf16.msra.mxu0 %v3246
    %3495 = vmatprep.subr.bf16.mxu0 %v3337
    %3496 = vmatpush2.bf16.msra.mxu0 %v3336
    %3497 = vmatprep.subr.bf16.mxu0 %v3331
    %3498 = vmatpush2.bf16.msra.mxu0 %v3330
    %3499 = vmatprep.subr.bf16.mxu0 %v3325
    %3500 = vmatpush2.bf16.msra.mxu0 %v3324
    %3501 = vmatprep.subr.bf16.mxu0 %v3319
    %3502 = vmatpush2.bf16.msra.mxu0 %v3318
    %3503 = vmatprep.subr.bf16.mxu0 %v3313
    %3504 = vmatpush2.bf16.msra.mxu0 %v3312
    %3505 = vmatprep.subr.bf16.mxu0 %v3307
    %3506 = vmatpush2.bf16.msra.mxu0 %v3306
    %3507 = vmatprep.subr.bf16.mxu0 %v3301
    %3508 = vmatpush2.bf16.msra.mxu0 %v3300
    %3509 = vmatprep.subr.bf16.mxu0 %v3295
    %3510 = vmatpush2.bf16.msra.mxu0 %v3294
    %3511 = vmatprep.mubr.bf16.mxu0 %v2859
    %3512 = vmatmul.mubr.bf16.gmra.mxu0 %v2858
    %v3513 = vpop.f32.mrf.mxu0
    %v3514 = vadd.f32 0.0, %v3513
    %v3515 = vpop.f32.mrf.mxu0
    %v3516 = vadd.f32 0.0, %v3515
    %v3517 = vpop.f32.mrf.mxu0
    %v3518 = vadd.f32 0.0, %v3517
    %v3519 = vpop.f32.mrf.mxu0
    %v3520 = vadd.f32 0.0, %v3519
    %3521 = vdwg.mxu0
    %3522 = vmatprep.subr.bf16.mxu0 %v3291
    %3523 = vmatpush1.bf16.msra.mxu0 %v3290
    %3524 = vmatprep.subr.bf16.mxu0 %v3285
    %3525 = vmatpush1.bf16.msra.mxu0 %v3284
    %3526 = vmatprep.subr.bf16.mxu0 %v3279
    %3527 = vmatpush1.bf16.msra.mxu0 %v3278
    %3528 = vmatprep.subr.bf16.mxu0 %v3273
    %3529 = vmatpush1.bf16.msra.mxu0 %v3272
    %3530 = vmatprep.subr.bf16.mxu0 %v3267
    %3531 = vmatpush1.bf16.msra.mxu0 %v3266
    %3532 = vmatprep.subr.bf16.mxu0 %v3261
    %3533 = vmatpush1.bf16.msra.mxu0 %v3260
    %3534 = vmatprep.subr.bf16.mxu0 %v3255
    %3535 = vmatpush1.bf16.msra.mxu0 %v3254
    %3536 = vmatprep.subr.bf16.mxu0 %v3249
    %3537 = vmatpush1.bf16.msra.mxu0 %v3248
    %3538 = vmatprep.subr.bf16.mxu0 %v3339
    %3539 = vmatpush2.bf16.msra.mxu0 %v3338
    %3540 = vmatprep.subr.bf16.mxu0 %v3333
    %3541 = vmatpush2.bf16.msra.mxu0 %v3332
    %3542 = vmatprep.subr.bf16.mxu0 %v3327
    %3543 = vmatpush2.bf16.msra.mxu0 %v3326
    %3544 = vmatprep.subr.bf16.mxu0 %v3321
    %3545 = vmatpush2.bf16.msra.mxu0 %v3320
    %3546 = vmatprep.subr.bf16.mxu0 %v3315
    %3547 = vmatpush2.bf16.msra.mxu0 %v3314
    %3548 = vmatprep.subr.bf16.mxu0 %v3309
    %3549 = vmatpush2.bf16.msra.mxu0 %v3308
    %3550 = vmatprep.subr.bf16.mxu0 %v3303
    %3551 = vmatpush2.bf16.msra.mxu0 %v3302
    %3552 = vmatprep.subr.bf16.mxu0 %v3297
    %3553 = vmatpush2.bf16.msra.mxu0 %v3296
    %3554 = vmatprep.mubr.bf16.mxu0 %v2859
    %3555 = vmatmul.mubr.bf16.gmra.mxu0 %v2858
    %v3556 = vpop.f32.mrf.mxu0
    %v3557 = vadd.f32 0.0, %v3556
    %v3558 = vpop.f32.mrf.mxu0
    %v3559 = vadd.f32 0.0, %v3558
    %v3560 = vpop.f32.mrf.mxu0
    %v3561 = vadd.f32 0.0, %v3560
    %v3562 = vpop.f32.mrf.mxu0
    %v3563 = vadd.f32 0.0, %v3562
    %3564 = vdwg.mxu0
    %s3565 = scalar_lea.vmem %s5, 392
    %v3566 = vld [vmem:[%s3565] sm:$0xff]
    %v3567 = vld [vmem:[%s3565 + $0x8] sm:$0xff]
    %v3568 = vld [vmem:[%s3565 + $0x10] sm:$0xff]
    %v3569 = vld [vmem:[%s3565 + $0x18] sm:$0x3]
    %s3570 = scalar_lea.vmem %s5, 448
    %v3571 = vld [vmem:[%s3570] sm:$0xff]
    %v3572 = vld [vmem:[%s3570 + $0x8] sm:$0xff]
    %v3573 = vld [vmem:[%s3570 + $0x10] sm:$0xff]
    %v3574 = vld [vmem:[%s3570 + $0x18] sm:$0x3]
    %vm3575 = vcmask 97280
    %v3577 = vsel %vm3575, %v3571, 0
    %v3580 = vsel %vm3575, %v3572, 0
    %v3583 = vsel %vm3575, %v3573, 0
    %v3586 = vsel %vm3575, %v3574, 0
    %v3589 = vsel %vm531, %v3518, 0
    %v3592 = vsel %vm531, %v3520, 0
    %3594 = vmatprep.subr.mxu0 0.0
    %3595 = vmatpush1.msra.mxu0 0.0
    %3596 = vmatprep.subr.mxu0 0.0
    %3597 = vmatpush1.msra.mxu0 0.0
    %3598 = vmatprep.subr.mxu0 0.0
    %3599 = vmatpush1.msra.mxu0 0.0
    %3600 = vmatprep.subr.mxu0 0.0
    %3601 = vmatpush1.msra.mxu0 0.0
    %3602 = vmatprep.subr.mxu0 0.0
    %3603 = vmatpush1.msra.mxu0 0.0
    %3604 = vmatprep.subr.mxu0 0.0
    %3605 = vmatpush1.msra.mxu0 0.0
    %3606 = vmatprep.subr.mxu0 0.0
    %3607 = vmatpush1.msra.mxu0 0.0
    %3608 = vmatprep.subr.mxu0 0.0
    %3609 = vmatpush1.msra.mxu0 0.0
    %3610 = vmatprep.subr.mxu0 0.0
    %3611 = vmatpush1.msra.mxu0 0.0
    %3612 = vmatprep.subr.mxu0 0.0
    %3613 = vmatpush1.msra.mxu0 0.0
    %3614 = vmatprep.subr.mxu0 0.0
    %3615 = vmatpush1.msra.mxu0 0.0
    %3616 = vmatprep.subr.mxu0 0.0
    %3617 = vmatpush1.msra.mxu0 0.0
    %3618 = vmatprep.subr.mxu0 0.0
    %3619 = vmatpush1.msra.mxu0 0.0
    %3620 = vmatprep.subr.mxu0 0.0
    %3621 = vmatpush1.msra.mxu0 0.0
    %3622 = vmatprep.subr.mxu0 %v3592
    %3623 = vmatpush1.msra.mxu0 %v3589
    %3624 = vmatprep.subr.mxu0 %v3516
    %3625 = vmatpush1.msra.mxu0 %v3514
    %3626 = vmatprep.subr.mxu0 0.0
    %3627 = vmatpush2.msra.mxu0 0.0
    %3628 = vmatprep.subr.mxu0 0.0
    %3629 = vmatpush2.msra.mxu0 0.0
    %3630 = vmatprep.subr.mxu0 0.0
    %3631 = vmatpush2.msra.mxu0 0.0
    %3632 = vmatprep.subr.mxu0 0.0
    %3633 = vmatpush2.msra.mxu0 0.0
    %3634 = vmatprep.subr.mxu0 0.0
    %3635 = vmatpush2.msra.mxu0 0.0
    %3636 = vmatprep.subr.mxu0 0.0
    %3637 = vmatpush2.msra.mxu0 0.0
    %3638 = vmatprep.subr.mxu0 0.0
    %3639 = vmatpush2.msra.mxu0 0.0
    %3640 = vmatprep.subr.mxu0 0.0
    %3641 = vmatpush2.msra.mxu0 0.0
    %3642 = vmatprep.subr.mxu0 0.0
    %3643 = vmatpush2.msra.mxu0 0.0
    %3644 = vmatprep.subr.mxu0 0.0
    %3645 = vmatpush2.msra.mxu0 0.0
    %3646 = vmatprep.subr.mxu0 0.0
    %3647 = vmatpush2.msra.mxu0 0.0
    %3648 = vmatprep.subr.mxu0 0.0
    %3649 = vmatpush2.msra.mxu0 0.0
    %3650 = vmatprep.subr.mxu0 0.0
    %3651 = vmatpush2.msra.mxu0 0.0
    %3652 = vmatprep.subr.mxu0 0.0
    %3653 = vmatpush2.msra.mxu0 0.0
    %3654 = vmatprep.subr.mxu0 0.0
    %3655 = vmatpush2.msra.mxu0 0.0
    %3656 = vmatprep.subr.mxu0 0.0
    %3657 = vmatpush2.msra.mxu0 0.0
    %3658 = vmatprep.mubr.f32.mxu0 0.0
    %3659 = vmatmul.mubr.f32.gmra.mxu0 %v3577
    %v3660 = vpop.f32.mrf.mxu0
    %v3661 = vadd.f32 0.0, %v3660
    %v3662 = vpop.f32.mrf.mxu0
    %v3663 = vadd.f32 0.0, %v3662
    %3664 = vmatprep.mubr.f32.mxu0 0.0
    %3665 = vmatmul.mubr.f32.gmra.mxu0 %v3580
    %v3666 = vpop.f32.mrf.mxu0
    %v3667 = vadd.f32 0.0, %v3666
    %v3668 = vpop.f32.mrf.mxu0
    %v3669 = vadd.f32 0.0, %v3668
    %3670 = vmatprep.mubr.f32.mxu0 0.0
    %3671 = vmatmul.mubr.f32.gmra.mxu0 %v3583
    %v3672 = vpop.f32.mrf.mxu0
    %v3673 = vadd.f32 0.0, %v3672
    %v3674 = vpop.f32.mrf.mxu0
    %v3675 = vadd.f32 0.0, %v3674
    %3676 = vmatprep.mubr.f32.mxu0 0.0
    %3677 = vmatmul.mubr.f32.gmra.mxu0 %v3586
    %v3678 = vpop.f32.mrf.mxu0
    %v3679 = vadd.f32 0.0, %v3678
    %v3680 = vpop.f32.mrf.mxu0
    %v3681 = vadd.f32 0.0, %v3680
    %3682 = vdwg.mxu0
    %v3684 = vsel %vm3575, %v3566, 0
    %v3687 = vsel %vm3575, %v3567, 0
    %v3690 = vsel %vm3575, %v3568, 0
    %v3693 = vsel %vm3575, %v3569, 0
    %v3696 = vsel %vm531, %v3475, 0
    %v3699 = vsel %vm531, %v3477, 0
    %3701 = vmatprep.subr.mxu0 0.0
    %3702 = vmatpush1.msra.mxu0 0.0
    %3703 = vmatprep.subr.mxu0 0.0
    %3704 = vmatpush1.msra.mxu0 0.0
    %3705 = vmatprep.subr.mxu0 0.0
    %3706 = vmatpush1.msra.mxu0 0.0
    %3707 = vmatprep.subr.mxu0 0.0
    %3708 = vmatpush1.msra.mxu0 0.0
    %3709 = vmatprep.subr.mxu0 0.0
    %3710 = vmatpush1.msra.mxu0 0.0
    %3711 = vmatprep.subr.mxu0 0.0
    %3712 = vmatpush1.msra.mxu0 0.0
    %3713 = vmatprep.subr.mxu0 0.0
    %3714 = vmatpush1.msra.mxu0 0.0
    %3715 = vmatprep.subr.mxu0 0.0
    %3716 = vmatpush1.msra.mxu0 0.0
    %3717 = vmatprep.subr.mxu0 0.0
    %3718 = vmatpush1.msra.mxu0 0.0
    %3719 = vmatprep.subr.mxu0 0.0
    %3720 = vmatpush1.msra.mxu0 0.0
    %3721 = vmatprep.subr.mxu0 0.0
    %3722 = vmatpush1.msra.mxu0 0.0
    %3723 = vmatprep.subr.mxu0 0.0
    %3724 = vmatpush1.msra.mxu0 0.0
    %3725 = vmatprep.subr.mxu0 0.0
    %3726 = vmatpush1.msra.mxu0 0.0
    %3727 = vmatprep.subr.mxu0 0.0
    %3728 = vmatpush1.msra.mxu0 0.0
    %3729 = vmatprep.subr.mxu0 %v3699
    %3730 = vmatpush1.msra.mxu0 %v3696
    %3731 = vmatprep.subr.mxu0 %v3473
    %3732 = vmatpush1.msra.mxu0 %v3471
    %3733 = vmatprep.subr.mxu0 0.0
    %3734 = vmatpush2.msra.mxu0 0.0
    %3735 = vmatprep.subr.mxu0 0.0
    %3736 = vmatpush2.msra.mxu0 0.0
    %3737 = vmatprep.subr.mxu0 0.0
    %3738 = vmatpush2.msra.mxu0 0.0
    %3739 = vmatprep.subr.mxu0 0.0
    %3740 = vmatpush2.msra.mxu0 0.0
    %3741 = vmatprep.subr.mxu0 0.0
    %3742 = vmatpush2.msra.mxu0 0.0
    %3743 = vmatprep.subr.mxu0 0.0
    %3744 = vmatpush2.msra.mxu0 0.0
    %3745 = vmatprep.subr.mxu0 0.0
    %3746 = vmatpush2.msra.mxu0 0.0
    %3747 = vmatprep.subr.mxu0 0.0
    %3748 = vmatpush2.msra.mxu0 0.0
    %3749 = vmatprep.subr.mxu0 0.0
    %3750 = vmatpush2.msra.mxu0 0.0
    %3751 = vmatprep.subr.mxu0 0.0
    %3752 = vmatpush2.msra.mxu0 0.0
    %3753 = vmatprep.subr.mxu0 0.0
    %3754 = vmatpush2.msra.mxu0 0.0
    %3755 = vmatprep.subr.mxu0 0.0
    %3756 = vmatpush2.msra.mxu0 0.0
    %3757 = vmatprep.subr.mxu0 0.0
    %3758 = vmatpush2.msra.mxu0 0.0
    %3759 = vmatprep.subr.mxu0 0.0
    %3760 = vmatpush2.msra.mxu0 0.0
    %3761 = vmatprep.subr.mxu0 0.0
    %3762 = vmatpush2.msra.mxu0 0.0
    %3763 = vmatprep.subr.mxu0 0.0
    %3764 = vmatpush2.msra.mxu0 0.0
    %3765 = vmatprep.mubr.f32.mxu0 0.0
    %3766 = vmatmul.mubr.f32.gmra.mxu0 %v3684
    %v3767 = vpop.f32.mrf.mxu0
    %v3768 = vadd.f32 %v3661, %v3767
    %v3769 = vpop.f32.mrf.mxu0
    %v3770 = vadd.f32 %v3663, %v3769
    %3771 = vmatprep.mubr.f32.mxu0 0.0
    %3772 = vmatmul.mubr.f32.gmra.mxu0 %v3687
    %v3773 = vpop.f32.mrf.mxu0
    %v3774 = vadd.f32 %v3667, %v3773
    %v3775 = vpop.f32.mrf.mxu0
    %v3776 = vadd.f32 %v3669, %v3775
    %3777 = vmatprep.mubr.f32.mxu0 0.0
    %3778 = vmatmul.mubr.f32.gmra.mxu0 %v3690
    %v3779 = vpop.f32.mrf.mxu0
    %v3780 = vadd.f32 %v3673, %v3779
    %v3781 = vpop.f32.mrf.mxu0
    %v3782 = vadd.f32 %v3675, %v3781
    %3783 = vmatprep.mubr.f32.mxu0 0.0
    %3784 = vmatmul.mubr.f32.gmra.mxu0 %v3693
    %v3785 = vpop.f32.mrf.mxu0
    %v3786 = vadd.f32 %v3679, %v3785
    %v3787 = vpop.f32.mrf.mxu0
    %v3788 = vadd.f32 %v3681, %v3787
    %3789 = vdwg.mxu0
    %s3790 = scalar_lea.vmem %s5, 504
    %v3791 = vld [vmem:[%s3790] sm:$0xff]
    %v3792 = vld [vmem:[%s3790 + $0x8] sm:$0xff]
    %v3793 = vld [vmem:[%s3790 + $0x10] sm:$0xff]
    %v3794 = vld [vmem:[%s3790 + $0x18] sm:$0x3]
    %v3796 = vsel %vm3575, %v3791, 0
    %v3799 = vsel %vm3575, %v3792, 0
    %v3802 = vsel %vm3575, %v3793, 0
    %v3805 = vsel %vm3575, %v3794, 0
    %v3808 = vsel %vm531, %v3561, 0
    %v3811 = vsel %vm531, %v3563, 0
    %3813 = vmatprep.subr.mxu0 0.0
    %3814 = vmatpush1.msra.mxu0 0.0
    %3815 = vmatprep.subr.mxu0 0.0
    %3816 = vmatpush1.msra.mxu0 0.0
    %3817 = vmatprep.subr.mxu0 0.0
    %3818 = vmatpush1.msra.mxu0 0.0
    %3819 = vmatprep.subr.mxu0 0.0
    %3820 = vmatpush1.msra.mxu0 0.0
    %3821 = vmatprep.subr.mxu0 0.0
    %3822 = vmatpush1.msra.mxu0 0.0
    %3823 = vmatprep.subr.mxu0 0.0
    %3824 = vmatpush1.msra.mxu0 0.0
    %3825 = vmatprep.subr.mxu0 0.0
    %3826 = vmatpush1.msra.mxu0 0.0
    %3827 = vmatprep.subr.mxu0 0.0
    %3828 = vmatpush1.msra.mxu0 0.0
    %3829 = vmatprep.subr.mxu0 0.0
    %3830 = vmatpush1.msra.mxu0 0.0
    %3831 = vmatprep.subr.mxu0 0.0
    %3832 = vmatpush1.msra.mxu0 0.0
    %3833 = vmatprep.subr.mxu0 0.0
    %3834 = vmatpush1.msra.mxu0 0.0
    %3835 = vmatprep.subr.mxu0 0.0
    %3836 = vmatpush1.msra.mxu0 0.0
    %3837 = vmatprep.subr.mxu0 0.0
    %3838 = vmatpush1.msra.mxu0 0.0
    %3839 = vmatprep.subr.mxu0 0.0
    %3840 = vmatpush1.msra.mxu0 0.0
    %3841 = vmatprep.subr.mxu0 %v3811
    %3842 = vmatpush1.msra.mxu0 %v3808
    %3843 = vmatprep.subr.mxu0 %v3559
    %3844 = vmatpush1.msra.mxu0 %v3557
    %3845 = vmatprep.subr.mxu0 0.0
    %3846 = vmatpush2.msra.mxu0 0.0
    %3847 = vmatprep.subr.mxu0 0.0
    %3848 = vmatpush2.msra.mxu0 0.0
    %3849 = vmatprep.subr.mxu0 0.0
    %3850 = vmatpush2.msra.mxu0 0.0
    %3851 = vmatprep.subr.mxu0 0.0
    %3852 = vmatpush2.msra.mxu0 0.0
    %3853 = vmatprep.subr.mxu0 0.0
    %3854 = vmatpush2.msra.mxu0 0.0
    %3855 = vmatprep.subr.mxu0 0.0
    %3856 = vmatpush2.msra.mxu0 0.0
    %3857 = vmatprep.subr.mxu0 0.0
    %3858 = vmatpush2.msra.mxu0 0.0
    %3859 = vmatprep.subr.mxu0 0.0
    %3860 = vmatpush2.msra.mxu0 0.0
    %3861 = vmatprep.subr.mxu0 0.0
    %3862 = vmatpush2.msra.mxu0 0.0
    %3863 = vmatprep.subr.mxu0 0.0
    %3864 = vmatpush2.msra.mxu0 0.0
    %3865 = vmatprep.subr.mxu0 0.0
    %3866 = vmatpush2.msra.mxu0 0.0
    %3867 = vmatprep.subr.mxu0 0.0
    %3868 = vmatpush2.msra.mxu0 0.0
    %3869 = vmatprep.subr.mxu0 0.0
    %3870 = vmatpush2.msra.mxu0 0.0
    %3871 = vmatprep.subr.mxu0 0.0
    %3872 = vmatpush2.msra.mxu0 0.0
    %3873 = vmatprep.subr.mxu0 0.0
    %3874 = vmatpush2.msra.mxu0 0.0
    %3875 = vmatprep.subr.mxu0 0.0
    %3876 = vmatpush2.msra.mxu0 0.0
    %3877 = vmatprep.mubr.f32.mxu0 0.0
    %3878 = vmatmul.mubr.f32.gmra.mxu0 %v3796
    %v3879 = vpop.f32.mrf.mxu0
    %v3880 = vadd.f32 0.0, %v3879
    %v3881 = vpop.f32.mrf.mxu0
    %v3882 = vadd.f32 0.0, %v3881
    %3883 = vmatprep.mubr.f32.mxu0 0.0
    %3884 = vmatmul.mubr.f32.gmra.mxu0 %v3799
    %v3885 = vpop.f32.mrf.mxu0
    %v3886 = vadd.f32 0.0, %v3885
    %v3887 = vpop.f32.mrf.mxu0
    %v3888 = vadd.f32 0.0, %v3887
    %3889 = vmatprep.mubr.f32.mxu0 0.0
    %3890 = vmatmul.mubr.f32.gmra.mxu0 %v3802
    %v3891 = vpop.f32.mrf.mxu0
    %v3892 = vadd.f32 0.0, %v3891
    %v3893 = vpop.f32.mrf.mxu0
    %v3894 = vadd.f32 0.0, %v3893
    %3895 = vmatprep.mubr.f32.mxu0 0.0
    %3896 = vmatmul.mubr.f32.gmra.mxu0 %v3805
    %v3897 = vpop.f32.mrf.mxu0
    %v3898 = vadd.f32 0.0, %v3897
    %v3899 = vpop.f32.mrf.mxu0
    %v3900 = vadd.f32 0.0, %v3899
    %3901 = vdwg.mxu0
    %v3902 = vadd.f32 %v3768, %v3880
    %v3903 = vadd.f32 %v3770, %v3882
    %v3904 = vadd.f32 %v3774, %v3886
    %v3905 = vadd.f32 %v3776, %v3888
    %v3906 = vadd.f32 %v3780, %v3892
    %v3907 = vadd.f32 %v3782, %v3894
    %v3908 = vadd.f32 %v3786, %v3898
    %v3909 = vadd.f32 %v3788, %v3900
    %s3910 = scalar_lea.vmem %s6, 256
    %v3911 = vld [vmem:[%s3910] sm:$0xf]
    %v3912 = vld [vmem:[%s3910 + $0x4] sm:$0xf]
    %v3913 = vld [vmem:[%s3910 + $0x8] sm:$0xf]
    %v3914 = vld [vmem:[%s3910 + $0xc] sm:$0xf]
    %v3915 = vld [vmem:[%s3910 + $0x10] sm:$0xf]
    %v3916 = vld [vmem:[%s3910 + $0x14] sm:$0xf]
    %v3917 = vld [vmem:[%s3910 + $0x18] sm:$0xf]
    %v3918 = vld [vmem:[%s3910 + $0x1c] sm:$0xf]
    %v3919 = vld [vmem:[%s3910 + $0x20] sm:$0xf]
    %v3920 = vld [vmem:[%s3910 + $0x24] sm:$0xf]
    %v3921 = vld [vmem:[%s3910 + $0x28] sm:$0xf]
    %v3922 = vld [vmem:[%s3910 + $0x2c] sm:$0xf]
    %v3923 = vld [vmem:[%s3910 + $0x30] sm:$0xf]
    %v3924 = vld [vmem:[%s3910 + $0x34] sm:$0xf]
    %v3925 = vld [vmem:[%s3910 + $0x38] sm:$0xf]
    %v3926 = vld [vmem:[%s3910 + $0x3c] sm:$0xf]
    %v3927 = vld [vmem:[%s3910 + $0x40] sm:$0xf]
    %v3928 = vld [vmem:[%s3910 + $0x44] sm:$0xf]
    %v3929 = vld [vmem:[%s3910 + $0x48] sm:$0xf]
    %v3930 = vld [vmem:[%s3910 + $0x4c] sm:$0xf]
    %v3931 = vld [vmem:[%s3910 + $0x50] sm:$0xf]
    %v3932 = vld [vmem:[%s3910 + $0x54] sm:$0xf]
    %v3933 = vld [vmem:[%s3910 + $0x58] sm:$0xf]
    %v3934 = vld [vmem:[%s3910 + $0x5c] sm:$0xf]
    %v3935 = vld [vmem:[%s3910 + $0x60] sm:$0xf]
    %v3936 = vld [vmem:[%s3910 + $0x64] sm:$0xf]
    %v3937 = vld [vmem:[%s3910 + $0x68] sm:$0xf]
    %v3938 = vld [vmem:[%s3910 + $0x6c] sm:$0xf]
    %v3939 = vld [vmem:[%s3910 + $0x70] sm:$0xf]
    %v3940 = vld [vmem:[%s3910 + $0x74] sm:$0xf]
    %v3941 = vld [vmem:[%s3910 + $0x78] sm:$0xf]
    %v3942 = vld [vmem:[%s3910 + $0x7c] sm:$0xf]
    %v3943 = vunpack.c.l.bf16 %v3911
    %v3944 = vunpack.c.l.bf16 %v3912
    %v3945 = vunpack.c.l.bf16 %v3913
    %v3946 = vunpack.c.l.bf16 %v3914
    %v3947 = vunpack.c.l.bf16 %v3915
    %v3948 = vunpack.c.l.bf16 %v3916
    %v3949 = vunpack.c.l.bf16 %v3917
    %v3950 = vunpack.c.l.bf16 %v3918
    %v3951 = vunpack.c.l.bf16 %v3919
    %v3952 = vunpack.c.l.bf16 %v3920
    %v3953 = vunpack.c.l.bf16 %v3921
    %v3954 = vunpack.c.l.bf16 %v3922
    %v3955 = vunpack.c.l.bf16 %v3923
    %v3956 = vunpack.c.l.bf16 %v3924
    %v3957 = vunpack.c.l.bf16 %v3925
    %v3958 = vunpack.c.l.bf16 %v3926
    %v3959 = vunpack.c.l.bf16 %v3927
    %v3960 = vunpack.c.l.bf16 %v3928
    %v3961 = vunpack.c.l.bf16 %v3929
    %v3962 = vunpack.c.l.bf16 %v3930
    %v3963 = vunpack.c.l.bf16 %v3931
    %v3964 = vunpack.c.l.bf16 %v3932
    %v3965 = vunpack.c.l.bf16 %v3933
    %v3966 = vunpack.c.l.bf16 %v3934
    %v3967 = vunpack.c.l.bf16 %v3935
    %v3968 = vunpack.c.l.bf16 %v3936
    %v3969 = vunpack.c.l.bf16 %v3937
    %v3970 = vunpack.c.l.bf16 %v3938
    %v3971 = vunpack.c.l.bf16 %v3939
    %v3972 = vunpack.c.l.bf16 %v3940
    %v3973 = vunpack.c.l.bf16 %v3941
    %v3974 = vunpack.c.l.bf16 %v3942
    %s3975 = scalar_lea.vmem %s7, 128
    %v3976 = vld [vmem:[%s3975] sm:$0xff]
    %v3977 = vld [vmem:[%s3975 + $0x8] sm:$0xff]
    %v3978 = vunpack.c.l.bf16 %v3976
    %v3979 = vunpack.c.h.bf16 %v3976
    %v3980 = vunpack.c.l.bf16 %v3977
    %v3981 = vunpack.c.h.bf16 %v3977
    %v3982 = vld [vmem:[%s8 + $0x4] sm:$0x1]
    %v3983 = vld [vmem:[%s8 + $0x5] sm:$0x1]
    %v3984 = vadd.f32 %v3902, %v3904
    %v3985 = vadd.f32 %v3984, %v3906
    %v3986 = vsel %vm680, %v3908, 0.0
    %v3987 = vadd.f32 %v3985, %v3986
    %v3988 = vrot.slane %v3987, 4
    %v3989 = vadd.f32 %v3987, %v3988
    %v3990 = vrot.slane %v3989, 2
    %v3991 = vadd.f32 %v3989, %v3990
    %v3992 = vrot.slane %v3991, 1
    %v3993 = vadd.f32 %v3991, %v3992
    %v3994 = vadd.f32 %v3903, %v3905
    %v3995 = vadd.f32 %v3994, %v3907
    %v3996 = vsel %vm680, %v3909, 0.0
    %v3997 = vadd.f32 %v3995, %v3996
    %v3998 = vrot.slane %v3997, 4
    %v3999 = vadd.f32 %v3997, %v3998
    %v4000 = vrot.slane %v3999, 2
    %v4001 = vadd.f32 %v3999, %v4000
    %v4002 = vrot.slane %v4001, 1
    %v4003 = vadd.f32 %v4001, %v4002
    %v4004 = vmul.f32 %v3902, %v3902
    %v4005 = vmul.f32 %v3903, %v3903
    %v4006 = vmul.f32 %v3904, %v3904
    %v4007 = vmul.f32 %v3905, %v3905
    %v4008 = vmul.f32 %v3906, %v3906
    %v4009 = vmul.f32 %v3907, %v3907
    %v4010 = vmul.f32 %v3908, %v3908
    %v4011 = vmul.f32 %v3909, %v3909
    %v4012 = vadd.f32 %v4004, %v4006
    %v4013 = vadd.f32 %v4012, %v4008
    %v4014 = vsel %vm680, %v4010, 0.0
    %v4015 = vadd.f32 %v4013, %v4014
    %v4016 = vrot.slane %v4015, 4
    %v4017 = vadd.f32 %v4015, %v4016
    %v4018 = vrot.slane %v4017, 2
    %v4019 = vadd.f32 %v4017, %v4018
    %v4020 = vrot.slane %v4019, 1
    %v4021 = vadd.f32 %v4019, %v4020
    %v4022 = vadd.f32 %v4005, %v4007
    %v4023 = vadd.f32 %v4022, %v4009
    %v4024 = vsel %vm680, %v4011, 0.0
    %v4025 = vadd.f32 %v4023, %v4024
    %v4026 = vrot.slane %v4025, 4
    %v4027 = vadd.f32 %v4025, %v4026
    %v4028 = vrot.slane %v4027, 2
    %v4029 = vadd.f32 %v4027, %v4028
    %v4030 = vrot.slane %v4029, 1
    %v4031 = vadd.f32 %v4029, %v4030
    %v4032 = vsel %vm1043, %v3993, %v4021
    %v4033 = vsel %vm1043, %v4003, %v4031
    %4034 = vmatprep.subr.mxu0 0.0
    %4035 = vmatpush1.msra.mxu0 %v3958
    %4036 = vmatprep.subr.mxu0 0.0
    %4037 = vmatpush1.msra.mxu0 %v3957
    %4038 = vmatprep.subr.mxu0 0.0
    %4039 = vmatpush1.msra.mxu0 %v3956
    %4040 = vmatprep.subr.mxu0 0.0
    %4041 = vmatpush1.msra.mxu0 %v3955
    %4042 = vmatprep.subr.mxu0 0.0
    %4043 = vmatpush1.msra.mxu0 %v3954
    %4044 = vmatprep.subr.mxu0 0.0
    %4045 = vmatpush1.msra.mxu0 %v3953
    %4046 = vmatprep.subr.mxu0 0.0
    %4047 = vmatpush1.msra.mxu0 %v3952
    %4048 = vmatprep.subr.mxu0 0.0
    %4049 = vmatpush1.msra.mxu0 %v3951
    %4050 = vmatprep.subr.mxu0 0.0
    %4051 = vmatpush1.msra.mxu0 %v3950
    %4052 = vmatprep.subr.mxu0 0.0
    %4053 = vmatpush1.msra.mxu0 %v3949
    %4054 = vmatprep.subr.mxu0 0.0
    %4055 = vmatpush1.msra.mxu0 %v3948
    %4056 = vmatprep.subr.mxu0 0.0
    %4057 = vmatpush1.msra.mxu0 %v3947
    %4058 = vmatprep.subr.mxu0 0.0
    %4059 = vmatpush1.msra.mxu0 %v3946
    %4060 = vmatprep.subr.mxu0 0.0
    %4061 = vmatpush1.msra.mxu0 %v3945
    %4062 = vmatprep.subr.mxu0 0.0
    %4063 = vmatpush1.msra.mxu0 %v3944
    %4064 = vmatprep.subr.mxu0 0.0
    %4065 = vmatpush1.msra.mxu0 %v3943
    %4066 = vmatprep.subr.mxu0 0.0
    %4067 = vmatpush2.msra.mxu0 %v3974
    %4068 = vmatprep.subr.mxu0 0.0
    %4069 = vmatpush2.msra.mxu0 %v3973
    %4070 = vmatprep.subr.mxu0 0.0
    %4071 = vmatpush2.msra.mxu0 %v3972
    %4072 = vmatprep.subr.mxu0 0.0
    %4073 = vmatpush2.msra.mxu0 %v3971
    %4074 = vmatprep.subr.mxu0 0.0
    %4075 = vmatpush2.msra.mxu0 %v3970
    %4076 = vmatprep.subr.mxu0 0.0
    %4077 = vmatpush2.msra.mxu0 %v3969
    %4078 = vmatprep.subr.mxu0 0.0
    %4079 = vmatpush2.msra.mxu0 %v3968
    %4080 = vmatprep.subr.mxu0 0.0
    %4081 = vmatpush2.msra.mxu0 %v3967
    %4082 = vmatprep.subr.mxu0 0.0
    %4083 = vmatpush2.msra.mxu0 %v3966
    %4084 = vmatprep.subr.mxu0 0.0
    %4085 = vmatpush2.msra.mxu0 %v3965
    %4086 = vmatprep.subr.mxu0 0.0
    %4087 = vmatpush2.msra.mxu0 %v3964
    %4088 = vmatprep.subr.mxu0 0.0
    %4089 = vmatpush2.msra.mxu0 %v3963
    %4090 = vmatprep.subr.mxu0 0.0
    %4091 = vmatpush2.msra.mxu0 %v3962
    %4092 = vmatprep.subr.mxu0 0.0
    %4093 = vmatpush2.msra.mxu0 %v3961
    %4094 = vmatprep.subr.mxu0 0.0
    %4095 = vmatpush2.msra.mxu0 %v3960
    %4096 = vmatprep.subr.mxu0 0.0
    %4097 = vmatpush2.msra.mxu0 %v3959
    %4098 = vmatprep.mubr.f32.mxu0 %v4033
    %4099 = vmatmul.mubr.f32.gmra.mxu0 %v4032
    %v4100 = vpop.f32.mrf.mxu0
    %v4101 = vadd.f32 0.0, %v4100
    %v4102 = vpop.f32.mrf.mxu0
    %4103 = vdwg.mxu0
    %v4104 = vmul.f32 %v4101, 0.00295858
    %v4105 = vmul.f32 %v4104, %v4104
    %v4107 = vrot.slane %v4105, 7
    %v4109 = vsub.f32 %v4104, %v4107
    %v4110 = vadd.f32 %v4109, 1e-05
    %v4111 = vrsqrt.pop %v4110
    %v4113 = vrot.slane %v4111, 1
    %v4115 = vmul.f32 %v3982, %v4113
    %v4116 = vmul.f32 %v4104, %v4115
    %v4117 = vsub.f32 %v3983, %v4116
    %v4119 = vrot.slane %v4117, 7
    %v4121 = vsel %vm1043, %v4115, %v4119
    %vm4122 = vcmask 130048
    %v4124 = vsel %vm4122, %v4121, 0
    %4126 = vmatprep.subr.mxu0 0.0
    %4127 = vmatpush1.msra.mxu0 0.0
    %4128 = vmatprep.subr.mxu0 0.0
    %4129 = vmatpush1.msra.mxu0 0.0
    %4130 = vmatprep.subr.mxu0 0.0
    %4131 = vmatpush1.msra.mxu0 0.0
    %4132 = vmatprep.subr.mxu0 0.0
    %4133 = vmatpush1.msra.mxu0 0.0
    %4134 = vmatprep.subr.mxu0 0.0
    %4135 = vmatpush1.msra.mxu0 0.0
    %4136 = vmatprep.subr.mxu0 0.0
    %4137 = vmatpush1.msra.mxu0 0.0
    %4138 = vmatprep.subr.mxu0 0.0
    %4139 = vmatpush1.msra.mxu0 0.0
    %4140 = vmatprep.subr.mxu0 0.0
    %4141 = vmatpush1.msra.mxu0 0.0
    %4142 = vmatprep.subr.mxu0 0.0
    %4143 = vmatpush1.msra.mxu0 0.0
    %4144 = vmatprep.subr.mxu0 0.0
    %4145 = vmatpush1.msra.mxu0 0.0
    %4146 = vmatprep.subr.mxu0 0.0
    %4147 = vmatpush1.msra.mxu0 0.0
    %4148 = vmatprep.subr.mxu0 0.0
    %4149 = vmatpush1.msra.mxu0 0.0
    %4150 = vmatprep.subr.mxu0 0.0
    %4151 = vmatpush1.msra.mxu0 0.0
    %4152 = vmatprep.subr.mxu0 0.0
    %4153 = vmatpush1.msra.mxu0 0.0
    %4154 = vmatprep.subr.mxu0 %v3981
    %4155 = vmatpush1.msra.mxu0 %v3980
    %4156 = vmatprep.subr.mxu0 %v3979
    %4157 = vmatpush1.msra.mxu0 %v3978
    %4158 = vmatprep.subr.mxu0 0.0
    %4159 = vmatpush2.msra.mxu0 0.0
    %4160 = vmatprep.subr.mxu0 0.0
    %4161 = vmatpush2.msra.mxu0 0.0
    %4162 = vmatprep.subr.mxu0 0.0
    %4163 = vmatpush2.msra.mxu0 0.0
    %4164 = vmatprep.subr.mxu0 0.0
    %4165 = vmatpush2.msra.mxu0 0.0
    %4166 = vmatprep.subr.mxu0 0.0
    %4167 = vmatpush2.msra.mxu0 0.0
    %4168 = vmatprep.subr.mxu0 0.0
    %4169 = vmatpush2.msra.mxu0 0.0
    %4170 = vmatprep.subr.mxu0 0.0
    %4171 = vmatpush2.msra.mxu0 0.0
    %4172 = vmatprep.subr.mxu0 0.0
    %4173 = vmatpush2.msra.mxu0 0.0
    %4174 = vmatprep.subr.mxu0 0.0
    %4175 = vmatpush2.msra.mxu0 0.0
    %4176 = vmatprep.subr.mxu0 0.0
    %4177 = vmatpush2.msra.mxu0 0.0
    %4178 = vmatprep.subr.mxu0 0.0
    %4179 = vmatpush2.msra.mxu0 0.0
    %4180 = vmatprep.subr.mxu0 0.0
    %4181 = vmatpush2.msra.mxu0 0.0
    %4182 = vmatprep.subr.mxu0 0.0
    %4183 = vmatpush2.msra.mxu0 0.0
    %4184 = vmatprep.subr.mxu0 0.0
    %4185 = vmatpush2.msra.mxu0 0.0
    %4186 = vmatprep.subr.mxu0 0.0
    %4187 = vmatpush2.msra.mxu0 0.0
    %4188 = vmatprep.subr.mxu0 0.0
    %4189 = vmatpush2.msra.mxu0 0.0
    %4190 = vmatprep.mubr.f32.mxu0 0.0
    %4191 = vmatmul.mubr.f32.gmra.mxu0 %v4124
    %v4192 = vpop.f32.mrf.mxu0
    %v4193 = vadd.f32 0.0, %v4192
    %v4194 = vpop.f32.mrf.mxu0
    %v4195 = vadd.f32 0.0, %v4194
    %4196 = vdwg.mxu0
    %v4197 = vlaneseq
    %v4198 = vshrl.u32 %v4197, 7
    %v4199 = vsub.s32 0, %v4198
    %v4200 = vrot.slane %v4193, %v4199
    %v4201 = vlaneseq
    %v4202 = vshrl.u32 %v4201, 7
    %v4203 = vsub.s32 0, %v4202
    %v4204 = vrot.slane %v4195, %v4203
    %v4205 = vmul.f32 %v3902, %v4200
    %v4206 = vmul.f32 %v3903, %v4204
    %v4207 = vmul.f32 %v3904, %v4200
    %v4208 = vmul.f32 %v3905, %v4204
    %v4209 = vmul.f32 %v3906, %v4200
    %v4210 = vmul.f32 %v3907, %v4204
    %v4211 = vmul.f32 %v3908, %v4200
    %v4212 = vmul.f32 %v3909, %v4204
    %v4213 = vlaneseq
    %v4214 = vshrl.u32 %v4213, 7
    %v4215 = vsub.s32 1, %v4214
    %v4216 = vrot.slane %v4193, %v4215
    %v4217 = vlaneseq
    %v4218 = vshrl.u32 %v4217, 7
    %v4219 = vsub.s32 1, %v4218
    %v4220 = vrot.slane %v4195, %v4219
    %v4221 = vadd.f32 %v4205, %v4216
    %v4222 = vadd.f32 %v4206, %v4220
    %v4223 = vadd.f32 %v4207, %v4216
    %v4224 = vadd.f32 %v4208, %v4220
    %v4225 = vadd.f32 %v4209, %v4216
    %v4226 = vadd.f32 %v4210, %v4220
    %v4227 = vadd.f32 %v4211, %v4216
    %v4228 = vadd.f32 %v4212, %v4220
    %v4229 = vmax.f32 %v4221, 0.0
    %v4230 = vmax.f32 %v4222, 0.0
    %v4231 = vmax.f32 %v4223, 0.0
    %v4232 = vmax.f32 %v4224, 0.0
    %v4233 = vmax.f32 %v4225, 0.0
    %v4234 = vmax.f32 %v4226, 0.0
    %v4235 = vmax.f32 %v4227, 0.0
    %v4236 = vmax.f32 %v4228, 0.0
    %s4237 = smul.u32 %s1231, 4
    %s4238 = sshll.u32 %s4237, 4
    %4239 = dma.done %s337, %s4238
    %v4240 = vpack.c.bf16 %v4231, %v4229
    %v4241 = vpack.c.bf16 %v4232, %v4230
    %v4242 = vpack.c.bf16 %v4235, %v4233
    %v4243 = vpack.c.bf16 %v4236, %v4234
    %v4244 = vld [vmem:[#allocation4] sm:$0xff]
    %v4245 = vld [vmem:[#allocation4 + $0x8] sm:$0xff]
    %v4246 = vld [vmem:[#allocation4 + $0x10] sm:$0xff]
    %v4247 = vld [vmem:[#allocation4 + $0x18] sm:$0xff]
    %v4248 = vld [vmem:[#allocation4 + $0x20] sm:$0xff]
    %v4249 = vld [vmem:[#allocation4 + $0x28] sm:$0xff]
    %v4250 = vld [vmem:[#allocation4 + $0x30] sm:$0xff]
    %v4251 = vld [vmem:[#allocation4 + $0x38] sm:$0xff]
    %v4252 = vld [vmem:[#allocation4 + $0x40] sm:$0xff]
    %v4253 = vld [vmem:[#allocation4 + $0x48] sm:$0xff]
    %v4254 = vld [vmem:[#allocation4 + $0x50] sm:$0xff]
    %v4255 = vld [vmem:[#allocation4 + $0x58] sm:$0xff]
    %v4256 = vld [vmem:[#allocation4 + $0x60] sm:$0xff]
    %v4257 = vld [vmem:[#allocation4 + $0x68] sm:$0xff]
    %v4258 = vld [vmem:[#allocation4 + $0x70] sm:$0xff]
    %v4259 = vld [vmem:[#allocation4 + $0x78] sm:$0xff]
    %v4260 = vld [vmem:[#allocation4 + $0x80] sm:$0xff]
    %v4261 = vld [vmem:[#allocation4 + $0x88] sm:$0xff]
    %v4262 = vld [vmem:[#allocation4 + $0x90] sm:$0xff]
    %v4263 = vld [vmem:[#allocation4 + $0x98] sm:$0xff]
    %v4264 = vld [vmem:[#allocation4 + $0xa0] sm:$0xff]
    %v4265 = vld [vmem:[#allocation4 + $0xa8] sm:$0xff]
    %v4266 = vld [vmem:[#allocation4 + $0xb0] sm:$0xff]
    %v4267 = vld [vmem:[#allocation4 + $0xb8] sm:$0xff]
    %v4268 = vld [vmem:[#allocation4 + $0xc0] sm:$0xff]
    %v4269 = vld [vmem:[#allocation4 + $0xc8] sm:$0xff]
    %v4270 = vld [vmem:[#allocation4 + $0xd0] sm:$0xff]
    %v4271 = vld [vmem:[#allocation4 + $0xd8] sm:$0xff]
    %v4272 = vld [vmem:[#allocation4 + $0xe0] sm:$0xff]
    %v4273 = vld [vmem:[#allocation4 + $0xe8] sm:$0xff]
    %v4274 = vld [vmem:[#allocation4 + $0xf0] sm:$0xff]
    %v4275 = vld [vmem:[#allocation4 + $0xf8] sm:$0xff]
    %v4276 = vld [vmem:[#allocation4 + $0x100] sm:$0xff]
    %v4277 = vld [vmem:[#allocation4 + $0x108] sm:$0xff]
    %v4278 = vld [vmem:[#allocation4 + $0x110] sm:$0xff]
    %v4279 = vld [vmem:[#allocation4 + $0x118] sm:$0xff]
    %v4280 = vld [vmem:[#allocation4 + $0x120] sm:$0xff]
    %v4281 = vld [vmem:[#allocation4 + $0x128] sm:$0xff]
    %v4282 = vld [vmem:[#allocation4 + $0x130] sm:$0xff]
    %v4283 = vld [vmem:[#allocation4 + $0x138] sm:$0xff]
    %v4284 = vld [vmem:[#allocation4 + $0x140] sm:$0xff]
    %v4285 = vld [vmem:[#allocation4 + $0x148] sm:$0xff]
    %v4286 = vld [vmem:[#allocation4 + $0x150] sm:$0xff]
    %v4287 = vld [vmem:[#allocation4 + $0x158] sm:$0xff]
    %v4288 = vld [vmem:[#allocation4 + $0x160] sm:$0xff]
    %v4289 = vld [vmem:[#allocation4 + $0x168] sm:$0xff]
    %v4290 = vld [vmem:[#allocation4 + $0x170] sm:$0xff]
    %v4291 = vld [vmem:[#allocation4 + $0x178] sm:$0xff]
    %v4292 = vld [vmem:[#allocation4 + $0x180] sm:$0xff]
    %v4293 = vld [vmem:[#allocation4 + $0x188] sm:$0xff]
    %v4294 = vld [vmem:[#allocation4 + $0x190] sm:$0xff]
    %v4295 = vld [vmem:[#allocation4 + $0x198] sm:$0xff]
    %v4296 = vld [vmem:[#allocation4 + $0x1a0] sm:$0xff]
    %v4297 = vld [vmem:[#allocation4 + $0x1a8] sm:$0xff]
    %v4298 = vld [vmem:[#allocation4 + $0x1b0] sm:$0xff]
    %v4299 = vld [vmem:[#allocation4 + $0x1b8] sm:$0xff]
    %v4300 = vld [vmem:[#allocation4 + $0x1c0] sm:$0xff]
    %v4301 = vld [vmem:[#allocation4 + $0x1c8] sm:$0xff]
    %v4302 = vld [vmem:[#allocation4 + $0x1d0] sm:$0xff]
    %v4303 = vld [vmem:[#allocation4 + $0x1d8] sm:$0xff]
    %v4304 = vld [vmem:[#allocation4 + $0x1e0] sm:$0xff]
    %v4305 = vld [vmem:[#allocation4 + $0x1e8] sm:$0xff]
    %v4306 = vld [vmem:[#allocation4 + $0x1f0] sm:$0xff]
    %v4307 = vld [vmem:[#allocation4 + $0x1f8] sm:$0xff]
    %v4372 = vunpack.c.l.b16 %v4244
    %v4373 = vunpack.c.h.b16 %v4244
    %v4374 = vunpack.c.l.b16 %v4245
    %v4375 = vunpack.c.h.b16 %v4245
    %v4376 = vunpack.c.l.b16 %v4246
    %v4377 = vunpack.c.h.b16 %v4246
    %v4378 = vunpack.c.l.b16 %v4247
    %v4379 = vunpack.c.h.b16 %v4247
    %v4380 = vunpack.c.l.b16 %v4248
    %v4381 = vunpack.c.h.b16 %v4248
    %v4382 = vunpack.c.l.b16 %v4249
    %v4383 = vunpack.c.h.b16 %v4249
    %v4384 = vunpack.c.l.b16 %v4250
    %v4385 = vunpack.c.h.b16 %v4250
    %v4386 = vunpack.c.l.b16 %v4251
    %v4387 = vunpack.c.h.b16 %v4251
    %v4388 = vunpack.c.l.b16 %v4252
    %v4389 = vunpack.c.h.b16 %v4252
    %v4390 = vunpack.c.l.b16 %v4253
    %v4391 = vunpack.c.h.b16 %v4253
    %v4392 = vunpack.c.l.b16 %v4254
    %v4393 = vunpack.c.h.b16 %v4254
    %v4394 = vunpack.c.l.b16 %v4255
    %v4395 = vunpack.c.h.b16 %v4255
    %v4396 = vunpack.c.l.b16 %v4256
    %v4397 = vunpack.c.h.b16 %v4256
    %v4398 = vunpack.c.l.b16 %v4257
    %v4399 = vunpack.c.h.b16 %v4257
    %v4400 = vunpack.c.l.b16 %v4258
    %v4401 = vunpack.c.h.b16 %v4258
    %v4402 = vunpack.c.l.b16 %v4259
    %v4403 = vunpack.c.h.b16 %v4259
    %v4404 = vunpack.c.l.b16 %v4260
    %v4405 = vunpack.c.h.b16 %v4260
    %v4406 = vunpack.c.l.b16 %v4261
    %v4407 = vunpack.c.h.b16 %v4261
    %v4408 = vunpack.c.l.b16 %v4262
    %v4409 = vunpack.c.h.b16 %v4262
    %v4410 = vunpack.c.l.b16 %v4263
    %v4411 = vunpack.c.h.b16 %v4263
    %v4412 = vunpack.c.l.b16 %v4264
    %v4413 = vunpack.c.h.b16 %v4264
    %v4414 = vunpack.c.l.b16 %v4265
    %v4415 = vunpack.c.h.b16 %v4265
    %v4416 = vunpack.c.l.b16 %v4266
    %v4417 = vunpack.c.h.b16 %v4266
    %v4418 = vunpack.c.l.b16 %v4267
    %v4419 = vunpack.c.h.b16 %v4267
    %v4420 = vunpack.c.l.b16 %v4268
    %v4421 = vunpack.c.h.b16 %v4268
    %v4422 = vunpack.c.l.b16 %v4269
    %v4423 = vunpack.c.h.b16 %v4269
    %v4424 = vunpack.c.l.b16 %v4270
    %v4425 = vunpack.c.h.b16 %v4270
    %v4426 = vunpack.c.l.b16 %v4271
    %v4427 = vunpack.c.h.b16 %v4271
    %v4428 = vunpack.c.l.b16 %v4272
    %v4429 = vunpack.c.h.b16 %v4272
    %v4430 = vunpack.c.l.b16 %v4273
    %v4431 = vunpack.c.h.b16 %v4273
    %v4432 = vunpack.c.l.b16 %v4274
    %v4433 = vunpack.c.h.b16 %v4274
    %v4434 = vunpack.c.l.b16 %v4275
    %v4435 = vunpack.c.h.b16 %v4275
    %v4436 = vunpack.c.l.b16 %v4276
    %v4437 = vunpack.c.h.b16 %v4276
    %v4438 = vunpack.c.l.b16 %v4277
    %v4439 = vunpack.c.h.b16 %v4277
    %v4440 = vunpack.c.l.b16 %v4278
    %v4441 = vunpack.c.h.b16 %v4278
    %v4442 = vunpack.c.l.b16 %v4279
    %v4443 = vunpack.c.h.b16 %v4279
    %v4444 = vunpack.c.l.b16 %v4280
    %v4445 = vunpack.c.h.b16 %v4280
    %v4446 = vunpack.c.l.b16 %v4281
    %v4447 = vunpack.c.h.b16 %v4281
    %v4448 = vunpack.c.l.b16 %v4282
    %v4449 = vunpack.c.h.b16 %v4282
    %v4450 = vunpack.c.l.b16 %v4283
    %v4451 = vunpack.c.h.b16 %v4283
    %v4452 = vunpack.c.l.b16 %v4284
    %v4453 = vunpack.c.h.b16 %v4284
    %v4454 = vunpack.c.l.b16 %v4285
    %v4455 = vunpack.c.h.b16 %v4285
    %v4456 = vunpack.c.l.b16 %v4286
    %v4457 = vunpack.c.h.b16 %v4286
    %v4458 = vunpack.c.l.b16 %v4287
    %v4459 = vunpack.c.h.b16 %v4287
    %v4460 = vunpack.c.l.b16 %v4288
    %v4461 = vunpack.c.h.b16 %v4288
    %v4462 = vunpack.c.l.b16 %v4289
    %v4463 = vunpack.c.h.b16 %v4289
    %v4464 = vunpack.c.l.b16 %v4290
    %v4465 = vunpack.c.h.b16 %v4290
    %v4466 = vunpack.c.l.b16 %v4291
    %v4467 = vunpack.c.h.b16 %v4291
    %v4468 = vunpack.c.l.b16 %v4292
    %v4469 = vunpack.c.h.b16 %v4292
    %v4470 = vunpack.c.l.b16 %v4293
    %v4471 = vunpack.c.h.b16 %v4293
    %v4472 = vunpack.c.l.b16 %v4294
    %v4473 = vunpack.c.h.b16 %v4294
    %v4474 = vunpack.c.l.b16 %v4295
    %v4475 = vunpack.c.h.b16 %v4295
    %v4476 = vunpack.c.l.b16 %v4296
    %v4477 = vunpack.c.h.b16 %v4296
    %v4478 = vunpack.c.l.b16 %v4297
    %v4479 = vunpack.c.h.b16 %v4297
    %v4480 = vunpack.c.l.b16 %v4298
    %v4481 = vunpack.c.h.b16 %v4298
    %v4482 = vunpack.c.l.b16 %v4299
    %v4483 = vunpack.c.h.b16 %v4299
    %v4484 = vunpack.c.l.b16 %v4300
    %v4485 = vunpack.c.h.b16 %v4300
    %v4486 = vunpack.c.l.b16 %v4301
    %v4487 = vunpack.c.h.b16 %v4301
    %v4488 = vunpack.c.l.b16 %v4302
    %v4489 = vunpack.c.h.b16 %v4302
    %v4490 = vunpack.c.l.b16 %v4303
    %v4491 = vunpack.c.h.b16 %v4303
    %v4492 = vunpack.c.l.b16 %v4304
    %v4493 = vunpack.c.h.b16 %v4304
    %v4494 = vunpack.c.l.b16 %v4305
    %v4495 = vunpack.c.h.b16 %v4305
    %v4496 = vunpack.c.l.b16 %v4306
    %v4497 = vunpack.c.h.b16 %v4306
    %v4498 = vunpack.c.l.b16 %v4307
    %v4499 = vunpack.c.h.b16 %v4307
    %v4500 = vpack.c.b16 %v4376, %v4372
    %v4501 = vpack.c.b16 %v4377, %v4373
    %v4502 = vpack.c.b16 %v4378, %v4374
    %v4503 = vpack.c.b16 %v4379, %v4375
    %v4504 = vpack.c.b16 %v4384, %v4380
    %v4505 = vpack.c.b16 %v4385, %v4381
    %v4506 = vpack.c.b16 %v4386, %v4382
    %v4507 = vpack.c.b16 %v4387, %v4383
    %v4508 = vpack.c.b16 %v4392, %v4388
    %v4509 = vpack.c.b16 %v4393, %v4389
    %v4510 = vpack.c.b16 %v4394, %v4390
    %v4511 = vpack.c.b16 %v4395, %v4391
    %v4512 = vpack.c.b16 %v4400, %v4396
    %v4513 = vpack.c.b16 %v4401, %v4397
    %v4514 = vpack.c.b16 %v4402, %v4398
    %v4515 = vpack.c.b16 %v4403, %v4399
    %v4516 = vpack.c.b16 %v4408, %v4404
    %v4517 = vpack.c.b16 %v4409, %v4405
    %v4518 = vpack.c.b16 %v4410, %v4406
    %v4519 = vpack.c.b16 %v4411, %v4407
    %v4520 = vpack.c.b16 %v4416, %v4412
    %v4521 = vpack.c.b16 %v4417, %v4413
    %v4522 = vpack.c.b16 %v4418, %v4414
    %v4523 = vpack.c.b16 %v4419, %v4415
    %v4524 = vpack.c.b16 %v4424, %v4420
    %v4525 = vpack.c.b16 %v4425, %v4421
    %v4526 = vpack.c.b16 %v4426, %v4422
    %v4527 = vpack.c.b16 %v4427, %v4423
    %v4528 = vpack.c.b16 %v4432, %v4428
    %v4529 = vpack.c.b16 %v4433, %v4429
    %v4530 = vpack.c.b16 %v4434, %v4430
    %v4531 = vpack.c.b16 %v4435, %v4431
    %v4532 = vpack.c.b16 %v4440, %v4436
    %v4533 = vpack.c.b16 %v4441, %v4437
    %v4534 = vpack.c.b16 %v4442, %v4438
    %v4535 = vpack.c.b16 %v4443, %v4439
    %v4536 = vpack.c.b16 %v4448, %v4444
    %v4537 = vpack.c.b16 %v4449, %v4445
    %v4538 = vpack.c.b16 %v4450, %v4446
    %v4539 = vpack.c.b16 %v4451, %v4447
    %v4540 = vpack.c.b16 %v4456, %v4452
    %v4541 = vpack.c.b16 %v4457, %v4453
    %v4542 = vpack.c.b16 %v4458, %v4454
    %v4543 = vpack.c.b16 %v4459, %v4455
    %v4544 = vpack.c.b16 %v4464, %v4460
    %v4545 = vpack.c.b16 %v4465, %v4461
    %v4546 = vpack.c.b16 %v4466, %v4462
    %v4547 = vpack.c.b16 %v4467, %v4463
    %v4548 = vpack.c.b16 %v4472, %v4468
    %v4549 = vpack.c.b16 %v4473, %v4469
    %v4550 = vpack.c.b16 %v4474, %v4470
    %v4551 = vpack.c.b16 %v4475, %v4471
    %v4552 = vpack.c.b16 %v4480, %v4476
    %v4553 = vpack.c.b16 %v4481, %v4477
    %v4554 = vpack.c.b16 %v4482, %v4478
    %v4555 = vpack.c.b16 %v4483, %v4479
    %v4556 = vpack.c.b16 %v4488, %v4484
    %v4557 = vpack.c.b16 %v4489, %v4485
    %v4558 = vpack.c.b16 %v4490, %v4486
    %v4559 = vpack.c.b16 %v4491, %v4487
    %v4560 = vpack.c.b16 %v4496, %v4492
    %v4561 = vpack.c.b16 %v4497, %v4493
    %v4562 = vpack.c.b16 %v4498, %v4494
    %v4563 = vpack.c.b16 %v4499, %v4495
    %4628 = vmatprep.subr.bf16.mxu0 %v4529
    %4629 = vmatpush1.bf16.msra.mxu0 %v4528
    %4630 = vmatprep.subr.bf16.mxu0 %v4525
    %4631 = vmatpush1.bf16.msra.mxu0 %v4524
    %4632 = vmatprep.subr.bf16.mxu0 %v4521
    %4633 = vmatpush1.bf16.msra.mxu0 %v4520
    %4634 = vmatprep.subr.bf16.mxu0 %v4517
    %4635 = vmatpush1.bf16.msra.mxu0 %v4516
    %4636 = vmatprep.subr.bf16.mxu0 %v4513
    %4637 = vmatpush1.bf16.msra.mxu0 %v4512
    %4638 = vmatprep.subr.bf16.mxu0 %v4509
    %4639 = vmatpush1.bf16.msra.mxu0 %v4508
    %4640 = vmatprep.subr.bf16.mxu0 %v4505
    %4641 = vmatpush1.bf16.msra.mxu0 %v4504
    %4642 = vmatprep.subr.bf16.mxu0 %v4501
    %4643 = vmatpush1.bf16.msra.mxu0 %v4500
    %4644 = vmatprep.subr.bf16.mxu0 %v4561
    %4645 = vmatpush2.bf16.msra.mxu0 %v4560
    %4646 = vmatprep.subr.bf16.mxu0 %v4557
    %4647 = vmatpush2.bf16.msra.mxu0 %v4556
    %4648 = vmatprep.subr.bf16.mxu0 %v4553
    %4649 = vmatpush2.bf16.msra.mxu0 %v4552
    %4650 = vmatprep.subr.bf16.mxu0 %v4549
    %4651 = vmatpush2.bf16.msra.mxu0 %v4548
    %4652 = vmatprep.subr.bf16.mxu0 %v4545
    %4653 = vmatpush2.bf16.msra.mxu0 %v4544
    %4654 = vmatprep.subr.bf16.mxu0 %v4541
    %4655 = vmatpush2.bf16.msra.mxu0 %v4540
    %4656 = vmatprep.subr.bf16.mxu0 %v4537
    %4657 = vmatpush2.bf16.msra.mxu0 %v4536
    %4658 = vmatprep.subr.bf16.mxu0 %v4533
    %4659 = vmatpush2.bf16.msra.mxu0 %v4532
    %4660 = vmatprep.mubr.bf16.mxu0 %v4241
    %4661 = vmatmul.mubr.bf16.gmra.mxu0 %v4240
    %v4662 = vpop.f32.mrf.mxu0
    %v4663 = vadd.f32 0.0, %v4662
    %v4664 = vpop.f32.mrf.mxu0
    %v4665 = vadd.f32 0.0, %v4664
    %v4666 = vpop.f32.mrf.mxu0
    %v4667 = vadd.f32 0.0, %v4666
    %v4668 = vpop.f32.mrf.mxu0
    %v4669 = vadd.f32 0.0, %v4668
    %4670 = vmatprep.mubr.bf16.mxu0 %v4243
    %4671 = vmatmul.mubr.bf16.gmra.mxu0 %v4242
    %v4672 = vpop.f32.mrf.mxu0
    %v4673 = vadd.f32 0.0, %v4672
    %v4674 = vpop.f32.mrf.mxu0
    %v4675 = vadd.f32 0.0, %v4674
    %v4676 = vpop.f32.mrf.mxu0
    %v4677 = vadd.f32 0.0, %v4676
    %v4678 = vpop.f32.mrf.mxu0
    %v4679 = vadd.f32 0.0, %v4678
    %4680 = vdwg.mxu0
    %4681 = vmatprep.subr.bf16.mxu0 %v4531
    %4682 = vmatpush1.bf16.msra.mxu0 %v4530
    %4683 = vmatprep.subr.bf16.mxu0 %v4527
    %4684 = vmatpush1.bf16.msra.mxu0 %v4526
    %4685 = vmatprep.subr.bf16.mxu0 %v4523
    %4686 = vmatpush1.bf16.msra.mxu0 %v4522
    %4687 = vmatprep.subr.bf16.mxu0 %v4519
    %4688 = vmatpush1.bf16.msra.mxu0 %v4518
    %4689 = vmatprep.subr.bf16.mxu0 %v4515
    %4690 = vmatpush1.bf16.msra.mxu0 %v4514
    %4691 = vmatprep.subr.bf16.mxu0 %v4511
    %4692 = vmatpush1.bf16.msra.mxu0 %v4510
    %4693 = vmatprep.subr.bf16.mxu0 %v4507
    %4694 = vmatpush1.bf16.msra.mxu0 %v4506
    %4695 = vmatprep.subr.bf16.mxu0 %v4503
    %4696 = vmatpush1.bf16.msra.mxu0 %v4502
    %4697 = vmatprep.subr.bf16.mxu0 %v4563
    %4698 = vmatpush2.bf16.msra.mxu0 %v4562
    %4699 = vmatprep.subr.bf16.mxu0 %v4559
    %4700 = vmatpush2.bf16.msra.mxu0 %v4558
    %4701 = vmatprep.subr.bf16.mxu0 %v4555
    %4702 = vmatpush2.bf16.msra.mxu0 %v4554
    %4703 = vmatprep.subr.bf16.mxu0 %v4551
    %4704 = vmatpush2.bf16.msra.mxu0 %v4550
    %4705 = vmatprep.subr.bf16.mxu0 %v4547
    %4706 = vmatpush2.bf16.msra.mxu0 %v4546
    %4707 = vmatprep.subr.bf16.mxu0 %v4543
    %4708 = vmatpush2.bf16.msra.mxu0 %v4542
    %4709 = vmatprep.subr.bf16.mxu0 %v4539
    %4710 = vmatpush2.bf16.msra.mxu0 %v4538
    %4711 = vmatprep.subr.bf16.mxu0 %v4535
    %4712 = vmatpush2.bf16.msra.mxu0 %v4534
    %4713 = vmatprep.mubr.bf16.mxu0 %v4241
    %4714 = vmatmul.mubr.bf16.gmra.mxu0 %v4240
    %v4715 = vpop.f32.mrf.mxu0
    %v4716 = vadd.f32 0.0, %v4715
    %v4717 = vpop.f32.mrf.mxu0
    %v4718 = vadd.f32 0.0, %v4717
    %v4719 = vpop.f32.mrf.mxu0
    %v4720 = vadd.f32 0.0, %v4719
    %v4721 = vpop.f32.mrf.mxu0
    %v4722 = vadd.f32 0.0, %v4721
    %4723 = vmatprep.mubr.bf16.mxu0 %v4243
    %4724 = vmatmul.mubr.bf16.gmra.mxu0 %v4242
    %v4725 = vpop.f32.mrf.mxu0
    %v4726 = vadd.f32 0.0, %v4725
    %v4727 = vpop.f32.mrf.mxu0
    %v4728 = vadd.f32 0.0, %v4727
    %v4729 = vpop.f32.mrf.mxu0
    %v4730 = vadd.f32 0.0, %v4729
    %v4731 = vpop.f32.mrf.mxu0
    %v4732 = vadd.f32 0.0, %v4731
    %4733 = vdwg.mxu0
    %s4734 = scalar_lea.vmem %s5, 560
    %v4735 = vld [vmem:[%s4734] sm:$0xff]
    %v4736 = vld [vmem:[%s4734 + $0x8] sm:$0xff]
    %v4737 = vld [vmem:[%s4734 + $0x10] sm:$0xff]
    %v4738 = vld [vmem:[%s4734 + $0x18] sm:$0xff]
    %v4739 = vld [vmem:[%s4734 + $0x20] sm:$0xff]
    %v4740 = vld [vmem:[%s4734 + $0x28] sm:$0xff]
    %v4741 = vld [vmem:[%s4734 + $0x30] sm:$0xff]
    %s4742 = scalar_lea.vmem %s5, 616
    %v4743 = vld [vmem:[%s4742] sm:$0xff]
    %v4744 = vld [vmem:[%s4742 + $0x8] sm:$0xff]
    %v4745 = vld [vmem:[%s4742 + $0x10] sm:$0xff]
    %v4746 = vld [vmem:[%s4742 + $0x18] sm:$0xff]
    %v4747 = vld [vmem:[%s4742 + $0x20] sm:$0xff]
    %v4748 = vld [vmem:[%s4742 + $0x28] sm:$0xff]
    %v4749 = vld [vmem:[%s4742 + $0x30] sm:$0xff]
    %vm4750 = vcmask 211968
    %v4752 = vsel %vm4750, %v4743, 0
    %v4755 = vsel %vm4750, %v4744, 0
    %v4758 = vsel %vm4750, %v4745, 0
    %v4761 = vsel %vm4750, %v4746, 0
    %v4764 = vsel %vm4750, %v4747, 0
    %v4767 = vsel %vm4750, %v4748, 0
    %v4770 = vsel %vm4750, %v4749, 0
    %v4773 = vsel %vm680, %v4679, 0
    %4775 = vmatprep.subr.mxu0 0.0
    %4776 = vmatpush1.msra.mxu0 0.0
    %4777 = vmatprep.subr.mxu0 0.0
    %4778 = vmatpush1.msra.mxu0 0.0
    %4779 = vmatprep.subr.mxu0 0.0
    %4780 = vmatpush1.msra.mxu0 0.0
    %4781 = vmatprep.subr.mxu0 0.0
    %4782 = vmatpush1.msra.mxu0 0.0
    %4783 = vmatprep.subr.mxu0 0.0
    %4784 = vmatpush1.msra.mxu0 0.0
    %4785 = vmatprep.subr.mxu0 0.0
    %4786 = vmatpush1.msra.mxu0 0.0
    %4787 = vmatprep.subr.mxu0 0.0
    %4788 = vmatpush1.msra.mxu0 0.0
    %4789 = vmatprep.subr.mxu0 0.0
    %4790 = vmatpush1.msra.mxu0 0.0
    %4791 = vmatprep.subr.mxu0 0.0
    %4792 = vmatpush1.msra.mxu0 0.0
    %4793 = vmatprep.subr.mxu0 0.0
    %4794 = vmatpush1.msra.mxu0 0.0
    %4795 = vmatprep.subr.mxu0 0.0
    %4796 = vmatpush1.msra.mxu0 0.0
    %4797 = vmatprep.subr.mxu0 0.0
    %4798 = vmatpush1.msra.mxu0 0.0
    %4799 = vmatprep.subr.mxu0 0.0
    %4800 = vmatpush1.msra.mxu0 %v4773
    %4801 = vmatprep.subr.mxu0 0.0
    %4802 = vmatpush1.msra.mxu0 %v4675
    %4803 = vmatprep.subr.mxu0 0.0
    %4804 = vmatpush1.msra.mxu0 %v4669
    %4805 = vmatprep.subr.mxu0 0.0
    %4806 = vmatpush1.msra.mxu0 %v4665
    %4807 = vmatprep.subr.mxu0 0.0
    %4808 = vmatpush2.msra.mxu0 0.0
    %4809 = vmatprep.subr.mxu0 0.0
    %4810 = vmatpush2.msra.mxu0 0.0
    %4811 = vmatprep.subr.mxu0 0.0
    %4812 = vmatpush2.msra.mxu0 0.0
    %4813 = vmatprep.subr.mxu0 0.0
    %4814 = vmatpush2.msra.mxu0 0.0
    %4815 = vmatprep.subr.mxu0 0.0
    %4816 = vmatpush2.msra.mxu0 0.0
    %4817 = vmatprep.subr.mxu0 0.0
    %4818 = vmatpush2.msra.mxu0 0.0
    %4819 = vmatprep.subr.mxu0 0.0
    %4820 = vmatpush2.msra.mxu0 0.0
    %4821 = vmatprep.subr.mxu0 0.0
    %4822 = vmatpush2.msra.mxu0 0.0
    %4823 = vmatprep.subr.mxu0 0.0
    %4824 = vmatpush2.msra.mxu0 0.0
    %4825 = vmatprep.subr.mxu0 0.0
    %4826 = vmatpush2.msra.mxu0 0.0
    %4827 = vmatprep.subr.mxu0 0.0
    %4828 = vmatpush2.msra.mxu0 0.0
    %4829 = vmatprep.subr.mxu0 0.0
    %4830 = vmatpush2.msra.mxu0 0.0
    %4831 = vmatprep.subr.mxu0 0.0
    %4832 = vmatpush2.msra.mxu0 0.0
    %4833 = vmatprep.subr.mxu0 0.0
    %4834 = vmatpush2.msra.mxu0 0.0
    %4835 = vmatprep.subr.mxu0 0.0
    %4836 = vmatpush2.msra.mxu0 0.0
    %4837 = vmatprep.subr.mxu0 0.0
    %4838 = vmatpush2.msra.mxu0 0.0
    %4839 = vmatprep.mubr.f32.mxu0 0.0
    %4840 = vmatmul.mubr.f32.gmra.mxu0 %v4752
    %v4841 = vpop.f32.mrf.mxu0
    %v4842 = vadd.f32 0.0, %v4841
    %v4843 = vpop.f32.mrf.mxu0
    %4844 = vmatprep.mubr.f32.mxu0 0.0
    %4845 = vmatmul.mubr.f32.gmra.mxu0 %v4755
    %v4846 = vpop.f32.mrf.mxu0
    %v4847 = vadd.f32 0.0, %v4846
    %v4848 = vpop.f32.mrf.mxu0
    %4849 = vmatprep.mubr.f32.mxu0 0.0
    %4850 = vmatmul.mubr.f32.gmra.mxu0 %v4758
    %v4851 = vpop.f32.mrf.mxu0
    %v4852 = vadd.f32 0.0, %v4851
    %v4853 = vpop.f32.mrf.mxu0
    %4854 = vmatprep.mubr.f32.mxu0 0.0
    %4855 = vmatmul.mubr.f32.gmra.mxu0 %v4761
    %v4856 = vpop.f32.mrf.mxu0
    %v4857 = vadd.f32 0.0, %v4856
    %v4858 = vpop.f32.mrf.mxu0
    %4859 = vmatprep.mubr.f32.mxu0 0.0
    %4860 = vmatmul.mubr.f32.gmra.mxu0 %v4764
    %v4861 = vpop.f32.mrf.mxu0
    %v4862 = vadd.f32 0.0, %v4861
    %v4863 = vpop.f32.mrf.mxu0
    %4864 = vmatprep.mubr.f32.mxu0 0.0
    %4865 = vmatmul.mubr.f32.gmra.mxu0 %v4767
    %v4866 = vpop.f32.mrf.mxu0
    %v4867 = vadd.f32 0.0, %v4866
    %v4868 = vpop.f32.mrf.mxu0
    %4869 = vmatprep.mubr.f32.mxu0 0.0
    %4870 = vmatmul.mubr.f32.gmra.mxu0 %v4770
    %v4871 = vpop.f32.mrf.mxu0
    %v4872 = vadd.f32 0.0, %v4871
    %v4873 = vpop.f32.mrf.mxu0
    %4874 = vdwg.mxu0
    %v4876 = vsel %vm4750, %v4735, 0
    %v4879 = vsel %vm4750, %v4736, 0
    %v4882 = vsel %vm4750, %v4737, 0
    %v4885 = vsel %vm4750, %v4738, 0
    %v4888 = vsel %vm4750, %v4739, 0
    %v4891 = vsel %vm4750, %v4740, 0
    %v4894 = vsel %vm4750, %v4741, 0
    %v4897 = vsel %vm680, %v4677, 0
    %4899 = vmatprep.subr.mxu0 0.0
    %4900 = vmatpush1.msra.mxu0 0.0
    %4901 = vmatprep.subr.mxu0 0.0
    %4902 = vmatpush1.msra.mxu0 0.0
    %4903 = vmatprep.subr.mxu0 0.0
    %4904 = vmatpush1.msra.mxu0 0.0
    %4905 = vmatprep.subr.mxu0 0.0
    %4906 = vmatpush1.msra.mxu0 0.0
    %4907 = vmatprep.subr.mxu0 0.0
    %4908 = vmatpush1.msra.mxu0 0.0
    %4909 = vmatprep.subr.mxu0 0.0
    %4910 = vmatpush1.msra.mxu0 0.0
    %4911 = vmatprep.subr.mxu0 0.0
    %4912 = vmatpush1.msra.mxu0 0.0
    %4913 = vmatprep.subr.mxu0 0.0
    %4914 = vmatpush1.msra.mxu0 0.0
    %4915 = vmatprep.subr.mxu0 0.0
    %4916 = vmatpush1.msra.mxu0 0.0
    %4917 = vmatprep.subr.mxu0 0.0
    %4918 = vmatpush1.msra.mxu0 0.0
    %4919 = vmatprep.subr.mxu0 0.0
    %4920 = vmatpush1.msra.mxu0 0.0
    %4921 = vmatprep.subr.mxu0 0.0
    %4922 = vmatpush1.msra.mxu0 0.0
    %4923 = vmatprep.subr.mxu0 0.0
    %4924 = vmatpush1.msra.mxu0 %v4897
    %4925 = vmatprep.subr.mxu0 0.0
    %4926 = vmatpush1.msra.mxu0 %v4673
    %4927 = vmatprep.subr.mxu0 0.0
    %4928 = vmatpush1.msra.mxu0 %v4667
    %4929 = vmatprep.subr.mxu0 0.0
    %4930 = vmatpush1.msra.mxu0 %v4663
    %4931 = vmatprep.subr.mxu0 0.0
    %4932 = vmatpush2.msra.mxu0 0.0
    %4933 = vmatprep.subr.mxu0 0.0
    %4934 = vmatpush2.msra.mxu0 0.0
    %4935 = vmatprep.subr.mxu0 0.0
    %4936 = vmatpush2.msra.mxu0 0.0
    %4937 = vmatprep.subr.mxu0 0.0
    %4938 = vmatpush2.msra.mxu0 0.0
    %4939 = vmatprep.subr.mxu0 0.0
    %4940 = vmatpush2.msra.mxu0 0.0
    %4941 = vmatprep.subr.mxu0 0.0
    %4942 = vmatpush2.msra.mxu0 0.0
    %4943 = vmatprep.subr.mxu0 0.0
    %4944 = vmatpush2.msra.mxu0 0.0
    %4945 = vmatprep.subr.mxu0 0.0
    %4946 = vmatpush2.msra.mxu0 0.0
    %4947 = vmatprep.subr.mxu0 0.0
    %4948 = vmatpush2.msra.mxu0 0.0
    %4949 = vmatprep.subr.mxu0 0.0
    %4950 = vmatpush2.msra.mxu0 0.0
    %4951 = vmatprep.subr.mxu0 0.0
    %4952 = vmatpush2.msra.mxu0 0.0
    %4953 = vmatprep.subr.mxu0 0.0
    %4954 = vmatpush2.msra.mxu0 0.0
    %4955 = vmatprep.subr.mxu0 0.0
    %4956 = vmatpush2.msra.mxu0 0.0
    %4957 = vmatprep.subr.mxu0 0.0
    %4958 = vmatpush2.msra.mxu0 0.0
    %4959 = vmatprep.subr.mxu0 0.0
    %4960 = vmatpush2.msra.mxu0 0.0
    %4961 = vmatprep.subr.mxu0 0.0
    %4962 = vmatpush2.msra.mxu0 0.0
    %4963 = vmatprep.mubr.f32.mxu0 0.0
    %4964 = vmatmul.mubr.f32.gmra.mxu0 %v4876
    %v4965 = vpop.f32.mrf.mxu0
    %v4966 = vadd.f32 %v4842, %v4965
    %v4967 = vpop.f32.mrf.mxu0
    %4968 = vmatprep.mubr.f32.mxu0 0.0
    %4969 = vmatmul.mubr.f32.gmra.mxu0 %v4879
    %v4970 = vpop.f32.mrf.mxu0
    %v4971 = vadd.f32 %v4847, %v4970
    %v4972 = vpop.f32.mrf.mxu0
    %4973 = vmatprep.mubr.f32.mxu0 0.0
    %4974 = vmatmul.mubr.f32.gmra.mxu0 %v4882
    %v4975 = vpop.f32.mrf.mxu0
    %v4976 = vadd.f32 %v4852, %v4975
    %v4977 = vpop.f32.mrf.mxu0
    %4978 = vmatprep.mubr.f32.mxu0 0.0
    %4979 = vmatmul.mubr.f32.gmra.mxu0 %v4885
    %v4980 = vpop.f32.mrf.mxu0
    %v4981 = vadd.f32 %v4857, %v4980
    %v4982 = vpop.f32.mrf.mxu0
    %4983 = vmatprep.mubr.f32.mxu0 0.0
    %4984 = vmatmul.mubr.f32.gmra.mxu0 %v4888
    %v4985 = vpop.f32.mrf.mxu0
    %v4986 = vadd.f32 %v4862, %v4985
    %v4987 = vpop.f32.mrf.mxu0
    %4988 = vmatprep.mubr.f32.mxu0 0.0
    %4989 = vmatmul.mubr.f32.gmra.mxu0 %v4891
    %v4990 = vpop.f32.mrf.mxu0
    %v4991 = vadd.f32 %v4867, %v4990
    %v4992 = vpop.f32.mrf.mxu0
    %4993 = vmatprep.mubr.f32.mxu0 0.0
    %4994 = vmatmul.mubr.f32.gmra.mxu0 %v4894
    %v4995 = vpop.f32.mrf.mxu0
    %v4996 = vadd.f32 %v4872, %v4995
    %v4997 = vpop.f32.mrf.mxu0
    %4998 = vdwg.mxu0
    %s4999 = scalar_lea.vmem %s5, 672
    %v5000 = vld [vmem:[%s4999] sm:$0xff]
    %v5001 = vld [vmem:[%s4999 + $0x8] sm:$0xff]
    %v5002 = vld [vmem:[%s4999 + $0x10] sm:$0xff]
    %v5003 = vld [vmem:[%s4999 + $0x18] sm:$0xff]
    %v5004 = vld [vmem:[%s4999 + $0x20] sm:$0xff]
    %v5005 = vld [vmem:[%s4999 + $0x28] sm:$0xff]
    %v5006 = vld [vmem:[%s4999 + $0x30] sm:$0xff]
    %v5008 = vsel %vm4750, %v5000, 0
    %v5011 = vsel %vm4750, %v5001, 0
    %v5014 = vsel %vm4750, %v5002, 0
    %v5017 = vsel %vm4750, %v5003, 0
    %v5020 = vsel %vm4750, %v5004, 0
    %v5023 = vsel %vm4750, %v5005, 0
    %v5026 = vsel %vm4750, %v5006, 0
    %v5029 = vsel %vm680, %v4730, 0
    %5031 = vmatprep.subr.mxu0 0.0
    %5032 = vmatpush1.msra.mxu0 0.0
    %5033 = vmatprep.subr.mxu0 0.0
    %5034 = vmatpush1.msra.mxu0 0.0
    %5035 = vmatprep.subr.mxu0 0.0
    %5036 = vmatpush1.msra.mxu0 0.0
    %5037 = vmatprep.subr.mxu0 0.0
    %5038 = vmatpush1.msra.mxu0 0.0
    %5039 = vmatprep.subr.mxu0 0.0
    %5040 = vmatpush1.msra.mxu0 0.0
    %5041 = vmatprep.subr.mxu0 0.0
    %5042 = vmatpush1.msra.mxu0 0.0
    %5043 = vmatprep.subr.mxu0 0.0
    %5044 = vmatpush1.msra.mxu0 0.0
    %5045 = vmatprep.subr.mxu0 0.0
    %5046 = vmatpush1.msra.mxu0 0.0
    %5047 = vmatprep.subr.mxu0 0.0
    %5048 = vmatpush1.msra.mxu0 0.0
    %5049 = vmatprep.subr.mxu0 0.0
    %5050 = vmatpush1.msra.mxu0 0.0
    %5051 = vmatprep.subr.mxu0 0.0
    %5052 = vmatpush1.msra.mxu0 0.0
    %5053 = vmatprep.subr.mxu0 0.0
    %5054 = vmatpush1.msra.mxu0 0.0
    %5055 = vmatprep.subr.mxu0 0.0
    %5056 = vmatpush1.msra.mxu0 %v5029
    %5057 = vmatprep.subr.mxu0 0.0
    %5058 = vmatpush1.msra.mxu0 %v4726
    %5059 = vmatprep.subr.mxu0 0.0
    %5060 = vmatpush1.msra.mxu0 %v4720
    %5061 = vmatprep.subr.mxu0 0.0
    %5062 = vmatpush1.msra.mxu0 %v4716
    %5063 = vmatprep.subr.mxu0 0.0
    %5064 = vmatpush2.msra.mxu0 0.0
    %5065 = vmatprep.subr.mxu0 0.0
    %5066 = vmatpush2.msra.mxu0 0.0
    %5067 = vmatprep.subr.mxu0 0.0
    %5068 = vmatpush2.msra.mxu0 0.0
    %5069 = vmatprep.subr.mxu0 0.0
    %5070 = vmatpush2.msra.mxu0 0.0
    %5071 = vmatprep.subr.mxu0 0.0
    %5072 = vmatpush2.msra.mxu0 0.0
    %5073 = vmatprep.subr.mxu0 0.0
    %5074 = vmatpush2.msra.mxu0 0.0
    %5075 = vmatprep.subr.mxu0 0.0
    %5076 = vmatpush2.msra.mxu0 0.0
    %5077 = vmatprep.subr.mxu0 0.0
    %5078 = vmatpush2.msra.mxu0 0.0
    %5079 = vmatprep.subr.mxu0 0.0
    %5080 = vmatpush2.msra.mxu0 0.0
    %5081 = vmatprep.subr.mxu0 0.0
    %5082 = vmatpush2.msra.mxu0 0.0
    %5083 = vmatprep.subr.mxu0 0.0
    %5084 = vmatpush2.msra.mxu0 0.0
    %5085 = vmatprep.subr.mxu0 0.0
    %5086 = vmatpush2.msra.mxu0 0.0
    %5087 = vmatprep.subr.mxu0 0.0
    %5088 = vmatpush2.msra.mxu0 0.0
    %5089 = vmatprep.subr.mxu0 0.0
    %5090 = vmatpush2.msra.mxu0 0.0
    %5091 = vmatprep.subr.mxu0 0.0
    %5092 = vmatpush2.msra.mxu0 0.0
    %5093 = vmatprep.subr.mxu0 0.0
    %5094 = vmatpush2.msra.mxu0 0.0
    %5095 = vmatprep.mubr.f32.mxu0 0.0
    %5096 = vmatmul.mubr.f32.gmra.mxu0 %v5008
    %v5097 = vpop.f32.mrf.mxu0
    %v5098 = vadd.f32 0.0, %v5097
    %v5099 = vpop.f32.mrf.mxu0
    %5100 = vmatprep.mubr.f32.mxu0 0.0
    %5101 = vmatmul.mubr.f32.gmra.mxu0 %v5011
    %v5102 = vpop.f32.mrf.mxu0
    %v5103 = vadd.f32 0.0, %v5102
    %v5104 = vpop.f32.mrf.mxu0
    %5105 = vmatprep.mubr.f32.mxu0 0.0
    %5106 = vmatmul.mubr.f32.gmra.mxu0 %v5014
    %v5107 = vpop.f32.mrf.mxu0
    %v5108 = vadd.f32 0.0, %v5107
    %v5109 = vpop.f32.mrf.mxu0
    %5110 = vmatprep.mubr.f32.mxu0 0.0
    %5111 = vmatmul.mubr.f32.gmra.mxu0 %v5017
    %v5112 = vpop.f32.mrf.mxu0
    %v5113 = vadd.f32 0.0, %v5112
    %v5114 = vpop.f32.mrf.mxu0
    %5115 = vmatprep.mubr.f32.mxu0 0.0
    %5116 = vmatmul.mubr.f32.gmra.mxu0 %v5020
    %v5117 = vpop.f32.mrf.mxu0
    %v5118 = vadd.f32 0.0, %v5117
    %v5119 = vpop.f32.mrf.mxu0
    %5120 = vmatprep.mubr.f32.mxu0 0.0
    %5121 = vmatmul.mubr.f32.gmra.mxu0 %v5023
    %v5122 = vpop.f32.mrf.mxu0
    %v5123 = vadd.f32 0.0, %v5122
    %v5124 = vpop.f32.mrf.mxu0
    %5125 = vmatprep.mubr.f32.mxu0 0.0
    %5126 = vmatmul.mubr.f32.gmra.mxu0 %v5026
    %v5127 = vpop.f32.mrf.mxu0
    %v5128 = vadd.f32 0.0, %v5127
    %v5129 = vpop.f32.mrf.mxu0
    %5130 = vdwg.mxu0
    %v5131 = vadd.f32 %v4966, %v5098
    %v5132 = vadd.f32 %v4971, %v5103
    %v5133 = vadd.f32 %v4976, %v5108
    %v5134 = vadd.f32 %v4981, %v5113
    %v5135 = vadd.f32 %v4986, %v5118
    %v5136 = vadd.f32 %v4991, %v5123
    %v5137 = vadd.f32 %v4996, %v5128
    %s5138 = scalar_lea.vmem %s5, 728
    %v5139 = vld [vmem:[%s5138] sm:$0xff]
    %v5140 = vld [vmem:[%s5138 + $0x8] sm:$0xff]
    %v5141 = vld [vmem:[%s5138 + $0x10] sm:$0xff]
    %v5142 = vld [vmem:[%s5138 + $0x18] sm:$0xff]
    %v5143 = vld [vmem:[%s5138 + $0x20] sm:$0xff]
    %v5144 = vld [vmem:[%s5138 + $0x28] sm:$0xff]
    %v5145 = vld [vmem:[%s5138 + $0x30] sm:$0xff]
    %v5147 = vsel %vm4750, %v5139, 0
    %v5150 = vsel %vm4750, %v5140, 0
    %v5153 = vsel %vm4750, %v5141, 0
    %v5156 = vsel %vm4750, %v5142, 0
    %v5159 = vsel %vm4750, %v5143, 0
    %v5162 = vsel %vm4750, %v5144, 0
    %v5165 = vsel %vm4750, %v5145, 0
    %v5168 = vsel %vm680, %v4732, 0
    %5170 = vmatprep.subr.mxu0 0.0
    %5171 = vmatpush1.msra.mxu0 0.0
    %5172 = vmatprep.subr.mxu0 0.0
    %5173 = vmatpush1.msra.mxu0 0.0
    %5174 = vmatprep.subr.mxu0 0.0
    %5175 = vmatpush1.msra.mxu0 0.0
    %5176 = vmatprep.subr.mxu0 0.0
    %5177 = vmatpush1.msra.mxu0 0.0
    %5178 = vmatprep.subr.mxu0 0.0
    %5179 = vmatpush1.msra.mxu0 0.0
    %5180 = vmatprep.subr.mxu0 0.0
    %5181 = vmatpush1.msra.mxu0 0.0
    %5182 = vmatprep.subr.mxu0 0.0
    %5183 = vmatpush1.msra.mxu0 0.0
    %5184 = vmatprep.subr.mxu0 0.0
    %5185 = vmatpush1.msra.mxu0 0.0
    %5186 = vmatprep.subr.mxu0 0.0
    %5187 = vmatpush1.msra.mxu0 0.0
    %5188 = vmatprep.subr.mxu0 0.0
    %5189 = vmatpush1.msra.mxu0 0.0
    %5190 = vmatprep.subr.mxu0 0.0
    %5191 = vmatpush1.msra.mxu0 0.0
    %5192 = vmatprep.subr.mxu0 0.0
    %5193 = vmatpush1.msra.mxu0 0.0
    %5194 = vmatprep.subr.mxu0 0.0
    %5195 = vmatpush1.msra.mxu0 %v5168
    %5196 = vmatprep.subr.mxu0 0.0
    %5197 = vmatpush1.msra.mxu0 %v4728
    %5198 = vmatprep.subr.mxu0 0.0
    %5199 = vmatpush1.msra.mxu0 %v4722
    %5200 = vmatprep.subr.mxu0 0.0
    %5201 = vmatpush1.msra.mxu0 %v4718
    %5202 = vmatprep.subr.mxu0 0.0
    %5203 = vmatpush2.msra.mxu0 0.0
    %5204 = vmatprep.subr.mxu0 0.0
    %5205 = vmatpush2.msra.mxu0 0.0
    %5206 = vmatprep.subr.mxu0 0.0
    %5207 = vmatpush2.msra.mxu0 0.0
    %5208 = vmatprep.subr.mxu0 0.0
    %5209 = vmatpush2.msra.mxu0 0.0
    %5210 = vmatprep.subr.mxu0 0.0
    %5211 = vmatpush2.msra.mxu0 0.0
    %5212 = vmatprep.subr.mxu0 0.0
    %5213 = vmatpush2.msra.mxu0 0.0
    %5214 = vmatprep.subr.mxu0 0.0
    %5215 = vmatpush2.msra.mxu0 0.0
    %5216 = vmatprep.subr.mxu0 0.0
    %5217 = vmatpush2.msra.mxu0 0.0
    %5218 = vmatprep.subr.mxu0 0.0
    %5219 = vmatpush2.msra.mxu0 0.0
    %5220 = vmatprep.subr.mxu0 0.0
    %5221 = vmatpush2.msra.mxu0 0.0
    %5222 = vmatprep.subr.mxu0 0.0
    %5223 = vmatpush2.msra.mxu0 0.0
    %5224 = vmatprep.subr.mxu0 0.0
    %5225 = vmatpush2.msra.mxu0 0.0
    %5226 = vmatprep.subr.mxu0 0.0
    %5227 = vmatpush2.msra.mxu0 0.0
    %5228 = vmatprep.subr.mxu0 0.0
    %5229 = vmatpush2.msra.mxu0 0.0
    %5230 = vmatprep.subr.mxu0 0.0
    %5231 = vmatpush2.msra.mxu0 0.0
    %5232 = vmatprep.subr.mxu0 0.0
    %5233 = vmatpush2.msra.mxu0 0.0
    %5234 = vmatprep.mubr.f32.mxu0 0.0
    %5235 = vmatmul.mubr.f32.gmra.mxu0 %v5147
    %v5236 = vpop.f32.mrf.mxu0
    %v5237 = vadd.f32 0.0, %v5236
    %v5238 = vpop.f32.mrf.mxu0
    %5239 = vmatprep.mubr.f32.mxu0 0.0
    %5240 = vmatmul.mubr.f32.gmra.mxu0 %v5150
    %v5241 = vpop.f32.mrf.mxu0
    %v5242 = vadd.f32 0.0, %v5241
    %v5243 = vpop.f32.mrf.mxu0
    %5244 = vmatprep.mubr.f32.mxu0 0.0
    %5245 = vmatmul.mubr.f32.gmra.mxu0 %v5153
    %v5246 = vpop.f32.mrf.mxu0
    %v5247 = vadd.f32 0.0, %v5246
    %v5248 = vpop.f32.mrf.mxu0
    %5249 = vmatprep.mubr.f32.mxu0 0.0
    %5250 = vmatmul.mubr.f32.gmra.mxu0 %v5156
    %v5251 = vpop.f32.mrf.mxu0
    %v5252 = vadd.f32 0.0, %v5251
    %v5253 = vpop.f32.mrf.mxu0
    %5254 = vmatprep.mubr.f32.mxu0 0.0
    %5255 = vmatmul.mubr.f32.gmra.mxu0 %v5159
    %v5256 = vpop.f32.mrf.mxu0
    %v5257 = vadd.f32 0.0, %v5256
    %v5258 = vpop.f32.mrf.mxu0
    %5259 = vmatprep.mubr.f32.mxu0 0.0
    %5260 = vmatmul.mubr.f32.gmra.mxu0 %v5162
    %v5261 = vpop.f32.mrf.mxu0
    %v5262 = vadd.f32 0.0, %v5261
    %v5263 = vpop.f32.mrf.mxu0
    %5264 = vmatprep.mubr.f32.mxu0 0.0
    %5265 = vmatmul.mubr.f32.gmra.mxu0 %v5165
    %v5266 = vpop.f32.mrf.mxu0
    %v5267 = vadd.f32 0.0, %v5266
    %v5268 = vpop.f32.mrf.mxu0
    %5269 = vdwg.mxu0
    %v5270 = vadd.f32 %v5131, %v5237
    %v5271 = vadd.f32 %v5132, %v5242
    %v5272 = vadd.f32 %v5133, %v5247
    %v5273 = vadd.f32 %v5134, %v5252
    %v5274 = vadd.f32 %v5135, %v5257
    %v5275 = vadd.f32 %v5136, %v5262
    %v5276 = vadd.f32 %v5137, %v5267
    %v5277 = vld [vmem:[%s8 + $0x6] sm:$0x1]
    %v5278 = vlaneseq
    %v5279 = vshrl.u32 %v5278, 7
    %v5280 = vsub.s32 0, %v5279
    %v5281 = vrot.slane %v5277, %v5280
    %v5282 = vadd.f32 %v5270, %v5281
    %v5283 = vadd.f32 %v5271, %v5281
    %v5284 = vadd.f32 %v5272, %v5281
    %v5285 = vadd.f32 %v5273, %v5281
    %v5286 = vadd.f32 %v5274, %v5281
    %v5287 = vadd.f32 %v5275, %v5281
    %v5288 = vadd.f32 %v5276, %v5281
    %v5289 = vtanh.pop %v5282
    %v5290 = vtanh.pop %v5283
    %v5291 = vtanh.pop %v5284
    %v5292 = vtanh.pop %v5285
    %v5293 = vtanh.pop %v5286
    %v5294 = vtanh.pop %v5287
    %v5295 = vtanh.pop %v5288
    %5296 = vst [vmem:[#allocation6] sm:$0xff] %v5289
    %5297 = vst [vmem:[#allocation6 + $0x8] sm:$0xff] %v5290
    %5298 = vst [vmem:[#allocation6 + $0x10] sm:$0xff] %v5291
    %5299 = vst [vmem:[#allocation6 + $0x18] sm:$0xff] %v5292
    %5300 = vst [vmem:[#allocation6 + $0x20] sm:$0xff] %v5293
    %5301 = vst [vmem:[#allocation6 + $0x28] sm:$0xff] %v5294
    %5302 = vst [vmem:[#allocation6 + $0x30] sm:$0xff] %v5295
    // Predicated region
    $region98: #{generator_forward.1} parent=1 // pred_check
      _
    $region99: #{generator_forward.1} parent=1 // pred_check_branch
      %5304 = sbr.rel (0) target = $region101
    $region100: #{generator_forward.1} parent=1 // pred_region
      %s5306 = ssub.s32 896, 896
      %5307 = vsyncadd [#allocation7], %s5306
      %s5308 = sshll.u32 [#allocation6], 4
      %s5309 = int_to_ptr.vmem [resolvable:$true] %s5308
      %5314 = dma.vmem_to_hbm [thread:$0]  %s5309, 896, %s9, [#allocation7], 128, 128, 8
    $region101: #{generator_forward.1} parent=1 // pred_fallthru
      _
    // Predicated region
    $region102: #{generator_forward.1} parent=1 // pred_check
      _
    $region103: #{generator_forward.1} parent=1 // pred_check_branch
      %5316 = sbr.rel (0) target = $region105
    $region104: #{generator_forward.1} parent=1 // pred_region
      %5317 = dma.done [#allocation7], 896
    $region105: #{generator_forward.1} parent=1 // pred_fallthru
      _
    %5318 = vsyncpa [#allocation7], 1
  %5319 = vsyncmov [#allocation5]
  %s5320 = vpop.sfrf %5319
  %p5321 = scmp.eq.s32.totalorder %s5320, 0
  %p5322 = pneg %p5321
  %5324 = shalt.err (%p5322)
  %s5325 = scalar_lea.sflag [#allocation5], 1
  %5326 = vsyncmov %s5325
  %s5327 = vpop.sfrf %5326
  %p5328 = scmp.eq.s32.totalorder %s5327, 0
  %p5329 = pneg %p5328
  %5331 = shalt.err (%p5329)
  %s5332 = scalar_lea.sflag [#allocation5], 2
  %5333 = vsyncmov %s5332
  %s5334 = vpop.sfrf %5333
  %p5335 = scmp.eq.s32.totalorder %s5334, 0
  %p5336 = pneg %p5335
  %5338 = shalt.err (%p5336)

</llo_original>
